<compile_context>
chip_gen: v7x
topology: tpu7x:2x2x1
jax: 0.10.0
libtpu: 0.0.40
codegen_flags: <defaults>
</compile_context>

<pallas_src>
import jax
import jax.numpy as jnp
from jax import lax
from jax.experimental import pallas as pl
from jax.experimental.pallas import tpu as pltpu

_EPS = 1e-3


# ----------------------------------------------------------------------------
# Kernels
# ----------------------------------------------------------------------------
def _gemm_bias_maskedrelu_kernel(x_ref, w_ref, b_ref, m_ref, o_ref):
    # x_ref: (TM, K) bf16   w_ref: (K, Coutp) bf16 (BN scale folded)
    # b_ref: (1, Coutp) f32 folded BN bias
    # m_ref: (1, Coutp) f32 per-channel ReLU mask (1.0 -> ReLU, 0.0 -> linear)
    acc = jnp.dot(x_ref[...], w_ref[...], preferred_element_type=jnp.float32)
    y = acc + b_ref[...]
    y = jnp.where(m_ref[...] > 0.0, jnp.maximum(y, 0.0), y)
    o_ref[...] = y.astype(o_ref.dtype)


def _conv3x3_djstack_kernel(xp_ref, w_ref, b_ref, o_ref, acc_ref):
    # xp_ref: (1, H+2, W+2, Cin) bf16 full padded image (block index constant across
    #         the strip axis, so it is DMA'd once per image).
    # w_ref : (3, 3*Cin, Coutp) bf16 dj-stacked BN-folded weights (row = dj*Cin + c)
    # b_ref : (1, Coutp) f32 folded BN bias
    # o_ref : (1, STRIP, W, Coutp) bf16 output row strip
    # acc_ref: (STRIP*W, Coutp) f32 VMEM scratch accumulator (bounds vreg pressure)
    strip = o_ref.shape[1]
    w = o_ref.shape[2]
    coutp = o_ref.shape[3]
    cin = xp_ref.shape[3]
    k = 3 * cin

    s = pl.program_id(1)
    r0 = pl.multiple_of(s * strip, strip)
    rows = xp_ref[:, pl.ds(r0, strip + 2), :, :][0]          # (strip+2, W+2, Cin)
    # dj-stacking: three W-shifted copies concatenated on channels -> K = 3*Cin.
    xs = jnp.concatenate(
        [rows[:, 0:w, :], rows[:, 1:w + 1, :], rows[:, 2:w + 2, :]], axis=-1)

    wv = w_ref[...]
    acc_ref[...] = jnp.dot(xs[0:strip].reshape(strip * w, k), wv[0],
                           preferred_element_type=jnp.float32)
    acc_ref[...] += jnp.dot(xs[1:strip + 1].reshape(strip * w, k), wv[1],
                            preferred_element_type=jnp.float32)
    acc_ref[...] += jnp.dot(xs[2:strip + 2].reshape(strip * w, k), wv[2],
                            preferred_element_type=jnp.float32)

    y = jnp.maximum(acc_ref[...] + b_ref[...], 0.0)
    o_ref[...] = y.reshape(1, strip, w, coutp).astype(o_ref.dtype)


# ----------------------------------------------------------------------------
# Pallas wrappers
# ----------------------------------------------------------------------------
def _choose_tile_m(m):
    # >= 4 grid steps so megacore / v7x's 2 TCs each get >= 2 pipelined steps.
    for tm in (512, 256, 128, 64, 32, 16, 8):
        if m >= 4 * tm:
            return tm
    return 8


def _choose_strip(h):
    # >= 4 row strips per image (pipelining + v7x sharding) with a bounded f32 acc.
    for s in (8, 4, 2, 1):
        if h % s == 0 and h // s >= 4:
            return s
    for s in (8, 4, 2, 1):
        if h % s == 0:
            return s
    return 1


def _pointwise_gemm(x2d, w2d, bias, relu_mask):
    # x2d: (M, K) bf16, w2d: (K, Coutp) bf16, bias/relu_mask: (1, Coutp) f32.
    m, k = x2d.shape
    coutp = w2d.shape[1]
    tm = _choose_tile_m(m)
    mp = pl.cdiv(m, tm) * tm
    if mp != m:
        x2d = jnp.pad(x2d, ((0, mp - m), (0, 0)))
    cost = pl.CostEstimate(
        flops=2 * mp * k * coutp,
        transcendentals=0,
        bytes_accessed=mp * k * 2 + k * coutp * 2 + mp * coutp * 2 + 8 * coutp)
    out = pl.pallas_call(
        _gemm_bias_maskedrelu_kernel,
        out_shape=jax.ShapeDtypeStruct((mp, coutp), jnp.bfloat16),
        grid_spec=pltpu.PrefetchScalarGridSpec(
            num_scalar_prefetch=0,
            grid=(mp // tm,),
            in_specs=[
                pl.BlockSpec((tm, k), lambda i: (i, 0)),
                pl.BlockSpec((k, coutp), lambda i: (0, 0)),
                pl.BlockSpec((1, coutp), lambda i: (0, 0)),
                pl.BlockSpec((1, coutp), lambda i: (0, 0)),
            ],
            out_specs=pl.BlockSpec((tm, coutp), lambda i: (i, 0)),
        ),
        compiler_params=pltpu.CompilerParams(
            dimension_semantics=("parallel",),
            vmem_limit_bytes=32 * 1024 * 1024),
        cost_estimate=cost,
    )(x2d, w2d, bias, relu_mask)
    return out if mp == m else out[:m]


def _conv3x3_bn_relu(x_nhwc, w3, bias):
    # x_nhwc: (N, H, W, Cin) bf16.  w3: (3, 3*Cin, Coutp) bf16.  bias: (1, Coutp) f32.
    n, h, w, cin = x_nhwc.shape
    coutp = w3.shape[-1]
    strip = _choose_strip(h)
    # TODO(synk): the 1-pixel halo is still built with jnp.pad in HBM; an in-kernel
    # zero-filled VMEM halo would save one HBM write+read of the activation per conv.
    xp = jnp.pad(x_nhwc.astype(jnp.bfloat16), ((0, 0), (1, 1), (1, 1), (0, 0)))
    cost = pl.CostEstimate(
        flops=2 * n * h * w * 9 * cin * coutp,
        transcendentals=0,
        bytes_accessed=xp.size * 2 + w3.size * 2 + n * h * w * coutp * 2)
    return pl.pallas_call(
        _conv3x3_djstack_kernel,
        out_shape=jax.ShapeDtypeStruct((n, h, w, coutp), jnp.bfloat16),
        grid_spec=pltpu.PrefetchScalarGridSpec(
            num_scalar_prefetch=0,
            grid=(n, h // strip),
            in_specs=[
                pl.BlockSpec((1, h + 2, w + 2, cin), lambda b, s: (b, 0, 0, 0)),
                pl.BlockSpec((3, 3 * cin, coutp), lambda b, s: (0, 0, 0)),
                pl.BlockSpec((1, coutp), lambda b, s: (0, 0)),
            ],
            out_specs=pl.BlockSpec((1, strip, w, coutp), lambda b, s: (b, s, 0, 0)),
            scratch_shapes=[pltpu.VMEM((strip * w, coutp), jnp.float32)],
        ),
        compiler_params=pltpu.CompilerParams(
            dimension_semantics=("parallel", "parallel"),
            vmem_limit_bytes=32 * 1024 * 1024),
        cost_estimate=cost,
    )(xp, w3, bias)


# ----------------------------------------------------------------------------
# Parameter folding helpers
# ----------------------------------------------------------------------------
def _fold_bn(p, eps=_EPS):
    scale = p['gamma'] / jnp.sqrt(p['var'] + eps)
    wf = p['w'] * scale[:, None, None, None]
    bf = p['beta'] - p['mean'] * scale
    return wf, bf


def _as_1x1_mat(wf):
    # (Cout, Cin, 1, 1) -> (Cin, Cout)
    return wf[:, :, 0, 0].T


def _djstack_3x3(wf_oihw, bias, cin_pad, cout_pad):
    # (Cout, Cin, 3, 3) -> (3, 3*Cin_pad, Cout_pad) with row index = dj*Cin_pad + c.
    cout, cin, kh, kw = wf_oihw.shape
    w_hwio = jnp.transpose(wf_oihw, (2, 3, 1, 0))                     # (3,3,Cin,Cout)
    w_hwio = jnp.pad(w_hwio,
                     ((0, 0), (0, 0), (0, cin_pad - cin), (0, cout_pad - cout)))
    w3 = w_hwio.reshape(kh, kw * cin_pad, cout_pad)
    b = jnp.pad(bias, (0, cout_pad - cout)).reshape(1, cout_pad)
    return w3.astype(jnp.bfloat16), b.astype(jnp.float32)


def _avgpool3x3_relu(x_nhwc_f32):
    # 3x3 avg pool, stride 1, pad 1, count_include_pad=False, then ReLU.
    # Single reduce_window + precomputed reciprocal-count map (no second window op).
    # TODO(synk): could be fused into a small Pallas epilogue if it shows in profiles.
    n, h, w, c = x_nhwc_f32.shape
    pad = [(0, 0), (1, 1), (1, 1), (0, 0)]
    s = lax.reduce_window(x_nhwc_f32, 0.0, lax.add, (1, 3, 3, 1), (1, 1, 1, 1), pad)

    def cnt1d(nn):
        i = jnp.arange(nn)
        return (jnp.minimum(i + 1, nn - 1) - jnp.maximum(i - 1, 0) + 1).astype(jnp.float32)

    recip = (1.0 / (cnt1d(h)[:, None] * cnt1d(w)[None, :])).reshape(1, h, w, 1)
    return jnp.maximum(s * recip, 0.0)


# ----------------------------------------------------------------------------
# Inception_A forward (Pallas path)
# ----------------------------------------------------------------------------
def inception_a(x, params, eps=_EPS):
    """x: (N, 384, H, W) float32 NCHW.  Returns (N, 384, H, W) float32 NCHW."""
    n, cin, h, w = x.shape

    w_b0, b_b0 = _fold_bn(params['b0'], eps)
    w_b1r, b_b1r = _fold_bn(params['b1_0'], eps)
    w_b2r, b_b2r = _fold_bn(params['b2_0'], eps)
    w_b3p, b_b3p = _fold_bn(params['b3_1'], eps)
    w_b11, b_b11 = _fold_bn(params['b1_1'], eps)
    w_b21, b_b21 = _fold_bn(params['b2_1'], eps)
    w_b22, b_b22 = _fold_bn(params['b2_2'], eps)

    # ---- fused 1x1 stem GEMM, channels ordered for 128-aligned downstream slices:
    #      [0:64] b1 reduce | [64:128] b2 reduce | [128:224] branch0 | [224:320] b3 proj
    w_stem = jnp.concatenate(
        [_as_1x1_mat(w_b1r), _as_1x1_mat(w_b2r),
         _as_1x1_mat(w_b0), _as_1x1_mat(w_b3p)], axis=1)          # (384, 320)
    b_stem = jnp.concatenate([b_b1r, b_b2r, b_b0, b_b3p])          # (320,)
    # ReLU now for reducers + branch0; branch3's ReLU happens AFTER the avg-pool.
    relu_mask = jnp.concatenate([jnp.ones(224, jnp.float32),
                                 jnp.zeros(96, jnp.float32)])
    coutp = 384                                                    # pad 320 -> 384
    padc = coutp - 320
    w_stem = jnp.pad(w_stem, ((0, 0), (0, padc))).astype(jnp.bfloat16)
    b_stem = jnp.pad(b_stem, (0, padc)).astype(jnp.float32).reshape(1, coutp)
    relu_mask = jnp.pad(relu_mask, (0, padc)).reshape(1, coutp)

    # single NCHW -> NHWC transpose, bf16 activations from here on
    x_nhwc = jnp.transpose(x, (0, 2, 3, 1))
    x2d = x_nhwc.reshape(n * h * w, cin).astype(jnp.bfloat16)
    stem = _pointwise_gemm(x2d, w_stem, b_stem, relu_mask).reshape(n, h, w, coutp)

    reducers = stem[..., 0:128]     # lane-aligned slab feeding the fused 3x3 conv
    b0 = stem[..., 128:224]         # branch0 output (post-ReLU, bf16)
    b3_lin = stem[..., 224:320]     # branch3 projection, pre-ReLU

    # ---- conv A: branch2's first 3x3 (64->96) and branch1's 3x3 (64->96) fused
    #      with block-diagonal weights.  out 0:96 = branch2 mid (in ch 64:128),
    #      out 96:192 = branch1 (in ch 0:64); cout padded 192 -> 256, K = 3*128.
    wa = jnp.zeros((192, 128, 3, 3), jnp.float32)
    wa = wa.at[0:96, 64:128].set(w_b21)
    wa = wa.at[96:192, 0:64].set(w_b11)
    ba = jnp.concatenate([b_b21, b_b11])
    w3a, bba = _djstack_3x3(wa, ba, cin_pad=128, cout_pad=256)
    conv_a = _conv3x3_bn_relu(reducers, w3a, bba)                  # (N,H,W,256)

    br1 = conv_a[..., 96:192]                                      # branch1 output

    # ---- conv B: branch2's second 3x3 (96->96).  Input is the lane-aligned 0:128
    #      slab of conv_a (96 real mid channels + 32 branch1 channels that get zero
    #      weight rows); cout padded 96 -> 128, K = 3*128.
    wb = jnp.zeros((96, 128, 3, 3), jnp.float32)
    wb = wb.at[:, 0:96].set(w_b22)
    w3b, bbb = _djstack_3x3(wb, b_b22, cin_pad=128, cout_pad=128)
    br2 = _conv3x3_bn_relu(conv_a[..., 0:128], w3b, bbb)[..., 0:96]
    # TODO(synk): fuse conv A + conv B into one row-strip kernel (intermediate kept
    # in VMEM) to remove the HBM round trip of the 256-channel intermediate.

    # ---- branch3: avg-pool commutes with the (linear) 1x1 conv + BN because
    #      count_include_pad=False makes the pooling weights sum to 1; ReLU after.
    br3 = _avgpool3x3_relu(b3_lin.astype(jnp.float32)).astype(jnp.bfloat16)

    # bf16 concat + single NHWC -> NCHW transpose; cast to f32 once at the end.
    out = jnp.concatenate([b0, br1, br2, br3], axis=-1)            # (N, H, W, 384)
    return jnp.transpose(out, (0, 3, 1, 2)).astype(jnp.float32)


# ----------------------------------------------------------------------------
# Pure-JAX f32 reference (mirrors the PyTorch module)
# ----------------------------------------------------------------------------
def _ref_basic_conv(x, p, stride, padding, eps=_EPS):
    y = lax.conv_general_dilated(
        x, p['w'], (stride, stride), [(padding, padding)] * 2,
        dimension_numbers=("NCHW", "OIHW", "NCHW"))
    scale = p['gamma'] / jnp.sqrt(p['var'] + eps)
    bias = p['beta'] - p['mean'] * scale
    return jnp.maximum(y * scale[None, :, None, None] + bias[None, :, None, None], 0.0)


def _ref_avgpool3(x):
    pad = [(0, 0), (0, 0), (1, 1), (1, 1)]
    s = lax.reduce_window(x, 0.0, lax.add, (1, 1, 3, 3), (1, 1, 1, 1), pad)
    ones = jnp.ones((1, 1, x.shape[2], x.shape[3]), x.dtype)
    cnt = lax.reduce_window(ones, 0.0, lax.add, (1, 1, 3, 3), (1, 1, 1, 1), pad)
    return s / cnt


def _ref_inception_a(x, params):
    x0 = _ref_basic_conv(x, params['b0'], 1, 0)
    x1 = _ref_basic_conv(_ref_basic_conv(x, params['b1_0'], 1, 0), params['b1_1'], 1, 1)
    t = _ref_basic_conv(x, params['b2_0'], 1, 0)
    t = _ref_basic_conv(t, params['b2_1'], 1, 1)
    x2 = _ref_basic_conv(t, params['b2_2'], 1, 1)
    x3 = _ref_basic_conv(_ref_avgpool3(x), params['b3_1'], 1, 0)
    return jnp.concatenate([x0, x1, x2, x3], axis=1)


# ----------------------------------------------------------------------------
# Test harness
# ----------------------------------------------------------------------------
def _init_conv_params(key, cout, cin, ksize):
    k1, k2, k3, k4, k5 = jax.random.split(key, 5)
    return dict(
        w=jax.random.normal(k1, (cout, cin, ksize, ksize), jnp.float32) * 0.05,
        gamma=1.0 + 0.1 * jax.random.normal(k2, (cout,), jnp.float32),
        beta=0.1 * jax.random.normal(k3, (cout,), jnp.float32),
        mean=0.1 * jax.random.normal(k4, (cout,), jnp.float32),
        var=jax.nn.softplus(jax.random.normal(k5, (cout,), jnp.float32)) + 0.5,
    )


if __name__ == "__main__":
    key = jax.random.PRNGKey(0)
    kx, *kp = jax.random.split(key, 8)

    # Inception_A hard-codes 384 input channels; keep batch/spatial small.
    N, Cin, H, W = 2, 384, 16, 16
    x = jax.random.normal(kx, (N, Cin, H, W), jnp.float32)

    params = {
        'b0':   _init_conv_params(kp[0], 96, 384, 1),
        'b1_0': _init_conv_params(kp[1], 64, 384, 1),
        'b1_1': _init_conv_params(kp[2], 96, 64, 3),
        'b2_0': _init_conv_params(kp[3], 64, 384, 1),
        'b2_1': _init_conv_params(kp[4], 96, 64, 3),
        'b2_2': _init_conv_params(kp[5], 96, 96, 3),
        'b3_1': _init_conv_params(kp[6], 96, 384, 1),
    }

    fn = jax.jit(inception_a)
    out = jax.block_until_ready(fn(x, params))

    ref = _ref_inception_a(x, params)
    assert out.shape == (N, 384, H, W), out.shape
    # bf16 GEMM operands (f32 accumulation) across a 3-conv chain + bf16 concat path
    # => documented looser tolerance vs the pure-f32 XLA reference.
    max_err = float(jnp.max(jnp.abs(out - ref)))
    rel_err = float(jnp.linalg.norm(out - ref) / jnp.linalg.norm(ref))
    assert max_err < 0.25 and rel_err < 0.035, (max_err, rel_err)

    print("KERNEL_OK")
</pallas_src>

<mosaic_0001>
module attributes {stable_mosaic.version = 11 : i64} {
  func.func @_gemm_bias_maskedrelu_kernel(%arg0: i32, %arg1: memref<128x384xbf16, #tpu.memory_space<vmem>>, %arg2: memref<384x384xbf16, #tpu.memory_space<vmem>>, %arg3: memref<1x384xf32, #tpu.memory_space<vmem>>, %arg4: memref<1x384xf32, #tpu.memory_space<vmem>>, %arg5: memref<128x384xbf16, #tpu.memory_space<vmem>>) attributes {dimension_semantics = [#tpu.dimension_semantics<parallel>], iteration_bounds = array<i64: 4>, scalar_prefetch = 0 : i64, scratch_operands = 0 : i64, tpu.core_type = #tpu.core_type<tc>, window_params = [{transform_indices = @transform_0, window_bounds = array<i64: 128, 384>}, {pipeline_mode = #tpu.pipeline_mode<synchronous>, transform_indices = @transform_1, window_bounds = array<i64: 384, 384>}, {pipeline_mode = #tpu.pipeline_mode<synchronous>, transform_indices = @transform_2, window_bounds = array<i64: 1, 384>}, {pipeline_mode = #tpu.pipeline_mode<synchronous>, transform_indices = @transform_3, window_bounds = array<i64: 1, 384>}, {transform_indices = @transform_4, window_bounds = array<i64: 128, 384>}]} {
    %c0 = arith.constant 0 : index
    %c0_0 = arith.constant 0 : index
    %0 = vector.load %arg1[%c0, %c0_0] : memref<128x384xbf16, #tpu.memory_space<vmem>>, vector<128x384xbf16>
    %c0_1 = arith.constant 0 : index
    %c0_2 = arith.constant 0 : index
    %1 = vector.load %arg2[%c0_1, %c0_2] : memref<384x384xbf16, #tpu.memory_space<vmem>>, vector<384x384xbf16>
    %cst = arith.constant dense<0.000000e+00> : vector<128x384xf32>
    %2 = tpu.matmul %0, %1, %cst {dimension_numbers = #tpu.dot_dimension_numbers<[1], [0], [0], [1], [0, 0, 1, 1], [], []>} : vector<128x384xbf16>, vector<384x384xbf16>, vector<128x384xf32> -> vector<128x384xf32>
    %c0_3 = arith.constant 0 : index
    %c0_4 = arith.constant 0 : index
    %3 = vector.load %arg3[%c0_3, %c0_4] : memref<1x384xf32, #tpu.memory_space<vmem>>, vector<1x384xf32>
    %4 = vector.broadcast %3 : vector<1x384xf32> to vector<128x384xf32>
    %5 = arith.addf %2, %4 : vector<128x384xf32>
    %c0_5 = arith.constant 0 : index
    %c0_6 = arith.constant 0 : index
    %6 = vector.load %arg4[%c0_5, %c0_6] : memref<1x384xf32, #tpu.memory_space<vmem>>, vector<1x384xf32>
    %cst_7 = arith.constant 0.000000e+00 : f32
    %7 = vector.broadcast %cst_7 : f32 to vector<1x384xf32>
    %8 = arith.cmpf ogt, %6, %7 : vector<1x384xf32>
    %cst_8 = arith.constant 0.000000e+00 : f32
    %9 = vector.broadcast %cst_8 : f32 to vector<128x384xf32>
    %10 = arith.maximumf %5, %9 : vector<128x384xf32>
    %11 = vector.shape_cast %8 : vector<1x384xi1> to vector<1x384xi1>
    %12 = vector.broadcast %11 : vector<1x384xi1> to vector<128x384xi1>
    %13 = arith.select %12, %10, %5 : vector<128x384xi1>, vector<128x384xf32>
    %14 = arith.truncf %13 : vector<128x384xf32> to vector<128x384xbf16>
    %c0_9 = arith.constant 0 : index
    %c0_10 = arith.constant 0 : index
    %15 = vector.load %arg5[%c0_9, %c0_10] : memref<128x384xbf16, #tpu.memory_space<vmem>>, vector<128x384xbf16>
    tpu.vector_store %arg5[%c0_9, %c0_10], %14 {strides = array<i32>} : memref<128x384xbf16, #tpu.memory_space<vmem>>, vector<128x384xbf16>,
    return
  }
  func.func @transform_0(%arg0: i32) -> (i32, i32) {
    %c0_i32 = arith.constant 0 : i32
    %c0_i32_0 = arith.constant 0 : i32
    return %arg0, %c0_i32 : i32, i32
  }
  func.func @transform_1(%arg0: i32) -> (i32, i32) {
    %c0_i32 = arith.constant 0 : i32
    %c0_i32_0 = arith.constant 0 : i32
    %c0_i32_1 = arith.constant 0 : i32
    return %c0_i32, %c0_i32_0 : i32, i32
  }
  func.func @transform_2(%arg0: i32) -> (i32, i32) {
    %c0_i32 = arith.constant 0 : i32
    %c0_i32_0 = arith.constant 0 : i32
    %c0_i32_1 = arith.constant 0 : i32
    return %c0_i32, %c0_i32_0 : i32, i32
  }
  func.func @transform_3(%arg0: i32) -> (i32, i32) {
    %c0_i32 = arith.constant 0 : i32
    %c0_i32_0 = arith.constant 0 : i32
    %c0_i32_1 = arith.constant 0 : i32
    return %c0_i32, %c0_i32_0 : i32, i32
  }
  func.func @transform_4(%arg0: i32) -> (i32, i32) {
    %c0_i32 = arith.constant 0 : i32
    %c0_i32_0 = arith.constant 0 : i32
    return %arg0, %c0_i32 : i32, i32
  }
}

module attributes {stable_mosaic.version = 11 : i64} {
  func.func @_conv3x3_djstack_kernel(%arg0: i32, %arg1: i32, %arg2: memref<1x18x18x128xbf16, #tpu.memory_space<vmem>>, %arg3: memref<3x384x256xbf16, #tpu.memory_space<vmem>>, %arg4: memref<1x256xf32, #tpu.memory_space<vmem>>, %arg5: memref<1x4x16x256xbf16, #tpu.memory_space<vmem>>, %arg6: memref<64x256xf32, #tpu.memory_space<vmem>>) attributes {dimension_semantics = [#tpu.dimension_semantics<parallel>, #tpu.dimension_semantics<parallel>], iteration_bounds = array<i64: 2, 4>, scalar_prefetch = 0 : i64, scratch_operands = 1 : i64, tpu.core_type = #tpu.core_type<tc>, window_params = [{transform_indices = @transform_0, window_bounds = array<i64: 1, 18, 18, 128>}, {pipeline_mode = #tpu.pipeline_mode<synchronous>, transform_indices = @transform_1, window_bounds = array<i64: 3, 384, 256>}, {pipeline_mode = #tpu.pipeline_mode<synchronous>, transform_indices = @transform_2, window_bounds = array<i64: 1, 256>}, {transform_indices = @transform_3, window_bounds = array<i64: 1, 4, 16, 256>}]} {
    %c4_i32 = arith.constant 4 : i32
    %0 = arith.muli %arg1, %c4_i32 : i32
    %1 = tpu.assume_multiple %0, 4 : i32
    %c0 = arith.constant 0 : index
    %2 = arith.index_cast %1 : i32 to index
    %c0_0 = arith.constant 0 : index
    %c0_1 = arith.constant 0 : index
    %3 = vector.load %arg2[%c0, %2, %c0_0, %c0_1] : memref<1x18x18x128xbf16, #tpu.memory_space<vmem>>, vector<1x6x18x128xbf16>
    %4 = vector.shape_cast %3 : vector<1x6x18x128xbf16> to vector<6x18x128xbf16>
    %5 = vector.extract_strided_slice %4 {offsets = [0, 0, 0], sizes = [6, 16, 128], strides = [1, 1, 1]} : vector<6x18x128xbf16> to vector<6x16x128xbf16>
    %6 = vector.extract_strided_slice %4 {offsets = [0, 1, 0], sizes = [6, 16, 128], strides = [1, 1, 1]} : vector<6x18x128xbf16> to vector<6x16x128xbf16>
    %7 = vector.extract_strided_slice %4 {offsets = [0, 2, 0], sizes = [6, 16, 128], strides = [1, 1, 1]} : vector<6x18x128xbf16> to vector<6x16x128xbf16>
    %8 = tpu.concatenate %5, %6, %7 in 2 : vector<6x16x128xbf16>, vector<6x16x128xbf16>, vector<6x16x128xbf16> -> vector<6x16x384xbf16>
    %c0_2 = arith.constant 0 : index
    %c0_3 = arith.constant 0 : index
    %c0_4 = arith.constant 0 : index
    %9 = vector.load %arg3[%c0_2, %c0_3, %c0_4] : memref<3x384x256xbf16, #tpu.memory_space<vmem>>, vector<3x384x256xbf16>
    %10 = vector.extract_strided_slice %8 {offsets = [0, 0, 0], sizes = [4, 16, 384], strides = [1, 1, 1]} : vector<6x16x384xbf16> to vector<4x16x384xbf16>
    %11 = vector.shape_cast %10 : vector<4x16x384xbf16> to vector<64x384xbf16>
    %12 = vector.extract_strided_slice %9 {offsets = [0, 0, 0], sizes = [1, 384, 256], strides = [1, 1, 1]} : vector<3x384x256xbf16> to vector<1x384x256xbf16>
    %13 = vector.shape_cast %12 : vector<1x384x256xbf16> to vector<384x256xbf16>
    %cst = arith.constant dense<0.000000e+00> : vector<64x256xf32>
    %14 = tpu.matmul %11, %13, %cst {dimension_numbers = #tpu.dot_dimension_numbers<[1], [0], [0], [1], [0, 0, 1, 1], [], []>} : vector<64x384xbf16>, vector<384x256xbf16>, vector<64x256xf32> -> vector<64x256xf32>
    %c0_5 = arith.constant 0 : index
    %c0_6 = arith.constant 0 : index
    %15 = vector.load %arg6[%c0_5, %c0_6] : memref<64x256xf32, #tpu.memory_space<vmem>>, vector<64x256xf32>
    tpu.vector_store %arg6[%c0_5, %c0_6], %14 {strides = array<i32>} : memref<64x256xf32, #tpu.memory_space<vmem>>, vector<64x256xf32>,
    %c0_7 = arith.constant 0 : index
    %c0_8 = arith.constant 0 : index
    %16 = vector.load %arg6[%c0_7, %c0_8] : memref<64x256xf32, #tpu.memory_space<vmem>>, vector<64x256xf32>
    %17 = vector.extract_strided_slice %8 {offsets = [1, 0, 0], sizes = [4, 16, 384], strides = [1, 1, 1]} : vector<6x16x384xbf16> to vector<4x16x384xbf16>
    %18 = vector.shape_cast %17 : vector<4x16x384xbf16> to vector<64x384xbf16>
    %19 = vector.extract_strided_slice %9 {offsets = [1, 0, 0], sizes = [1, 384, 256], strides = [1, 1, 1]} : vector<3x384x256xbf16> to vector<1x384x256xbf16>
    %20 = vector.shape_cast %19 : vector<1x384x256xbf16> to vector<384x256xbf16>
    %cst_9 = arith.constant dense<0.000000e+00> : vector<64x256xf32>
    %21 = tpu.matmul %18, %20, %cst_9 {dimension_numbers = #tpu.dot_dimension_numbers<[1], [0], [0], [1], [0, 0, 1, 1], [], []>} : vector<64x384xbf16>, vector<384x256xbf16>, vector<64x256xf32> -> vector<64x256xf32>
    %22 = arith.addf %16, %21 : vector<64x256xf32>
    %c0_10 = arith.constant 0 : index
    %c0_11 = arith.constant 0 : index
    %23 = vector.load %arg6[%c0_10, %c0_11] : memref<64x256xf32, #tpu.memory_space<vmem>>, vector<64x256xf32>
    tpu.vector_store %arg6[%c0_10, %c0_11], %22 {strides = array<i32>} : memref<64x256xf32, #tpu.memory_space<vmem>>, vector<64x256xf32>,
    %c0_12 = arith.constant 0 : index
    %c0_13 = arith.constant 0 : index
    %24 = vector.load %arg6[%c0_12, %c0_13] : memref<64x256xf32, #tpu.memory_space<vmem>>, vector<64x256xf32>
    %25 = vector.extract_strided_slice %8 {offsets = [2, 0, 0], sizes = [4, 16, 384], strides = [1, 1, 1]} : vector<6x16x384xbf16> to vector<4x16x384xbf16>
    %26 = vector.shape_cast %25 : vector<4x16x384xbf16> to vector<64x384xbf16>
    %27 = vector.extract_strided_slice %9 {offsets = [2, 0, 0], sizes = [1, 384, 256], strides = [1, 1, 1]} : vector<3x384x256xbf16> to vector<1x384x256xbf16>
    %28 = vector.shape_cast %27 : vector<1x384x256xbf16> to vector<384x256xbf16>
    %cst_14 = arith.constant dense<0.000000e+00> : vector<64x256xf32>
    %29 = tpu.matmul %26, %28, %cst_14 {dimension_numbers = #tpu.dot_dimension_numbers<[1], [0], [0], [1], [0, 0, 1, 1], [], []>} : vector<64x384xbf16>, vector<384x256xbf16>, vector<64x256xf32> -> vector<64x256xf32>
    %30 = arith.addf %24, %29 : vector<64x256xf32>
    %c0_15 = arith.constant 0 : index
    %c0_16 = arith.constant 0 : index
    %31 = vector.load %arg6[%c0_15, %c0_16] : memref<64x256xf32, #tpu.memory_space<vmem>>, vector<64x256xf32>
    tpu.vector_store %arg6[%c0_15, %c0_16], %30 {strides = array<i32>} : memref<64x256xf32, #tpu.memory_space<vmem>>, vector<64x256xf32>,
    %c0_17 = arith.constant 0 : index
    %c0_18 = arith.constant 0 : index
    %32 = vector.load %arg6[%c0_17, %c0_18] : memref<64x256xf32, #tpu.memory_space<vmem>>, vector<64x256xf32>
    %c0_19 = arith.constant 0 : index
    %c0_20 = arith.constant 0 : index
    %33 = vector.load %arg4[%c0_19, %c0_20] : memref<1x256xf32, #tpu.memory_space<vmem>>, vector<1x256xf32>
    %34 = vector.broadcast %33 : vector<1x256xf32> to vector<64x256xf32>
    %35 = arith.addf %32, %34 : vector<64x256xf32>
    %cst_21 = arith.constant 0.000000e+00 : f32
    %36 = vector.broadcast %cst_21 : f32 to vector<64x256xf32>
    %37 = arith.maximumf %35, %36 : vector<64x256xf32>
    %38 = vector.shape_cast %37 : vector<64x256xf32> to vector<1x4x16x256xf32>
    %39 = arith.truncf %38 : vector<1x4x16x256xf32> to vector<1x4x16x256xbf16>
    %c0_22 = arith.constant 0 : index
    %c0_23 = arith.constant 0 : index
    %c0_24 = arith.constant 0 : index
    %c0_25 = arith.constant 0 : index
    %40 = vector.load %arg5[%c0_22, %c0_23, %c0_24, %c0_25] : memref<1x4x16x256xbf16, #tpu.memory_space<vmem>>, vector<1x4x16x256xbf16>
    tpu.vector_store %arg5[%c0_22, %c0_23, %c0_24, %c0_25], %39 {strides = array<i32>} : memref<1x4x16x256xbf16, #tpu.memory_space<vmem>>, vector<1x4x16x256xbf16>,
    return
  }
  func.func @transform_0(%arg0: i32, %arg1: i32) -> (i32, i32, i32, i32) {
    %c0_i32 = arith.constant 0 : i32
    %c0_i32_0 = arith.constant 0 : i32
    %c0_i32_1 = arith.constant 0 : i32
    %c0_i32_2 = arith.constant 0 : i32
    return %arg0, %c0_i32, %c0_i32_0, %c0_i32_1 : i32, i32, i32, i32
  }
  func.func @transform_1(%arg0: i32, %arg1: i32) -> (i32, i32, i32) {
    %c0_i32 = arith.constant 0 : i32
    %c0_i32_0 = arith.constant 0 : i32
    %c0_i32_1 = arith.constant 0 : i32
    %c0_i32_2 = arith.constant 0 : i32
    return %c0_i32, %c0_i32_0, %c0_i32_1 : i32, i32, i32
  }
  func.func @transform_2(%arg0: i32, %arg1: i32) -> (i32, i32) {
    %c0_i32 = arith.constant 0 : i32
    %c0_i32_0 = arith.constant 0 : i32
    %c0_i32_1 = arith.constant 0 : i32
    return %c0_i32, %c0_i32_0 : i32, i32
  }
  func.func @transform_3(%arg0: i32, %arg1: i32) -> (i32, i32, i32, i32) {
    %c0_i32 = arith.constant 0 : i32
    %c0_i32_0 = arith.constant 0 : i32
    %c0_i32_1 = arith.constant 0 : i32
    return %arg0, %arg1, %c0_i32, %c0_i32_0 : i32, i32, i32, i32
  }
}

module attributes {stable_mosaic.version = 11 : i64} {
  func.func @_conv3x3_djstack_kernel(%arg0: i32, %arg1: i32, %arg2: memref<1x18x18x128xbf16, #tpu.memory_space<vmem>>, %arg3: memref<3x384x128xbf16, #tpu.memory_space<vmem>>, %arg4: memref<1x128xf32, #tpu.memory_space<vmem>>, %arg5: memref<1x4x16x128xbf16, #tpu.memory_space<vmem>>, %arg6: memref<64x128xf32, #tpu.memory_space<vmem>>) attributes {dimension_semantics = [#tpu.dimension_semantics<parallel>, #tpu.dimension_semantics<parallel>], iteration_bounds = array<i64: 2, 4>, scalar_prefetch = 0 : i64, scratch_operands = 1 : i64, tpu.core_type = #tpu.core_type<tc>, window_params = [{transform_indices = @transform_0, window_bounds = array<i64: 1, 18, 18, 128>}, {pipeline_mode = #tpu.pipeline_mode<synchronous>, transform_indices = @transform_1, window_bounds = array<i64: 3, 384, 128>}, {pipeline_mode = #tpu.pipeline_mode<synchronous>, transform_indices = @transform_2, window_bounds = array<i64: 1, 128>}, {transform_indices = @transform_3, window_bounds = array<i64: 1, 4, 16, 128>}]} {
    %c4_i32 = arith.constant 4 : i32
    %0 = arith.muli %arg1, %c4_i32 : i32
    %1 = tpu.assume_multiple %0, 4 : i32
    %c0 = arith.constant 0 : index
    %2 = arith.index_cast %1 : i32 to index
    %c0_0 = arith.constant 0 : index
    %c0_1 = arith.constant 0 : index
    %3 = vector.load %arg2[%c0, %2, %c0_0, %c0_1] : memref<1x18x18x128xbf16, #tpu.memory_space<vmem>>, vector<1x6x18x128xbf16>
    %4 = vector.shape_cast %3 : vector<1x6x18x128xbf16> to vector<6x18x128xbf16>
    %5 = vector.extract_strided_slice %4 {offsets = [0, 0, 0], sizes = [6, 16, 128], strides = [1, 1, 1]} : vector<6x18x128xbf16> to vector<6x16x128xbf16>
    %6 = vector.extract_strided_slice %4 {offsets = [0, 1, 0], sizes = [6, 16, 128], strides = [1, 1, 1]} : vector<6x18x128xbf16> to vector<6x16x128xbf16>
    %7 = vector.extract_strided_slice %4 {offsets = [0, 2, 0], sizes = [6, 16, 128], strides = [1, 1, 1]} : vector<6x18x128xbf16> to vector<6x16x128xbf16>
    %8 = tpu.concatenate %5, %6, %7 in 2 : vector<6x16x128xbf16>, vector<6x16x128xbf16>, vector<6x16x128xbf16> -> vector<6x16x384xbf16>
    %c0_2 = arith.constant 0 : index
    %c0_3 = arith.constant 0 : index
    %c0_4 = arith.constant 0 : index
    %9 = vector.load %arg3[%c0_2, %c0_3, %c0_4] : memref<3x384x128xbf16, #tpu.memory_space<vmem>>, vector<3x384x128xbf16>
    %10 = vector.extract_strided_slice %8 {offsets = [0, 0, 0], sizes = [4, 16, 384], strides = [1, 1, 1]} : vector<6x16x384xbf16> to vector<4x16x384xbf16>
    %11 = vector.shape_cast %10 : vector<4x16x384xbf16> to vector<64x384xbf16>
    %12 = vector.extract_strided_slice %9 {offsets = [0, 0, 0], sizes = [1, 384, 128], strides = [1, 1, 1]} : vector<3x384x128xbf16> to vector<1x384x128xbf16>
    %13 = vector.shape_cast %12 : vector<1x384x128xbf16> to vector<384x128xbf16>
    %cst = arith.constant dense<0.000000e+00> : vector<64x128xf32>
    %14 = tpu.matmul %11, %13, %cst {dimension_numbers = #tpu.dot_dimension_numbers<[1], [0], [0], [1], [0, 0, 1, 1], [], []>} : vector<64x384xbf16>, vector<384x128xbf16>, vector<64x128xf32> -> vector<64x128xf32>
    %c0_5 = arith.constant 0 : index
    %c0_6 = arith.constant 0 : index
    %15 = vector.load %arg6[%c0_5, %c0_6] : memref<64x128xf32, #tpu.memory_space<vmem>>, vector<64x128xf32>
    tpu.vector_store %arg6[%c0_5, %c0_6], %14 {strides = array<i32>} : memref<64x128xf32, #tpu.memory_space<vmem>>, vector<64x128xf32>,
    %c0_7 = arith.constant 0 : index
    %c0_8 = arith.constant 0 : index
    %16 = vector.load %arg6[%c0_7, %c0_8] : memref<64x128xf32, #tpu.memory_space<vmem>>, vector<64x128xf32>
    %17 = vector.extract_strided_slice %8 {offsets = [1, 0, 0], sizes = [4, 16, 384], strides = [1, 1, 1]} : vector<6x16x384xbf16> to vector<4x16x384xbf16>
    %18 = vector.shape_cast %17 : vector<4x16x384xbf16> to vector<64x384xbf16>
    %19 = vector.extract_strided_slice %9 {offsets = [1, 0, 0], sizes = [1, 384, 128], strides = [1, 1, 1]} : vector<3x384x128xbf16> to vector<1x384x128xbf16>
    %20 = vector.shape_cast %19 : vector<1x384x128xbf16> to vector<384x128xbf16>
    %cst_9 = arith.constant dense<0.000000e+00> : vector<64x128xf32>
    %21 = tpu.matmul %18, %20, %cst_9 {dimension_numbers = #tpu.dot_dimension_numbers<[1], [0], [0], [1], [0, 0, 1, 1], [], []>} : vector<64x384xbf16>, vector<384x128xbf16>, vector<64x128xf32> -> vector<64x128xf32>
    %22 = arith.addf %16, %21 : vector<64x128xf32>
    %c0_10 = arith.constant 0 : index
    %c0_11 = arith.constant 0 : index
    %23 = vector.load %arg6[%c0_10, %c0_11] : memref<64x128xf32, #tpu.memory_space<vmem>>, vector<64x128xf32>
    tpu.vector_store %arg6[%c0_10, %c0_11], %22 {strides = array<i32>} : memref<64x128xf32, #tpu.memory_space<vmem>>, vector<64x128xf32>,
    %c0_12 = arith.constant 0 : index
    %c0_13 = arith.constant 0 : index
    %24 = vector.load %arg6[%c0_12, %c0_13] : memref<64x128xf32, #tpu.memory_space<vmem>>, vector<64x128xf32>
    %25 = vector.extract_strided_slice %8 {offsets = [2, 0, 0], sizes = [4, 16, 384], strides = [1, 1, 1]} : vector<6x16x384xbf16> to vector<4x16x384xbf16>
    %26 = vector.shape_cast %25 : vector<4x16x384xbf16> to vector<64x384xbf16>
    %27 = vector.extract_strided_slice %9 {offsets = [2, 0, 0], sizes = [1, 384, 128], strides = [1, 1, 1]} : vector<3x384x128xbf16> to vector<1x384x128xbf16>
    %28 = vector.shape_cast %27 : vector<1x384x128xbf16> to vector<384x128xbf16>
    %cst_14 = arith.constant dense<0.000000e+00> : vector<64x128xf32>
    %29 = tpu.matmul %26, %28, %cst_14 {dimension_numbers = #tpu.dot_dimension_numbers<[1], [0], [0], [1], [0, 0, 1, 1], [], []>} : vector<64x384xbf16>, vector<384x128xbf16>, vector<64x128xf32> -> vector<64x128xf32>
    %30 = arith.addf %24, %29 : vector<64x128xf32>
    %c0_15 = arith.constant 0 : index
    %c0_16 = arith.constant 0 : index
    %31 = vector.load %arg6[%c0_15, %c0_16] : memref<64x128xf32, #tpu.memory_space<vmem>>, vector<64x128xf32>
    tpu.vector_store %arg6[%c0_15, %c0_16], %30 {strides = array<i32>} : memref<64x128xf32, #tpu.memory_space<vmem>>, vector<64x128xf32>,
    %c0_17 = arith.constant 0 : index
    %c0_18 = arith.constant 0 : index
    %32 = vector.load %arg6[%c0_17, %c0_18] : memref<64x128xf32, #tpu.memory_space<vmem>>, vector<64x128xf32>
    %c0_19 = arith.constant 0 : index
    %c0_20 = arith.constant 0 : index
    %33 = vector.load %arg4[%c0_19, %c0_20] : memref<1x128xf32, #tpu.memory_space<vmem>>, vector<1x128xf32>
    %34 = vector.broadcast %33 : vector<1x128xf32> to vector<64x128xf32>
    %35 = arith.addf %32, %34 : vector<64x128xf32>
    %cst_21 = arith.constant 0.000000e+00 : f32
    %36 = vector.broadcast %cst_21 : f32 to vector<64x128xf32>
    %37 = arith.maximumf %35, %36 : vector<64x128xf32>
    %38 = vector.shape_cast %37 : vector<64x128xf32> to vector<1x4x16x128xf32>
    %39 = arith.truncf %38 : vector<1x4x16x128xf32> to vector<1x4x16x128xbf16>
    %c0_22 = arith.constant 0 : index
    %c0_23 = arith.constant 0 : index
    %c0_24 = arith.constant 0 : index
    %c0_25 = arith.constant 0 : index
    %40 = vector.load %arg5[%c0_22, %c0_23, %c0_24, %c0_25] : memref<1x4x16x128xbf16, #tpu.memory_space<vmem>>, vector<1x4x16x128xbf16>
    tpu.vector_store %arg5[%c0_22, %c0_23, %c0_24, %c0_25], %39 {strides = array<i32>} : memref<1x4x16x128xbf16, #tpu.memory_space<vmem>>, vector<1x4x16x128xbf16>,
    return
  }
  func.func @transform_0(%arg0: i32, %arg1: i32) -> (i32, i32, i32, i32) {
    %c0_i32 = arith.constant 0 : i32
    %c0_i32_0 = arith.constant 0 : i32
    %c0_i32_1 = arith.constant 0 : i32
    %c0_i32_2 = arith.constant 0 : i32
    return %arg0, %c0_i32, %c0_i32_0, %c0_i32_1 : i32, i32, i32, i32
  }
  func.func @transform_1(%arg0: i32, %arg1: i32) -> (i32, i32, i32) {
    %c0_i32 = arith.constant 0 : i32
    %c0_i32_0 = arith.constant 0 : i32
    %c0_i32_1 = arith.constant 0 : i32
    %c0_i32_2 = arith.constant 0 : i32
    return %c0_i32, %c0_i32_0, %c0_i32_1 : i32, i32, i32
  }
  func.func @transform_2(%arg0: i32, %arg1: i32) -> (i32, i32) {
    %c0_i32 = arith.constant 0 : i32
    %c0_i32_0 = arith.constant 0 : i32
    %c0_i32_1 = arith.constant 0 : i32
    return %c0_i32, %c0_i32_0 : i32, i32
  }
  func.func @transform_3(%arg0: i32, %arg1: i32) -> (i32, i32, i32, i32) {
    %c0_i32 = arith.constant 0 : i32
    %c0_i32_0 = arith.constant 0 : i32
    %c0_i32_1 = arith.constant 0 : i32
    return %arg0, %arg1, %c0_i32, %c0_i32_0 : i32, i32, i32, i32
  }
}

</mosaic_0001>

<llo_original>
// kernel: inception_a.3
$region0: #{inception_a.3}
  #allocation0 [shape = 'u32[]', space=smem, size = 0x4, offset = 0x4, fixed_abs, tag = 'smem constant byte address 0x4 - core index']
  #allocation1 [shape = 'u32[144,128]{1,0:T(1,128)}', space=vmem, size = 0x12000, scoped, tag = 'internal scratch']
  %s0 = inlined_call_operand.vmem [shape: bf16[512,384], index: 0, kind: input, shape index: {}]
  %s1 = inlined_call_operand.vmem [shape: bf16[384,384], index: 1, kind: input, shape index: {}]
  %s2 = inlined_call_operand.vmem [shape: f32[1,384], index: 2, kind: input, shape index: {}]
  %s3 = inlined_call_operand.vmem [shape: f32[1,384], index: 3, kind: input, shape index: {}]
  %s4 = inlined_call_operand.vmem [shape: bf16[512,384], index: 4, kind: output, shape index: {}]
  %s5 = sld [smem:[#allocation0]]
  $region49: #{inception_a.3} parent=0
    _
  %s7 = ssub.s32 1, %s5
  %s8 = scalar_select 0, %s7, %s5
  loop: start=0, step=1, limit=6
  $region2: #{inception_a.3} parent=0 // loop_pre_header
    _
  $region3: #{inception_a.3} parent=0 // loop_header
    %s10 = sphi 0, %s14
    %p11 = scmp.ge.s32.totalorder %s10, 6
    %s20 = sphi 0, %s22
    %s23 = sphi 0, %s20
    %s24 = sphi 0, %s23
    %s40 = sphi 0, %s24
    %s44 = sphi 0, %s44
    %s46 = sphi 0, %s44
    %s47 = sphi 0, %s46
    %s61 = sphi 0, %s47
    %s65 = sphi 0, %s65
    %s67 = sphi 0, %s65
    %s68 = sphi 0, %s67
    %s82 = sphi 0, %s68
    %s86 = sphi 0, %s86
    %s88 = sphi 0, %s86
    %s89 = sphi 0, %s88
    %s103 = sphi 0, %s89
    %s109 = sphi 0, %s111
    %s112 = sphi 0, %s109
    %s113 = sphi 0, %s112
    %s129 = sphi 0, %s113
  $region4: #{inception_a.3} parent=0 // loop_header_branch
    %13 = sbr.rel (%p11) target = $region8
  $region5: #{inception_a.3} parent=0 // loop_body
    %s15 = ssub.s32 %s10, 1
    %s16 = ssub.s32 %s10, 2
    %s17 = sadd.s32 %s10, 1
    %s18 = ssub.s32 %s10, %s17
    %p19 = scmp.eq.s32.totalorder %s18, 0
    %s21 = sadd.s32 %s20, 1
    %s22 = scalar_select %p19, %s20, %s21
    %p25 = pneg %p19
    %p26 = scmp.eq.s32.totalorder %s10, 3
    %p27 = por %p25, %p26
    %p28 = scmp.ne.s32.totalorder %s20, %s23
    %p29 = scmp.eq.s32.totalorder %s10, 0
    %p30 = por %p28, %p29
    %p31 = scmp.ne.s32.totalorder %s20, %s23
    %p32 = scmp.eq.s32.totalorder %s15, 3
    %p33 = por %p31, %p32
    %p34 = scmp.ne.s32.totalorder %s23, %s24
    %p35 = scmp.eq.s32.totalorder %s15, 0
    %p36 = por %p34, %p35
    %p37 = scmp.ne.s32.totalorder %s23, %s24
    %p38 = scmp.eq.s32.totalorder %s16, 3
    %p39 = por %p37, %p38
    %p41 = scmp.ne.s32.totalorder %s24, %s40
    %p42 = scmp.eq.s32.totalorder %s16, 0
    %p43 = por %p41, %p42
    %s45 = sadd.s32 %s44, 1
    %p48 = scmp.eq.s32.totalorder %s10, 3
    %p49 = scmp.ne.s32.totalorder %s44, %s46
    %p50 = scmp.eq.s32.totalorder %s10, 0
    %p51 = por %p49, %p50
    %p52 = scmp.ne.s32.totalorder %s44, %s46
    %p53 = scmp.eq.s32.totalorder %s15, 3
    %p54 = por %p52, %p53
    %p55 = scmp.ne.s32.totalorder %s46, %s47
    %p56 = scmp.eq.s32.totalorder %s15, 0
    %p57 = por %p55, %p56
    %p58 = scmp.ne.s32.totalorder %s46, %s47
    %p59 = scmp.eq.s32.totalorder %s16, 3
    %p60 = por %p58, %p59
    %p62 = scmp.ne.s32.totalorder %s47, %s61
    %p63 = scmp.eq.s32.totalorder %s16, 0
    %p64 = por %p62, %p63
    %s66 = sadd.s32 %s65, 1
    %p69 = scmp.eq.s32.totalorder %s10, 3
    %p70 = scmp.ne.s32.totalorder %s65, %s67
    %p71 = scmp.eq.s32.totalorder %s10, 0
    %p72 = por %p70, %p71
    %p73 = scmp.ne.s32.totalorder %s65, %s67
    %p74 = scmp.eq.s32.totalorder %s15, 3
    %p75 = por %p73, %p74
    %p76 = scmp.ne.s32.totalorder %s67, %s68
    %p77 = scmp.eq.s32.totalorder %s15, 0
    %p78 = por %p76, %p77
    %p79 = scmp.ne.s32.totalorder %s67, %s68
    %p80 = scmp.eq.s32.totalorder %s16, 3
    %p81 = por %p79, %p80
    %p83 = scmp.ne.s32.totalorder %s68, %s82
    %p84 = scmp.eq.s32.totalorder %s16, 0
    %p85 = por %p83, %p84
    %s87 = sadd.s32 %s86, 1
    %p90 = scmp.eq.s32.totalorder %s10, 3
    %p91 = scmp.ne.s32.totalorder %s86, %s88
    %p92 = scmp.eq.s32.totalorder %s10, 0
    %p93 = por %p91, %p92
    %p94 = scmp.ne.s32.totalorder %s86, %s88
    %p95 = scmp.eq.s32.totalorder %s15, 3
    %p96 = por %p94, %p95
    %p97 = scmp.ne.s32.totalorder %s88, %s89
    %p98 = scmp.eq.s32.totalorder %s15, 0
    %p99 = por %p97, %p98
    %p100 = scmp.ne.s32.totalorder %s88, %s89
    %p101 = scmp.eq.s32.totalorder %s16, 3
    %p102 = por %p100, %p101
    %p104 = scmp.ne.s32.totalorder %s89, %s103
    %p105 = scmp.eq.s32.totalorder %s16, 0
    %p106 = por %p104, %p105
    %s107 = ssub.s32 %s10, %s17
    %p108 = scmp.eq.s32.totalorder %s107, 0
    %s110 = sadd.s32 %s109, 1
    %s111 = scalar_select %p108, %s109, %s110
    %p114 = pneg %p108
    %p115 = scmp.eq.s32.totalorder %s10, 3
    %p116 = por %p114, %p115
    %p117 = scmp.ne.s32.totalorder %s109, %s112
    %p118 = scmp.eq.s32.totalorder %s10, 0
    %p119 = por %p117, %p118
    %p120 = scmp.ne.s32.totalorder %s109, %s112
    %p121 = scmp.eq.s32.totalorder %s15, 3
    %p122 = por %p120, %p121
    %p123 = scmp.ne.s32.totalorder %s112, %s113
    %p124 = scmp.eq.s32.totalorder %s15, 0
    %p125 = por %p123, %p124
    %p126 = scmp.ne.s32.totalorder %s112, %s113
    %p127 = scmp.eq.s32.totalorder %s16, 3
    %p128 = por %p126, %p127
    %p130 = scmp.ne.s32.totalorder %s113, %s129
    %p131 = scmp.eq.s32.totalorder %s16, 0
    %p132 = por %p130, %p131
    %p133 = scmp.le.s32.totalorder 1, %s10
    %p134 = scmp.lt.s32.totalorder %s10, 5
    %p135 = pnand %p133, %p134
    %p136 = pneg %p135
    // Predicated region
    $region9: #{inception_a.3} parent=5 // pred_check
      _
    $region10: #{inception_a.3} parent=5 // pred_check_branch
      %138 = sbr.rel (%p135) target = $region12
    $region11: #{inception_a.3} parent=5 // pred_region
      %s139 = ssub.s32 %s10, 1
      // Predicated region
      $region13: #{inception_a.3} parent=11 // pred_check
        %p140 = pneg %p57
      $region14: #{inception_a.3} parent=11 // pred_check_branch
        %142 = sbr.rel (%p140) target = $region16
      $region15: #{inception_a.3} parent=11 // pred_region
        _
      $region16: #{inception_a.3} parent=11 // pred_fallthru
        _
      // Predicated region
      $region17: #{inception_a.3} parent=11 // pred_check
        %p143 = pneg %p78
      $region18: #{inception_a.3} parent=11 // pred_check_branch
        %145 = sbr.rel (%p143) target = $region20
      $region19: #{inception_a.3} parent=11 // pred_region
        _
      $region20: #{inception_a.3} parent=11 // pred_fallthru
        _
      // Predicated region
      $region21: #{inception_a.3} parent=11 // pred_check
        %p146 = pneg %p99
      $region22: #{inception_a.3} parent=11 // pred_check_branch
        %148 = sbr.rel (%p146) target = $region24
      $region23: #{inception_a.3} parent=11 // pred_region
        _
      $region24: #{inception_a.3} parent=11 // pred_fallthru
        _
    $region12: #{inception_a.3} parent=5 // pred_fallthru
      _
    %p149 = scmp.lt.s32.totalorder %s10, 4
    // Predicated region
    $region25: #{inception_a.3} parent=5 // pred_check
      %p150 = pneg %p149
    $region26: #{inception_a.3} parent=5 // pred_check_branch
      %152 = sbr.rel (%p150) target = $region28
    $region27: #{inception_a.3} parent=5 // pred_region
      // Predicated region
      $region29: #{inception_a.3} parent=27 // pred_check
        %p153 = pneg %p30
      $region30: #{inception_a.3} parent=27 // pred_check_branch
        %155 = sbr.rel (%p153) target = $region32
      $region31: #{inception_a.3} parent=27 // pred_region
        %s156 = smul.u32 16, %s10
        %p157 = scmp.lt.s32.totalorder %s156, 63
        %s158 = scalar_select %p157, %s156, 63
        %s159 = smul.addr %s158, 3
        %s160 = smul.addr %s159, 4
        %s161 = scalar_lea.vmem %s0, %s160
        %s162 = smul.u32 16, %s10
      $region32: #{inception_a.3} parent=27 // pred_fallthru
        _
    $region28: #{inception_a.3} parent=5 // pred_fallthru
      _
    %p163 = scmp.le.s32.totalorder 1, %s10
    %p164 = scmp.lt.s32.totalorder %s10, 5
    %p165 = pnand %p163, %p164
    %p166 = pneg %p165
    // Predicated region
    $region33: #{inception_a.3} parent=5 // pred_check
      _
    $region34: #{inception_a.3} parent=5 // pred_check_branch
      %168 = sbr.rel (%p165) target = $region36
    $region35: #{inception_a.3} parent=5 // pred_region
      %s169 = ssub.s32 %s10, 1
      %s170 = smul.u32 16, %s15
      %p171 = scmp.lt.s32.totalorder %s170, 63
      %s172 = scalar_select %p171, %s170, 63
      %s173 = smul.addr %s172, 3
      %s174 = smul.addr %s173, 4
      %s175 = scalar_lea.vmem %s0, %s174
      %p176 = pneg %p36
      %p177 = pneg %p33
      %p178 = pneg %p57
      %p179 = pneg %p54
      %p180 = pneg %p78
      %p181 = pneg %p75
      %p182 = pneg %p99
      %p183 = pneg %p96
      %p184 = pneg %p125
      %p185 = pneg %p122
      %s186 = smul.u32 16, %s15
      %p187 = scmp.lt.s32.totalorder %s186, 63
      %s188 = scalar_select %p187, %s186, 63
      %s189 = smul.addr %s188, 3
      %s190 = smul.addr %s189, 4
      %s191 = scalar_lea.vmem %s4, %s190
      %s192 = smul.u32 16, %s15
      %p193 = scmp.lt.s32.totalorder %s192, 63
      %s194 = scalar_select %p193, %s192, 63
      %s195 = smul.addr %s194, 3
      %s196 = smul.addr %s195, 4
      %s197 = scalar_lea.vmem %s0, %s196
      %s198 = smul.u32 16, %s15
      %s199 = smul.u32 16, %s15
      %p200 = scmp.lt.s32.totalorder %s199, 63
      %s201 = scalar_select %p200, %s199, 63
      %s202 = smul.addr %s201, 3
      %s203 = smul.addr %s202, 4
      %s204 = scalar_lea.vmem %s4, %s203
      %s205 = smul.u32 16, %s15
      %v207 = vld [vmem:[%s197] sm:$0xff]
      %v208 = vld [vmem:[%s197 + $0x8] sm:$0xf]
      %v209 = vld [vmem:[%s197 + $0xc] sm:$0xff]
      %v210 = vld [vmem:[%s197 + $0x14] sm:$0xf]
      %v211 = vld [vmem:[%s197 + $0x18] sm:$0xff]
      %v212 = vld [vmem:[%s197 + $0x20] sm:$0xf]
      %v213 = vld [vmem:[%s197 + $0x24] sm:$0xff]
      %v214 = vld [vmem:[%s197 + $0x2c] sm:$0xf]
      %v215 = vld [vmem:[%s197 + $0x30] sm:$0xff]
      %v216 = vld [vmem:[%s197 + $0x38] sm:$0xf]
      %v217 = vld [vmem:[%s197 + $0x3c] sm:$0xff]
      %v218 = vld [vmem:[%s197 + $0x44] sm:$0xf]
      %v219 = vld [vmem:[%s197 + $0x48] sm:$0xff]
      %v220 = vld [vmem:[%s197 + $0x50] sm:$0xf]
      %v221 = vld [vmem:[%s197 + $0x54] sm:$0xff]
      %v222 = vld [vmem:[%s197 + $0x5c] sm:$0xf]
      %v223 = vld [vmem:[%s197 + $0x60] sm:$0xff]
      %v224 = vld [vmem:[%s197 + $0x68] sm:$0xf]
      %v225 = vld [vmem:[%s197 + $0x6c] sm:$0xff]
      %v226 = vld [vmem:[%s197 + $0x74] sm:$0xf]
      %v227 = vld [vmem:[%s197 + $0x78] sm:$0xff]
      %v228 = vld [vmem:[%s197 + $0x80] sm:$0xf]
      %v229 = vld [vmem:[%s197 + $0x84] sm:$0xff]
      %v230 = vld [vmem:[%s197 + $0x8c] sm:$0xf]
      %v231 = vld [vmem:[%s197 + $0x90] sm:$0xff]
      %v232 = vld [vmem:[%s197 + $0x98] sm:$0xf]
      %v233 = vld [vmem:[%s197 + $0x9c] sm:$0xff]
      %v234 = vld [vmem:[%s197 + $0xa4] sm:$0xf]
      %v235 = vld [vmem:[%s197 + $0xa8] sm:$0xff]
      %v236 = vld [vmem:[%s197 + $0xb0] sm:$0xf]
      %v237 = vld [vmem:[%s197 + $0xb4] sm:$0xff]
      %v238 = vld [vmem:[%s197 + $0xbc] sm:$0xf]
      %v239 = vld [vmem:[%s1] sm:$0xff]
      %v240 = vld [vmem:[%s1 + $0x8] sm:$0xf]
      %v241 = vld [vmem:[%s1 + $0xc] sm:$0xff]
      %v242 = vld [vmem:[%s1 + $0x14] sm:$0xf]
      %v243 = vld [vmem:[%s1 + $0x18] sm:$0xff]
      %v244 = vld [vmem:[%s1 + $0x20] sm:$0xf]
      %v245 = vld [vmem:[%s1 + $0x24] sm:$0xff]
      %v246 = vld [vmem:[%s1 + $0x2c] sm:$0xf]
      %v247 = vld [vmem:[%s1 + $0x30] sm:$0xff]
      %v248 = vld [vmem:[%s1 + $0x38] sm:$0xf]
      %v249 = vld [vmem:[%s1 + $0x3c] sm:$0xff]
      %v250 = vld [vmem:[%s1 + $0x44] sm:$0xf]
      %v251 = vld [vmem:[%s1 + $0x48] sm:$0xff]
      %v252 = vld [vmem:[%s1 + $0x50] sm:$0xf]
      %v253 = vld [vmem:[%s1 + $0x54] sm:$0xff]
      %v254 = vld [vmem:[%s1 + $0x5c] sm:$0xf]
      %v255 = vld [vmem:[%s1 + $0x60] sm:$0xff]
      %v256 = vld [vmem:[%s1 + $0x68] sm:$0xf]
      %v257 = vld [vmem:[%s1 + $0x6c] sm:$0xff]
      %v258 = vld [vmem:[%s1 + $0x74] sm:$0xf]
      %v259 = vld [vmem:[%s1 + $0x78] sm:$0xff]
      %v260 = vld [vmem:[%s1 + $0x80] sm:$0xf]
      %v261 = vld [vmem:[%s1 + $0x84] sm:$0xff]
      %v262 = vld [vmem:[%s1 + $0x8c] sm:$0xf]
      %v263 = vld [vmem:[%s1 + $0x90] sm:$0xff]
      %v264 = vld [vmem:[%s1 + $0x98] sm:$0xf]
      %v265 = vld [vmem:[%s1 + $0x9c] sm:$0xff]
      %v266 = vld [vmem:[%s1 + $0xa4] sm:$0xf]
      %v267 = vld [vmem:[%s1 + $0xa8] sm:$0xff]
      %v268 = vld [vmem:[%s1 + $0xb0] sm:$0xf]
      %v269 = vld [vmem:[%s1 + $0xb4] sm:$0xff]
      %v270 = vld [vmem:[%s1 + $0xbc] sm:$0xf]
      %v271 = vld [vmem:[%s1 + $0xc0] sm:$0xff]
      %v272 = vld [vmem:[%s1 + $0xc8] sm:$0xf]
      %v273 = vld [vmem:[%s1 + $0xcc] sm:$0xff]
      %v274 = vld [vmem:[%s1 + $0xd4] sm:$0xf]
      %v275 = vld [vmem:[%s1 + $0xd8] sm:$0xff]
      %v276 = vld [vmem:[%s1 + $0xe0] sm:$0xf]
      %v277 = vld [vmem:[%s1 + $0xe4] sm:$0xff]
      %v278 = vld [vmem:[%s1 + $0xec] sm:$0xf]
      %v279 = vld [vmem:[%s1 + $0xf0] sm:$0xff]
      %v280 = vld [vmem:[%s1 + $0xf8] sm:$0xf]
      %v281 = vld [vmem:[%s1 + $0xfc] sm:$0xff]
      %v282 = vld [vmem:[%s1 + $0x104] sm:$0xf]
      %v283 = vld [vmem:[%s1 + $0x108] sm:$0xff]
      %v284 = vld [vmem:[%s1 + $0x110] sm:$0xf]
      %v285 = vld [vmem:[%s1 + $0x114] sm:$0xff]
      %v286 = vld [vmem:[%s1 + $0x11c] sm:$0xf]
      %v287 = vld [vmem:[%s1 + $0x120] sm:$0xff]
      %v288 = vld [vmem:[%s1 + $0x128] sm:$0xf]
      %v289 = vld [vmem:[%s1 + $0x12c] sm:$0xff]
      %v290 = vld [vmem:[%s1 + $0x134] sm:$0xf]
      %v291 = vld [vmem:[%s1 + $0x138] sm:$0xff]
      %v292 = vld [vmem:[%s1 + $0x140] sm:$0xf]
      %v293 = vld [vmem:[%s1 + $0x144] sm:$0xff]
      %v294 = vld [vmem:[%s1 + $0x14c] sm:$0xf]
      %v295 = vld [vmem:[%s1 + $0x150] sm:$0xff]
      %v296 = vld [vmem:[%s1 + $0x158] sm:$0xf]
      %v297 = vld [vmem:[%s1 + $0x15c] sm:$0xff]
      %v298 = vld [vmem:[%s1 + $0x164] sm:$0xf]
      %v299 = vld [vmem:[%s1 + $0x168] sm:$0xff]
      %v300 = vld [vmem:[%s1 + $0x170] sm:$0xf]
      %v301 = vld [vmem:[%s1 + $0x174] sm:$0xff]
      %v302 = vld [vmem:[%s1 + $0x17c] sm:$0xf]
      %v303 = vld [vmem:[%s1 + $0x180] sm:$0xff]
      %v304 = vld [vmem:[%s1 + $0x188] sm:$0xf]
      %v305 = vld [vmem:[%s1 + $0x18c] sm:$0xff]
      %v306 = vld [vmem:[%s1 + $0x194] sm:$0xf]
      %v307 = vld [vmem:[%s1 + $0x198] sm:$0xff]
      %v308 = vld [vmem:[%s1 + $0x1a0] sm:$0xf]
      %v309 = vld [vmem:[%s1 + $0x1a4] sm:$0xff]
      %v310 = vld [vmem:[%s1 + $0x1ac] sm:$0xf]
      %v311 = vld [vmem:[%s1 + $0x1b0] sm:$0xff]
      %v312 = vld [vmem:[%s1 + $0x1b8] sm:$0xf]
      %v313 = vld [vmem:[%s1 + $0x1bc] sm:$0xff]
      %v314 = vld [vmem:[%s1 + $0x1c4] sm:$0xf]
      %v315 = vld [vmem:[%s1 + $0x1c8] sm:$0xff]
      %v316 = vld [vmem:[%s1 + $0x1d0] sm:$0xf]
      %v317 = vld [vmem:[%s1 + $0x1d4] sm:$0xff]
      %v318 = vld [vmem:[%s1 + $0x1dc] sm:$0xf]
      %v319 = vld [vmem:[%s1 + $0x1e0] sm:$0xff]
      %v320 = vld [vmem:[%s1 + $0x1e8] sm:$0xf]
      %v321 = vld [vmem:[%s1 + $0x1ec] sm:$0xff]
      %v322 = vld [vmem:[%s1 + $0x1f4] sm:$0xf]
      %v323 = vld [vmem:[%s1 + $0x1f8] sm:$0xff]
      %v324 = vld [vmem:[%s1 + $0x200] sm:$0xf]
      %v325 = vld [vmem:[%s1 + $0x204] sm:$0xff]
      %v326 = vld [vmem:[%s1 + $0x20c] sm:$0xf]
      %v327 = vld [vmem:[%s1 + $0x210] sm:$0xff]
      %v328 = vld [vmem:[%s1 + $0x218] sm:$0xf]
      %v329 = vld [vmem:[%s1 + $0x21c] sm:$0xff]
      %v330 = vld [vmem:[%s1 + $0x224] sm:$0xf]
      %v331 = vld [vmem:[%s1 + $0x228] sm:$0xff]
      %v332 = vld [vmem:[%s1 + $0x230] sm:$0xf]
      %v333 = vld [vmem:[%s1 + $0x234] sm:$0xff]
      %v334 = vld [vmem:[%s1 + $0x23c] sm:$0xf]
      %v335 = vld [vmem:[%s2] sm:$0x7]
      %v337 = vlaneseq
      %v338 = vshrl.u32 %v337, 7
      %v339 = vsub.s32 0, %v338
      %v340 = vrot.slane %v335, %v339
      %v341 = vlaneseq
      %v342 = vshrl.u32 %v341, 7
      %v343 = vsub.s32 1, %v342
      %v344 = vrot.slane %v335, %v343
      %v345 = vlaneseq
      %v346 = vshrl.u32 %v345, 7
      %v347 = vsub.s32 2, %v346
      %v348 = vrot.slane %v335, %v347
      %v384 = vunpack.c.l.b16 %v207
      %v385 = vunpack.c.h.b16 %v207
      %v386 = vunpack.c.l.b16 %v208
      %v387 = vunpack.c.l.b16 %v209
      %v388 = vunpack.c.h.b16 %v209
      %v389 = vunpack.c.l.b16 %v210
      %v390 = vunpack.c.l.b16 %v211
      %v391 = vunpack.c.h.b16 %v211
      %v392 = vunpack.c.l.b16 %v212
      %v393 = vunpack.c.l.b16 %v213
      %v394 = vunpack.c.h.b16 %v213
      %v395 = vunpack.c.l.b16 %v214
      %v396 = vunpack.c.l.b16 %v215
      %v397 = vunpack.c.h.b16 %v215
      %v398 = vunpack.c.l.b16 %v216
      %v399 = vunpack.c.l.b16 %v217
      %v400 = vunpack.c.h.b16 %v217
      %v401 = vunpack.c.l.b16 %v218
      %v402 = vunpack.c.l.b16 %v219
      %v403 = vunpack.c.h.b16 %v219
      %v404 = vunpack.c.l.b16 %v220
      %v405 = vunpack.c.l.b16 %v221
      %v406 = vunpack.c.h.b16 %v221
      %v407 = vunpack.c.l.b16 %v222
      %v408 = vunpack.c.l.b16 %v223
      %v409 = vunpack.c.h.b16 %v223
      %v410 = vunpack.c.l.b16 %v224
      %v411 = vunpack.c.l.b16 %v225
      %v412 = vunpack.c.h.b16 %v225
      %v413 = vunpack.c.l.b16 %v226
      %v414 = vunpack.c.l.b16 %v227
      %v415 = vunpack.c.h.b16 %v227
      %v416 = vunpack.c.l.b16 %v228
      %v417 = vunpack.c.l.b16 %v229
      %v418 = vunpack.c.h.b16 %v229
      %v419 = vunpack.c.l.b16 %v230
      %v420 = vunpack.c.l.b16 %v231
      %v421 = vunpack.c.h.b16 %v231
      %v422 = vunpack.c.l.b16 %v232
      %v423 = vunpack.c.l.b16 %v233
      %v424 = vunpack.c.h.b16 %v233
      %v425 = vunpack.c.l.b16 %v234
      %v426 = vunpack.c.l.b16 %v235
      %v427 = vunpack.c.h.b16 %v235
      %v428 = vunpack.c.l.b16 %v236
      %v429 = vunpack.c.l.b16 %v237
      %v430 = vunpack.c.h.b16 %v237
      %v431 = vunpack.c.l.b16 %v238
      %v432 = vpack.c.b16 %v387, %v384
      %v433 = vpack.c.b16 %v388, %v385
      %v434 = vpack.c.b16 %v389, %v386
      %v435 = vpack.c.b16 %v393, %v390
      %v436 = vpack.c.b16 %v394, %v391
      %v437 = vpack.c.b16 %v395, %v392
      %v438 = vpack.c.b16 %v399, %v396
      %v439 = vpack.c.b16 %v400, %v397
      %v440 = vpack.c.b16 %v401, %v398
      %v441 = vpack.c.b16 %v405, %v402
      %v442 = vpack.c.b16 %v406, %v403
      %v443 = vpack.c.b16 %v407, %v404
      %v444 = vpack.c.b16 %v411, %v408
      %v445 = vpack.c.b16 %v412, %v409
      %v446 = vpack.c.b16 %v413, %v410
      %v447 = vpack.c.b16 %v417, %v414
      %v448 = vpack.c.b16 %v418, %v415
      %v449 = vpack.c.b16 %v419, %v416
      %v450 = vpack.c.b16 %v423, %v420
      %v451 = vpack.c.b16 %v424, %v421
      %v452 = vpack.c.b16 %v425, %v422
      %v453 = vpack.c.b16 %v429, %v426
      %v454 = vpack.c.b16 %v430, %v427
      %v455 = vpack.c.b16 %v431, %v428
      %v576 = vunpack.c.l.b16 %v239
      %v577 = vunpack.c.h.b16 %v239
      %v578 = vunpack.c.l.b16 %v240
      %v579 = vunpack.c.l.b16 %v241
      %v580 = vunpack.c.h.b16 %v241
      %v581 = vunpack.c.l.b16 %v242
      %v582 = vunpack.c.l.b16 %v243
      %v583 = vunpack.c.h.b16 %v243
      %v584 = vunpack.c.l.b16 %v244
      %v585 = vunpack.c.l.b16 %v245
      %v586 = vunpack.c.h.b16 %v245
      %v587 = vunpack.c.l.b16 %v246
      %v588 = vunpack.c.l.b16 %v247
      %v589 = vunpack.c.h.b16 %v247
      %v590 = vunpack.c.l.b16 %v248
      %v591 = vunpack.c.l.b16 %v249
      %v592 = vunpack.c.h.b16 %v249
      %v593 = vunpack.c.l.b16 %v250
      %v594 = vunpack.c.l.b16 %v251
      %v595 = vunpack.c.h.b16 %v251
      %v596 = vunpack.c.l.b16 %v252
      %v597 = vunpack.c.l.b16 %v253
      %v598 = vunpack.c.h.b16 %v253
      %v599 = vunpack.c.l.b16 %v254
      %v600 = vunpack.c.l.b16 %v255
      %v601 = vunpack.c.h.b16 %v255
      %v602 = vunpack.c.l.b16 %v256
      %v603 = vunpack.c.l.b16 %v257
      %v604 = vunpack.c.h.b16 %v257
      %v605 = vunpack.c.l.b16 %v258
      %v606 = vunpack.c.l.b16 %v259
      %v607 = vunpack.c.h.b16 %v259
      %v608 = vunpack.c.l.b16 %v260
      %v609 = vunpack.c.l.b16 %v261
      %v610 = vunpack.c.h.b16 %v261
      %v611 = vunpack.c.l.b16 %v262
      %v612 = vunpack.c.l.b16 %v263
      %v613 = vunpack.c.h.b16 %v263
      %v614 = vunpack.c.l.b16 %v264
      %v615 = vunpack.c.l.b16 %v265
      %v616 = vunpack.c.h.b16 %v265
      %v617 = vunpack.c.l.b16 %v266
      %v618 = vunpack.c.l.b16 %v267
      %v619 = vunpack.c.h.b16 %v267
      %v620 = vunpack.c.l.b16 %v268
      %v621 = vunpack.c.l.b16 %v269
      %v622 = vunpack.c.h.b16 %v269
      %v623 = vunpack.c.l.b16 %v270
      %v624 = vunpack.c.l.b16 %v271
      %v625 = vunpack.c.h.b16 %v271
      %v626 = vunpack.c.l.b16 %v272
      %v627 = vunpack.c.l.b16 %v273
      %v628 = vunpack.c.h.b16 %v273
      %v629 = vunpack.c.l.b16 %v274
      %v630 = vunpack.c.l.b16 %v275
      %v631 = vunpack.c.h.b16 %v275
      %v632 = vunpack.c.l.b16 %v276
      %v633 = vunpack.c.l.b16 %v277
      %v634 = vunpack.c.h.b16 %v277
      %v635 = vunpack.c.l.b16 %v278
      %v636 = vunpack.c.l.b16 %v279
      %v637 = vunpack.c.h.b16 %v279
      %v638 = vunpack.c.l.b16 %v280
      %v639 = vunpack.c.l.b16 %v281
      %v640 = vunpack.c.h.b16 %v281
      %v641 = vunpack.c.l.b16 %v282
      %v642 = vunpack.c.l.b16 %v283
      %v643 = vunpack.c.h.b16 %v283
      %v644 = vunpack.c.l.b16 %v284
      %v645 = vunpack.c.l.b16 %v285
      %v646 = vunpack.c.h.b16 %v285
      %v647 = vunpack.c.l.b16 %v286
      %v648 = vunpack.c.l.b16 %v287
      %v649 = vunpack.c.h.b16 %v287
      %v650 = vunpack.c.l.b16 %v288
      %v651 = vunpack.c.l.b16 %v289
      %v652 = vunpack.c.h.b16 %v289
      %v653 = vunpack.c.l.b16 %v290
      %v654 = vunpack.c.l.b16 %v291
      %v655 = vunpack.c.h.b16 %v291
      %v656 = vunpack.c.l.b16 %v292
      %v657 = vunpack.c.l.b16 %v293
      %v658 = vunpack.c.h.b16 %v293
      %v659 = vunpack.c.l.b16 %v294
      %v660 = vunpack.c.l.b16 %v295
      %v661 = vunpack.c.h.b16 %v295
      %v662 = vunpack.c.l.b16 %v296
      %v663 = vunpack.c.l.b16 %v297
      %v664 = vunpack.c.h.b16 %v297
      %v665 = vunpack.c.l.b16 %v298
      %v666 = vunpack.c.l.b16 %v299
      %v667 = vunpack.c.h.b16 %v299
      %v668 = vunpack.c.l.b16 %v300
      %v669 = vunpack.c.l.b16 %v301
      %v670 = vunpack.c.h.b16 %v301
      %v671 = vunpack.c.l.b16 %v302
      %v672 = vunpack.c.l.b16 %v303
      %v673 = vunpack.c.h.b16 %v303
      %v674 = vunpack.c.l.b16 %v304
      %v675 = vunpack.c.l.b16 %v305
      %v676 = vunpack.c.h.b16 %v305
      %v677 = vunpack.c.l.b16 %v306
      %v678 = vunpack.c.l.b16 %v307
      %v679 = vunpack.c.h.b16 %v307
      %v680 = vunpack.c.l.b16 %v308
      %v681 = vunpack.c.l.b16 %v309
      %v682 = vunpack.c.h.b16 %v309
      %v683 = vunpack.c.l.b16 %v310
      %v684 = vunpack.c.l.b16 %v311
      %v685 = vunpack.c.h.b16 %v311
      %v686 = vunpack.c.l.b16 %v312
      %v687 = vunpack.c.l.b16 %v313
      %v688 = vunpack.c.h.b16 %v313
      %v689 = vunpack.c.l.b16 %v314
      %v690 = vunpack.c.l.b16 %v315
      %v691 = vunpack.c.h.b16 %v315
      %v692 = vunpack.c.l.b16 %v316
      %v693 = vunpack.c.l.b16 %v317
      %v694 = vunpack.c.h.b16 %v317
      %v695 = vunpack.c.l.b16 %v318
      %v696 = vunpack.c.l.b16 %v319
      %v697 = vunpack.c.h.b16 %v319
      %v698 = vunpack.c.l.b16 %v320
      %v699 = vunpack.c.l.b16 %v321
      %v700 = vunpack.c.h.b16 %v321
      %v701 = vunpack.c.l.b16 %v322
      %v702 = vunpack.c.l.b16 %v323
      %v703 = vunpack.c.h.b16 %v323
      %v704 = vunpack.c.l.b16 %v324
      %v705 = vunpack.c.l.b16 %v325
      %v706 = vunpack.c.h.b16 %v325
      %v707 = vunpack.c.l.b16 %v326
      %v708 = vunpack.c.l.b16 %v327
      %v709 = vunpack.c.h.b16 %v327
      %v710 = vunpack.c.l.b16 %v328
      %v711 = vunpack.c.l.b16 %v329
      %v712 = vunpack.c.h.b16 %v329
      %v713 = vunpack.c.l.b16 %v330
      %v714 = vunpack.c.l.b16 %v331
      %v715 = vunpack.c.h.b16 %v331
      %v716 = vunpack.c.l.b16 %v332
      %v717 = vunpack.c.l.b16 %v333
      %v718 = vunpack.c.h.b16 %v333
      %v719 = vunpack.c.l.b16 %v334
      %v720 = vpack.c.b16 %v579, %v576
      %v721 = vpack.c.b16 %v580, %v577
      %v722 = vpack.c.b16 %v581, %v578
      %v723 = vpack.c.b16 %v585, %v582
      %v724 = vpack.c.b16 %v586, %v583
      %v725 = vpack.c.b16 %v587, %v584
      %v726 = vpack.c.b16 %v591, %v588
      %v727 = vpack.c.b16 %v592, %v589
      %v728 = vpack.c.b16 %v593, %v590
      %v729 = vpack.c.b16 %v597, %v594
      %v730 = vpack.c.b16 %v598, %v595
      %v731 = vpack.c.b16 %v599, %v596
      %v732 = vpack.c.b16 %v603, %v600
      %v733 = vpack.c.b16 %v604, %v601
      %v734 = vpack.c.b16 %v605, %v602
      %v735 = vpack.c.b16 %v609, %v606
      %v736 = vpack.c.b16 %v610, %v607
      %v737 = vpack.c.b16 %v611, %v608
      %v738 = vpack.c.b16 %v615, %v612
      %v739 = vpack.c.b16 %v616, %v613
      %v740 = vpack.c.b16 %v617, %v614
      %v741 = vpack.c.b16 %v621, %v618
      %v742 = vpack.c.b16 %v622, %v619
      %v743 = vpack.c.b16 %v623, %v620
      %v744 = vpack.c.b16 %v627, %v624
      %v745 = vpack.c.b16 %v628, %v625
      %v746 = vpack.c.b16 %v629, %v626
      %v747 = vpack.c.b16 %v633, %v630
      %v748 = vpack.c.b16 %v634, %v631
      %v749 = vpack.c.b16 %v635, %v632
      %v750 = vpack.c.b16 %v639, %v636
      %v751 = vpack.c.b16 %v640, %v637
      %v752 = vpack.c.b16 %v641, %v638
      %v753 = vpack.c.b16 %v645, %v642
      %v754 = vpack.c.b16 %v646, %v643
      %v755 = vpack.c.b16 %v647, %v644
      %v756 = vpack.c.b16 %v651, %v648
      %v757 = vpack.c.b16 %v652, %v649
      %v758 = vpack.c.b16 %v653, %v650
      %v759 = vpack.c.b16 %v657, %v654
      %v760 = vpack.c.b16 %v658, %v655
      %v761 = vpack.c.b16 %v659, %v656
      %v762 = vpack.c.b16 %v663, %v660
      %v763 = vpack.c.b16 %v664, %v661
      %v764 = vpack.c.b16 %v665, %v662
      %v765 = vpack.c.b16 %v669, %v666
      %v766 = vpack.c.b16 %v670, %v667
      %v767 = vpack.c.b16 %v671, %v668
      %v768 = vpack.c.b16 %v675, %v672
      %v769 = vpack.c.b16 %v676, %v673
      %v770 = vpack.c.b16 %v677, %v674
      %v771 = vpack.c.b16 %v681, %v678
      %v772 = vpack.c.b16 %v682, %v679
      %v773 = vpack.c.b16 %v683, %v680
      %v774 = vpack.c.b16 %v687, %v684
      %v775 = vpack.c.b16 %v688, %v685
      %v776 = vpack.c.b16 %v689, %v686
      %v777 = vpack.c.b16 %v693, %v690
      %v778 = vpack.c.b16 %v694, %v691
      %v779 = vpack.c.b16 %v695, %v692
      %v780 = vpack.c.b16 %v699, %v696
      %v781 = vpack.c.b16 %v700, %v697
      %v782 = vpack.c.b16 %v701, %v698
      %v783 = vpack.c.b16 %v705, %v702
      %v784 = vpack.c.b16 %v706, %v703
      %v785 = vpack.c.b16 %v707, %v704
      %v786 = vpack.c.b16 %v711, %v708
      %v787 = vpack.c.b16 %v712, %v709
      %v788 = vpack.c.b16 %v713, %v710
      %v789 = vpack.c.b16 %v717, %v714
      %v790 = vpack.c.b16 %v718, %v715
      %v791 = vpack.c.b16 %v719, %v716
      %864 = vmatprep.subr.bf16.mxu0 %v721
      %865 = vmatpush1.bf16.msra.mxu0 %v720
      %866 = vmatprep.subr.bf16.mxu0 %v724
      %867 = vmatpush1.bf16.msra.mxu0 %v723
      %868 = vmatprep.subr.bf16.mxu0 %v727
      %869 = vmatpush1.bf16.msra.mxu0 %v726
      %870 = vmatprep.subr.bf16.mxu0 %v730
      %871 = vmatpush1.bf16.msra.mxu0 %v729
      %872 = vmatprep.subr.bf16.mxu0 %v733
      %873 = vmatpush1.bf16.msra.mxu0 %v732
      %874 = vmatprep.subr.bf16.mxu0 %v736
      %875 = vmatpush1.bf16.msra.mxu0 %v735
      %876 = vmatprep.subr.bf16.mxu0 %v739
      %877 = vmatpush1.bf16.msra.mxu0 %v738
      %878 = vmatprep.subr.bf16.mxu0 %v742
      %879 = vmatpush1.bf16.msra.mxu0 %v741
      %880 = vmatprep.subr.bf16.mxu0 %v745
      %881 = vmatpush1.bf16.msra.mxu0 %v744
      %882 = vmatprep.subr.bf16.mxu0 %v748
      %883 = vmatpush1.bf16.msra.mxu0 %v747
      %884 = vmatprep.subr.bf16.mxu0 %v751
      %885 = vmatpush1.bf16.msra.mxu0 %v750
      %886 = vmatprep.subr.bf16.mxu0 %v754
      %887 = vmatpush1.bf16.msra.mxu0 %v753
      %888 = vmatprep.subr.bf16.mxu0 %v757
      %889 = vmatpush1.bf16.msra.mxu0 %v756
      %890 = vmatprep.subr.bf16.mxu0 %v760
      %891 = vmatpush1.bf16.msra.mxu0 %v759
      %892 = vmatprep.subr.bf16.mxu0 %v763
      %893 = vmatpush1.bf16.msra.mxu0 %v762
      %894 = vmatprep.subr.bf16.mxu0 %v766
      %895 = vmatpush1.bf16.msra.mxu0 %v765
      %896 = vmatprep.mubr.bf16.mxu0 %v433
      %897 = vmatmul.mubr.bf16.gmra.mrb[0].mxu0 %v432
      %v898 = vpop.f32.mrb[0].mxu0
      %v899 = vadd.f32 %v340, %v898
      %v900 = vpop.f32.mrb[0].mxu0
      %v901 = vadd.f32 %v344, %v900
      %v902 = vpop.f32.mrb[0].mxu0
      %v903 = vadd.f32 %v340, %v902
      %v904 = vpop.f32.mrb[0].mxu0
      %v905 = vadd.f32 %v344, %v904
      %906 = vmatprep.mubr.bf16.mxu0 %v436
      %907 = vmatmul.mubr.bf16.gmra.mrb[0].mxu0 %v435
      %v908 = vpop.f32.mrb[0].mxu0
      %v909 = vadd.f32 %v340, %v908
      %v910 = vpop.f32.mrb[0].mxu0
      %v911 = vadd.f32 %v344, %v910
      %v912 = vpop.f32.mrb[0].mxu0
      %v913 = vadd.f32 %v340, %v912
      %v914 = vpop.f32.mrb[0].mxu0
      %v915 = vadd.f32 %v344, %v914
      %916 = vmatprep.mubr.bf16.mxu0 %v439
      %917 = vmatmul.mubr.bf16.gmra.mrb[0].mxu0 %v438
      %v918 = vpop.f32.mrb[0].mxu0
      %v919 = vadd.f32 %v340, %v918
      %v920 = vpop.f32.mrb[0].mxu0
      %v921 = vadd.f32 %v344, %v920
      %v922 = vpop.f32.mrb[0].mxu0
      %v923 = vadd.f32 %v340, %v922
      %v924 = vpop.f32.mrb[0].mxu0
      %v925 = vadd.f32 %v344, %v924
      %926 = vmatprep.mubr.bf16.mxu0 %v442
      %927 = vmatmul.mubr.bf16.gmra.mrb[0].mxu0 %v441
      %v928 = vpop.f32.mrb[0].mxu0
      %v929 = vadd.f32 %v340, %v928
      %v930 = vpop.f32.mrb[0].mxu0
      %v931 = vadd.f32 %v344, %v930
      %v932 = vpop.f32.mrb[0].mxu0
      %v933 = vadd.f32 %v340, %v932
      %v934 = vpop.f32.mrb[0].mxu0
      %v935 = vadd.f32 %v344, %v934
      %936 = vmatprep.mubr.bf16.mxu0 %v445
      %937 = vmatmul.mubr.bf16.gmra.mrb[0].mxu0 %v444
      %v938 = vpop.f32.mrb[0].mxu0
      %v939 = vadd.f32 %v340, %v938
      %v940 = vpop.f32.mrb[0].mxu0
      %v941 = vadd.f32 %v344, %v940
      %v942 = vpop.f32.mrb[0].mxu0
      %v943 = vadd.f32 %v340, %v942
      %v944 = vpop.f32.mrb[0].mxu0
      %v945 = vadd.f32 %v344, %v944
      %946 = vmatprep.mubr.bf16.mxu0 %v448
      %947 = vmatmul.mubr.bf16.gmra.mrb[0].mxu0 %v447
      %v948 = vpop.f32.mrb[0].mxu0
      %v949 = vadd.f32 %v340, %v948
      %v950 = vpop.f32.mrb[0].mxu0
      %v951 = vadd.f32 %v344, %v950
      %v952 = vpop.f32.mrb[0].mxu0
      %v953 = vadd.f32 %v340, %v952
      %v954 = vpop.f32.mrb[0].mxu0
      %v955 = vadd.f32 %v344, %v954
      %956 = vmatprep.mubr.bf16.mxu0 %v451
      %957 = vmatmul.mubr.bf16.gmra.mrb[0].mxu0 %v450
      %v958 = vpop.f32.mrb[0].mxu0
      %v959 = vadd.f32 %v340, %v958
      %v960 = vpop.f32.mrb[0].mxu0
      %v961 = vadd.f32 %v344, %v960
      %v962 = vpop.f32.mrb[0].mxu0
      %v963 = vadd.f32 %v340, %v962
      %v964 = vpop.f32.mrb[0].mxu0
      %v965 = vadd.f32 %v344, %v964
      %966 = vmatprep.mubr.bf16.mxu0 %v454
      %967 = vmatmul.mubr.bf16.gmra.mrb[0].mxu0 %v453
      %v968 = vpop.f32.mrb[0].mxu0
      %v969 = vadd.f32 %v340, %v968
      %v970 = vpop.f32.mrb[0].mxu0
      %v971 = vadd.f32 %v344, %v970
      %v972 = vpop.f32.mrb[0].mxu0
      %v973 = vadd.f32 %v340, %v972
      %v974 = vpop.f32.mrb[0].mxu0
      %v975 = vadd.f32 %v344, %v974
      %976 = vdwg.mxu0
      %977 = vmatprep.subr.bf16.mxu0 %v769
      %978 = vmatpush1.bf16.msra.mxu0 %v768
      %979 = vmatprep.subr.bf16.mxu0 %v772
      %980 = vmatpush1.bf16.msra.mxu0 %v771
      %981 = vmatprep.subr.bf16.mxu0 %v775
      %982 = vmatpush1.bf16.msra.mxu0 %v774
      %983 = vmatprep.subr.bf16.mxu0 %v778
      %984 = vmatpush1.bf16.msra.mxu0 %v777
      %985 = vmatprep.subr.bf16.mxu0 %v781
      %986 = vmatpush1.bf16.msra.mxu0 %v780
      %987 = vmatprep.subr.bf16.mxu0 %v784
      %988 = vmatpush1.bf16.msra.mxu0 %v783
      %989 = vmatprep.subr.bf16.mxu0 %v787
      %990 = vmatpush1.bf16.msra.mxu0 %v786
      %991 = vmatprep.subr.bf16.mxu0 %v790
      %992 = vmatpush1.bf16.msra.mxu0 %v789
      %993 = vmatprep.subr.bf16.mxu0 0
      %994 = vmatpush1.bf16.msra.mxu0 0
      %995 = vmatprep.subr.bf16.mxu0 0
      %996 = vmatpush1.bf16.msra.mxu0 0
      %997 = vmatprep.subr.bf16.mxu0 0
      %998 = vmatpush1.bf16.msra.mxu0 0
      %999 = vmatprep.subr.bf16.mxu0 0
      %1000 = vmatpush1.bf16.msra.mxu0 0
      %1001 = vmatprep.subr.bf16.mxu0 0
      %1002 = vmatpush1.bf16.msra.mxu0 0
      %1003 = vmatprep.subr.bf16.mxu0 0
      %1004 = vmatpush1.bf16.msra.mxu0 0
      %1005 = vmatprep.subr.bf16.mxu0 0
      %1006 = vmatpush1.bf16.msra.mxu0 0
      %1007 = vmatprep.subr.bf16.mxu0 0
      %1008 = vmatpush1.bf16.msra.mxu0 0
      %1009 = vmatprep.mubr.bf16.mxu0 0
      %1010 = vmatmul.mubr.bf16.gmra.mrb[0].mxu0 %v434
      %v1011 = vpop.f32.mrb[0].mxu0
      %v1012 = vadd.f32 %v899, %v1011
      %v1013 = vpop.f32.mrb[0].mxu0
      %v1014 = vadd.f32 %v901, %v1013
      %v1015 = vpop.f32.mrb[0].mxu0
      %v1016 = vadd.f32 %v903, %v1015
      %v1017 = vpop.f32.mrb[0].mxu0
      %v1018 = vadd.f32 %v905, %v1017
      %1019 = vmatprep.mubr.bf16.mxu0 0
      %1020 = vmatmul.mubr.bf16.gmra.mrb[0].mxu0 %v437
      %v1021 = vpop.f32.mrb[0].mxu0
      %v1022 = vadd.f32 %v909, %v1021
      %v1023 = vpop.f32.mrb[0].mxu0
      %v1024 = vadd.f32 %v911, %v1023
      %v1025 = vpop.f32.mrb[0].mxu0
      %v1026 = vadd.f32 %v913, %v1025
      %v1027 = vpop.f32.mrb[0].mxu0
      %v1028 = vadd.f32 %v915, %v1027
      %1029 = vmatprep.mubr.bf16.mxu0 0
      %1030 = vmatmul.mubr.bf16.gmra.mrb[0].mxu0 %v440
      %v1031 = vpop.f32.mrb[0].mxu0
      %v1032 = vadd.f32 %v919, %v1031
      %v1033 = vpop.f32.mrb[0].mxu0
      %v1034 = vadd.f32 %v921, %v1033
      %v1035 = vpop.f32.mrb[0].mxu0
      %v1036 = vadd.f32 %v923, %v1035
      %v1037 = vpop.f32.mrb[0].mxu0
      %v1038 = vadd.f32 %v925, %v1037
      %1039 = vmatprep.mubr.bf16.mxu0 0
      %1040 = vmatmul.mubr.bf16.gmra.mrb[0].mxu0 %v443
      %v1041 = vpop.f32.mrb[0].mxu0
      %v1042 = vadd.f32 %v929, %v1041
      %v1043 = vpop.f32.mrb[0].mxu0
      %v1044 = vadd.f32 %v931, %v1043
      %v1045 = vpop.f32.mrb[0].mxu0
      %v1046 = vadd.f32 %v933, %v1045
      %v1047 = vpop.f32.mrb[0].mxu0
      %v1048 = vadd.f32 %v935, %v1047
      %1049 = vmatprep.mubr.bf16.mxu0 0
      %1050 = vmatmul.mubr.bf16.gmra.mrb[0].mxu0 %v446
      %v1051 = vpop.f32.mrb[0].mxu0
      %v1052 = vadd.f32 %v939, %v1051
      %v1053 = vpop.f32.mrb[0].mxu0
      %v1054 = vadd.f32 %v941, %v1053
      %v1055 = vpop.f32.mrb[0].mxu0
      %v1056 = vadd.f32 %v943, %v1055
      %v1057 = vpop.f32.mrb[0].mxu0
      %v1058 = vadd.f32 %v945, %v1057
      %1059 = vmatprep.mubr.bf16.mxu0 0
      %1060 = vmatmul.mubr.bf16.gmra.mrb[0].mxu0 %v449
      %v1061 = vpop.f32.mrb[0].mxu0
      %v1062 = vadd.f32 %v949, %v1061
      %v1063 = vpop.f32.mrb[0].mxu0
      %v1064 = vadd.f32 %v951, %v1063
      %v1065 = vpop.f32.mrb[0].mxu0
      %v1066 = vadd.f32 %v953, %v1065
      %v1067 = vpop.f32.mrb[0].mxu0
      %v1068 = vadd.f32 %v955, %v1067
      %1069 = vmatprep.mubr.bf16.mxu0 0
      %1070 = vmatmul.mubr.bf16.gmra.mrb[0].mxu0 %v452
      %v1071 = vpop.f32.mrb[0].mxu0
      %v1072 = vadd.f32 %v959, %v1071
      %v1073 = vpop.f32.mrb[0].mxu0
      %v1074 = vadd.f32 %v961, %v1073
      %v1075 = vpop.f32.mrb[0].mxu0
      %v1076 = vadd.f32 %v963, %v1075
      %v1077 = vpop.f32.mrb[0].mxu0
      %v1078 = vadd.f32 %v965, %v1077
      %1079 = vmatprep.mubr.bf16.mxu0 0
      %1080 = vmatmul.mubr.bf16.gmra.mrb[0].mxu0 %v455
      %v1081 = vpop.f32.mrb[0].mxu0
      %v1082 = vadd.f32 %v969, %v1081
      %v1083 = vpop.f32.mrb[0].mxu0
      %v1084 = vadd.f32 %v971, %v1083
      %v1085 = vpop.f32.mrb[0].mxu0
      %v1086 = vadd.f32 %v973, %v1085
      %v1087 = vpop.f32.mrb[0].mxu0
      %v1088 = vadd.f32 %v975, %v1087
      %1089 = vdwg.mxu0
      %1090 = vmatprep.subr.bf16.mxu0 0
      %1091 = vmatpush1.bf16.msra.mxu0 %v722
      %1092 = vmatprep.subr.bf16.mxu0 0
      %1093 = vmatpush1.bf16.msra.mxu0 %v725
      %1094 = vmatprep.subr.bf16.mxu0 0
      %1095 = vmatpush1.bf16.msra.mxu0 %v728
      %1096 = vmatprep.subr.bf16.mxu0 0
      %1097 = vmatpush1.bf16.msra.mxu0 %v731
      %1098 = vmatprep.subr.bf16.mxu0 0
      %1099 = vmatpush1.bf16.msra.mxu0 %v734
      %1100 = vmatprep.subr.bf16.mxu0 0
      %1101 = vmatpush1.bf16.msra.mxu0 %v737
      %1102 = vmatprep.subr.bf16.mxu0 0
      %1103 = vmatpush1.bf16.msra.mxu0 %v740
      %1104 = vmatprep.subr.bf16.mxu0 0
      %1105 = vmatpush1.bf16.msra.mxu0 %v743
      %1106 = vmatprep.subr.bf16.mxu0 0
      %1107 = vmatpush1.bf16.msra.mxu0 %v746
      %1108 = vmatprep.subr.bf16.mxu0 0
      %1109 = vmatpush1.bf16.msra.mxu0 %v749
      %1110 = vmatprep.subr.bf16.mxu0 0
      %1111 = vmatpush1.bf16.msra.mxu0 %v752
      %1112 = vmatprep.subr.bf16.mxu0 0
      %1113 = vmatpush1.bf16.msra.mxu0 %v755
      %1114 = vmatprep.subr.bf16.mxu0 0
      %1115 = vmatpush1.bf16.msra.mxu0 %v758
      %1116 = vmatprep.subr.bf16.mxu0 0
      %1117 = vmatpush1.bf16.msra.mxu0 %v761
      %1118 = vmatprep.subr.bf16.mxu0 0
      %1119 = vmatpush1.bf16.msra.mxu0 %v764
      %1120 = vmatprep.subr.bf16.mxu0 0
      %1121 = vmatpush1.bf16.msra.mxu0 %v767
      %1122 = vmatprep.mubr.bf16.mxu0 %v433
      %1123 = vmatmul.mubr.bf16.gmra.mrb[0].mxu0 %v432
      %v1124 = vpop.f32.mrb[0].mxu0
      %v1125 = vadd.f32 %v348, %v1124
      %v1126 = vpop.f32.mrb[0].mxu0
      %v1127 = vpop.f32.mrb[0].mxu0
      %v1128 = vadd.f32 %v348, %v1127
      %v1129 = vpop.f32.mrb[0].mxu0
      %1130 = vmatprep.mubr.bf16.mxu0 %v436
      %1131 = vmatmul.mubr.bf16.gmra.mrb[0].mxu0 %v435
      %v1132 = vpop.f32.mrb[0].mxu0
      %v1133 = vadd.f32 %v348, %v1132
      %v1134 = vpop.f32.mrb[0].mxu0
      %v1135 = vpop.f32.mrb[0].mxu0
      %v1136 = vadd.f32 %v348, %v1135
      %v1137 = vpop.f32.mrb[0].mxu0
      %1138 = vmatprep.mubr.bf16.mxu0 %v439
      %1139 = vmatmul.mubr.bf16.gmra.mrb[0].mxu0 %v438
      %v1140 = vpop.f32.mrb[0].mxu0
      %v1141 = vadd.f32 %v348, %v1140
      %v1142 = vpop.f32.mrb[0].mxu0
      %v1143 = vpop.f32.mrb[0].mxu0
      %v1144 = vadd.f32 %v348, %v1143
      %v1145 = vpop.f32.mrb[0].mxu0
      %1146 = vmatprep.mubr.bf16.mxu0 %v442
      %1147 = vmatmul.mubr.bf16.gmra.mrb[0].mxu0 %v441
      %v1148 = vpop.f32.mrb[0].mxu0
      %v1149 = vadd.f32 %v348, %v1148
      %v1150 = vpop.f32.mrb[0].mxu0
      %v1151 = vpop.f32.mrb[0].mxu0
      %v1152 = vadd.f32 %v348, %v1151
      %v1153 = vpop.f32.mrb[0].mxu0
      %1154 = vmatprep.mubr.bf16.mxu0 %v445
      %1155 = vmatmul.mubr.bf16.gmra.mrb[0].mxu0 %v444
      %v1156 = vpop.f32.mrb[0].mxu0
      %v1157 = vadd.f32 %v348, %v1156
      %v1158 = vpop.f32.mrb[0].mxu0
      %v1159 = vpop.f32.mrb[0].mxu0
      %v1160 = vadd.f32 %v348, %v1159
      %v1161 = vpop.f32.mrb[0].mxu0
      %1162 = vmatprep.mubr.bf16.mxu0 %v448
      %1163 = vmatmul.mubr.bf16.gmra.mrb[0].mxu0 %v447
      %v1164 = vpop.f32.mrb[0].mxu0
      %v1165 = vadd.f32 %v348, %v1164
      %v1166 = vpop.f32.mrb[0].mxu0
      %v1167 = vpop.f32.mrb[0].mxu0
      %v1168 = vadd.f32 %v348, %v1167
      %v1169 = vpop.f32.mrb[0].mxu0
      %1170 = vmatprep.mubr.bf16.mxu0 %v451
      %1171 = vmatmul.mubr.bf16.gmra.mrb[0].mxu0 %v450
      %v1172 = vpop.f32.mrb[0].mxu0
      %v1173 = vadd.f32 %v348, %v1172
      %v1174 = vpop.f32.mrb[0].mxu0
      %v1175 = vpop.f32.mrb[0].mxu0
      %v1176 = vadd.f32 %v348, %v1175
      %v1177 = vpop.f32.mrb[0].mxu0
      %1178 = vmatprep.mubr.bf16.mxu0 %v454
      %1179 = vmatmul.mubr.bf16.gmra.mrb[0].mxu0 %v453
      %v1180 = vpop.f32.mrb[0].mxu0
      %v1181 = vadd.f32 %v348, %v1180
      %v1182 = vpop.f32.mrb[0].mxu0
      %v1183 = vpop.f32.mrb[0].mxu0
      %v1184 = vadd.f32 %v348, %v1183
      %v1185 = vpop.f32.mrb[0].mxu0
      %1186 = vdwg.mxu0
      %1187 = vmatprep.subr.bf16.mxu0 0
      %1188 = vmatpush1.bf16.msra.mxu0 %v770
      %1189 = vmatprep.subr.bf16.mxu0 0
      %1190 = vmatpush1.bf16.msra.mxu0 %v773
      %1191 = vmatprep.subr.bf16.mxu0 0
      %1192 = vmatpush1.bf16.msra.mxu0 %v776
      %1193 = vmatprep.subr.bf16.mxu0 0
      %1194 = vmatpush1.bf16.msra.mxu0 %v779
      %1195 = vmatprep.subr.bf16.mxu0 0
      %1196 = vmatpush1.bf16.msra.mxu0 %v782
      %1197 = vmatprep.subr.bf16.mxu0 0
      %1198 = vmatpush1.bf16.msra.mxu0 %v785
      %1199 = vmatprep.subr.bf16.mxu0 0
      %1200 = vmatpush1.bf16.msra.mxu0 %v788
      %1201 = vmatprep.subr.bf16.mxu0 0
      %1202 = vmatpush1.bf16.msra.mxu0 %v791
      %1203 = vmatprep.subr.bf16.mxu0 0
      %1204 = vmatpush1.bf16.msra.mxu0 0
      %1205 = vmatprep.subr.bf16.mxu0 0
      %1206 = vmatpush1.bf16.msra.mxu0 0
      %1207 = vmatprep.subr.bf16.mxu0 0
      %1208 = vmatpush1.bf16.msra.mxu0 0
      %1209 = vmatprep.subr.bf16.mxu0 0
      %1210 = vmatpush1.bf16.msra.mxu0 0
      %1211 = vmatprep.subr.bf16.mxu0 0
      %1212 = vmatpush1.bf16.msra.mxu0 0
      %1213 = vmatprep.subr.bf16.mxu0 0
      %1214 = vmatpush1.bf16.msra.mxu0 0
      %1215 = vmatprep.subr.bf16.mxu0 0
      %1216 = vmatpush1.bf16.msra.mxu0 0
      %1217 = vmatprep.subr.bf16.mxu0 0
      %1218 = vmatpush1.bf16.msra.mxu0 0
      %1219 = vmatprep.mubr.bf16.mxu0 0
      %1220 = vmatmul.mubr.bf16.gmra.mrb[0].mxu0 %v434
      %v1221 = vpop.f32.mrb[0].mxu0
      %v1222 = vadd.f32 %v1125, %v1221
      %v1223 = vpop.f32.mrb[0].mxu0
      %v1224 = vpop.f32.mrb[0].mxu0
      %v1225 = vadd.f32 %v1128, %v1224
      %v1226 = vpop.f32.mrb[0].mxu0
      %1227 = vmatprep.mubr.bf16.mxu0 0
      %1228 = vmatmul.mubr.bf16.gmra.mrb[0].mxu0 %v437
      %v1229 = vpop.f32.mrb[0].mxu0
      %v1230 = vadd.f32 %v1133, %v1229
      %v1231 = vpop.f32.mrb[0].mxu0
      %v1232 = vpop.f32.mrb[0].mxu0
      %v1233 = vadd.f32 %v1136, %v1232
      %v1234 = vpop.f32.mrb[0].mxu0
      %1235 = vmatprep.mubr.bf16.mxu0 0
      %1236 = vmatmul.mubr.bf16.gmra.mrb[0].mxu0 %v440
      %v1237 = vpop.f32.mrb[0].mxu0
      %v1238 = vadd.f32 %v1141, %v1237
      %v1239 = vpop.f32.mrb[0].mxu0
      %v1240 = vpop.f32.mrb[0].mxu0
      %v1241 = vadd.f32 %v1144, %v1240
      %v1242 = vpop.f32.mrb[0].mxu0
      %1243 = vmatprep.mubr.bf16.mxu0 0
      %1244 = vmatmul.mubr.bf16.gmra.mrb[0].mxu0 %v443
      %v1245 = vpop.f32.mrb[0].mxu0
      %v1246 = vadd.f32 %v1149, %v1245
      %v1247 = vpop.f32.mrb[0].mxu0
      %v1248 = vpop.f32.mrb[0].mxu0
      %v1249 = vadd.f32 %v1152, %v1248
      %v1250 = vpop.f32.mrb[0].mxu0
      %1251 = vmatprep.mubr.bf16.mxu0 0
      %1252 = vmatmul.mubr.bf16.gmra.mrb[0].mxu0 %v446
      %v1253 = vpop.f32.mrb[0].mxu0
      %v1254 = vadd.f32 %v1157, %v1253
      %v1255 = vpop.f32.mrb[0].mxu0
      %v1256 = vpop.f32.mrb[0].mxu0
      %v1257 = vadd.f32 %v1160, %v1256
      %v1258 = vpop.f32.mrb[0].mxu0
      %1259 = vmatprep.mubr.bf16.mxu0 0
      %1260 = vmatmul.mubr.bf16.gmra.mrb[0].mxu0 %v449
      %v1261 = vpop.f32.mrb[0].mxu0
      %v1262 = vadd.f32 %v1165, %v1261
      %v1263 = vpop.f32.mrb[0].mxu0
      %v1264 = vpop.f32.mrb[0].mxu0
      %v1265 = vadd.f32 %v1168, %v1264
      %v1266 = vpop.f32.mrb[0].mxu0
      %1267 = vmatprep.mubr.bf16.mxu0 0
      %1268 = vmatmul.mubr.bf16.gmra.mrb[0].mxu0 %v452
      %v1269 = vpop.f32.mrb[0].mxu0
      %v1270 = vadd.f32 %v1173, %v1269
      %v1271 = vpop.f32.mrb[0].mxu0
      %v1272 = vpop.f32.mrb[0].mxu0
      %v1273 = vadd.f32 %v1176, %v1272
      %v1274 = vpop.f32.mrb[0].mxu0
      %1275 = vmatprep.mubr.bf16.mxu0 0
      %1276 = vmatmul.mubr.bf16.gmra.mrb[0].mxu0 %v455
      %v1277 = vpop.f32.mrb[0].mxu0
      %v1278 = vadd.f32 %v1181, %v1277
      %v1279 = vpop.f32.mrb[0].mxu0
      %v1280 = vpop.f32.mrb[0].mxu0
      %v1281 = vadd.f32 %v1184, %v1280
      %v1282 = vpop.f32.mrb[0].mxu0
      %1283 = vdwg.mxu0
      %v1284 = vld [vmem:[%s3] sm:$0x7]
      %vm1285 = vcmp.gt.f32.partialorder %v1284, 0.0
      %v1286 = vmax.f32 %v1012, 0.0
      %v1287 = vmax.f32 %v1014, 0.0
      %v1288 = vmax.f32 %v1222, 0.0
      %v1289 = vmax.f32 %v1016, 0.0
      %v1290 = vmax.f32 %v1018, 0.0
      %v1291 = vmax.f32 %v1225, 0.0
      %v1292 = vmax.f32 %v1022, 0.0
      %v1293 = vmax.f32 %v1024, 0.0
      %v1294 = vmax.f32 %v1230, 0.0
      %v1295 = vmax.f32 %v1026, 0.0
      %v1296 = vmax.f32 %v1028, 0.0
      %v1297 = vmax.f32 %v1233, 0.0
      %v1298 = vmax.f32 %v1032, 0.0
      %v1299 = vmax.f32 %v1034, 0.0
      %v1300 = vmax.f32 %v1238, 0.0
      %v1301 = vmax.f32 %v1036, 0.0
      %v1302 = vmax.f32 %v1038, 0.0
      %v1303 = vmax.f32 %v1241, 0.0
      %v1304 = vmax.f32 %v1042, 0.0
      %v1305 = vmax.f32 %v1044, 0.0
      %v1306 = vmax.f32 %v1246, 0.0
      %v1307 = vmax.f32 %v1046, 0.0
      %v1308 = vmax.f32 %v1048, 0.0
      %v1309 = vmax.f32 %v1249, 0.0
      %v1310 = vmax.f32 %v1052, 0.0
      %v1311 = vmax.f32 %v1054, 0.0
      %v1312 = vmax.f32 %v1254, 0.0
      %v1313 = vmax.f32 %v1056, 0.0
      %v1314 = vmax.f32 %v1058, 0.0
      %v1315 = vmax.f32 %v1257, 0.0
      %v1316 = vmax.f32 %v1062, 0.0
      %v1317 = vmax.f32 %v1064, 0.0
      %v1318 = vmax.f32 %v1262, 0.0
      %v1319 = vmax.f32 %v1066, 0.0
      %v1320 = vmax.f32 %v1068, 0.0
      %v1321 = vmax.f32 %v1265, 0.0
      %v1322 = vmax.f32 %v1072, 0.0
      %v1323 = vmax.f32 %v1074, 0.0
      %v1324 = vmax.f32 %v1270, 0.0
      %v1325 = vmax.f32 %v1076, 0.0
      %v1326 = vmax.f32 %v1078, 0.0
      %v1327 = vmax.f32 %v1273, 0.0
      %v1328 = vmax.f32 %v1082, 0.0
      %v1329 = vmax.f32 %v1084, 0.0
      %v1330 = vmax.f32 %v1278, 0.0
      %v1331 = vmax.f32 %v1086, 0.0
      %v1332 = vmax.f32 %v1088, 0.0
      %v1333 = vmax.f32 %v1281, 0.0
      %v1334 = vsel %vm1285, 1, 0
      %v1335 = vlaneseq
      %v1336 = vshrl.u32 %v1335, 7
      %v1337 = vsub.s32 0, %v1336
      %v1338 = vrot.slane %v1334, %v1337
      %v1339 = vlaneseq
      %v1340 = vshrl.u32 %v1339, 7
      %v1341 = vsub.s32 1, %v1340
      %v1342 = vrot.slane %v1334, %v1341
      %v1343 = vlaneseq
      %v1344 = vshrl.u32 %v1343, 7
      %v1345 = vsub.s32 2, %v1344
      %v1346 = vrot.slane %v1334, %v1345
      %vm1347 = vcmp.eq.s32.totalorder %v1338, 1
      %vm1348 = vcmp.eq.s32.totalorder %v1342, 1
      %vm1349 = vcmp.eq.s32.totalorder %v1346, 1
      %v1350 = vsel %vm1347, %v1286, %v1012
      %v1351 = vsel %vm1348, %v1287, %v1014
      %v1352 = vsel %vm1349, %v1288, %v1222
      %v1353 = vsel %vm1347, %v1289, %v1016
      %v1354 = vsel %vm1348, %v1290, %v1018
      %v1355 = vsel %vm1349, %v1291, %v1225
      %v1356 = vsel %vm1347, %v1292, %v1022
      %v1357 = vsel %vm1348, %v1293, %v1024
      %v1358 = vsel %vm1349, %v1294, %v1230
      %v1359 = vsel %vm1347, %v1295, %v1026
      %v1360 = vsel %vm1348, %v1296, %v1028
      %v1361 = vsel %vm1349, %v1297, %v1233
      %v1362 = vsel %vm1347, %v1298, %v1032
      %v1363 = vsel %vm1348, %v1299, %v1034
      %v1364 = vsel %vm1349, %v1300, %v1238
      %v1365 = vsel %vm1347, %v1301, %v1036
      %v1366 = vsel %vm1348, %v1302, %v1038
      %v1367 = vsel %vm1349, %v1303, %v1241
      %v1368 = vsel %vm1347, %v1304, %v1042
      %v1369 = vsel %vm1348, %v1305, %v1044
      %v1370 = vsel %vm1349, %v1306, %v1246
      %v1371 = vsel %vm1347, %v1307, %v1046
      %v1372 = vsel %vm1348, %v1308, %v1048
      %v1373 = vsel %vm1349, %v1309, %v1249
      %v1374 = vsel %vm1347, %v1310, %v1052
      %v1375 = vsel %vm1348, %v1311, %v1054
      %v1376 = vsel %vm1349, %v1312, %v1254
      %v1377 = vsel %vm1347, %v1313, %v1056
      %v1378 = vsel %vm1348, %v1314, %v1058
      %v1379 = vsel %vm1349, %v1315, %v1257
      %v1380 = vsel %vm1347, %v1316, %v1062
      %v1381 = vsel %vm1348, %v1317, %v1064
      %v1382 = vsel %vm1349, %v1318, %v1262
      %v1383 = vsel %vm1347, %v1319, %v1066
      %v1384 = vsel %vm1348, %v1320, %v1068
      %v1385 = vsel %vm1349, %v1321, %v1265
      %v1386 = vsel %vm1347, %v1322, %v1072
      %v1387 = vsel %vm1348, %v1323, %v1074
      %v1388 = vsel %vm1349, %v1324, %v1270
      %v1389 = vsel %vm1347, %v1325, %v1076
      %v1390 = vsel %vm1348, %v1326, %v1078
      %v1391 = vsel %vm1349, %v1327, %v1273
      %v1392 = vsel %vm1347, %v1328, %v1082
      %v1393 = vsel %vm1348, %v1329, %v1084
      %v1394 = vsel %vm1349, %v1330, %v1278
      %v1395 = vsel %vm1347, %v1331, %v1086
      %v1396 = vsel %vm1348, %v1332, %v1088
      %v1397 = vsel %vm1349, %v1333, %v1281
      %v1398 = vpack.c.bf16 %v1353, %v1350
      %v1399 = vpack.c.bf16 %v1354, %v1351
      %v1400 = vpack.c.bf16 %v1355, %v1352
      %v1401 = vpack.c.bf16 %v1359, %v1356
      %v1402 = vpack.c.bf16 %v1360, %v1357
      %v1403 = vpack.c.bf16 %v1361, %v1358
      %v1404 = vpack.c.bf16 %v1365, %v1362
      %v1405 = vpack.c.bf16 %v1366, %v1363
      %v1406 = vpack.c.bf16 %v1367, %v1364
      %v1407 = vpack.c.bf16 %v1371, %v1368
      %v1408 = vpack.c.bf16 %v1372, %v1369
      %v1409 = vpack.c.bf16 %v1373, %v1370
      %v1410 = vpack.c.bf16 %v1377, %v1374
      %v1411 = vpack.c.bf16 %v1378, %v1375
      %v1412 = vpack.c.bf16 %v1379, %v1376
      %v1413 = vpack.c.bf16 %v1383, %v1380
      %v1414 = vpack.c.bf16 %v1384, %v1381
      %v1415 = vpack.c.bf16 %v1385, %v1382
      %v1416 = vpack.c.bf16 %v1389, %v1386
      %v1417 = vpack.c.bf16 %v1390, %v1387
      %v1418 = vpack.c.bf16 %v1391, %v1388
      %v1419 = vpack.c.bf16 %v1395, %v1392
      %v1420 = vpack.c.bf16 %v1396, %v1393
      %v1421 = vpack.c.bf16 %v1397, %v1394
      %v1446 = vunpack.c.l.b16 %v1398
      %v1447 = vunpack.c.l.b16 %v1399
      %v1448 = vunpack.c.l.b16 %v1400
      %v1449 = vunpack.c.h.b16 %v1398
      %v1450 = vunpack.c.h.b16 %v1399
      %v1451 = vunpack.c.h.b16 %v1400
      %v1452 = vunpack.c.l.b16 %v1401
      %v1453 = vunpack.c.l.b16 %v1402
      %v1454 = vunpack.c.l.b16 %v1403
      %v1455 = vunpack.c.h.b16 %v1401
      %v1456 = vunpack.c.h.b16 %v1402
      %v1457 = vunpack.c.h.b16 %v1403
      %v1458 = vunpack.c.l.b16 %v1404
      %v1459 = vunpack.c.l.b16 %v1405
      %v1460 = vunpack.c.l.b16 %v1406
      %v1461 = vunpack.c.h.b16 %v1404
      %v1462 = vunpack.c.h.b16 %v1405
      %v1463 = vunpack.c.h.b16 %v1406
      %v1464 = vunpack.c.l.b16 %v1407
      %v1465 = vunpack.c.l.b16 %v1408
      %v1466 = vunpack.c.l.b16 %v1409
      %v1467 = vunpack.c.h.b16 %v1407
      %v1468 = vunpack.c.h.b16 %v1408
      %v1469 = vunpack.c.h.b16 %v1409
      %v1470 = vunpack.c.l.b16 %v1410
      %v1471 = vunpack.c.l.b16 %v1411
      %v1472 = vunpack.c.l.b16 %v1412
      %v1473 = vunpack.c.h.b16 %v1410
      %v1474 = vunpack.c.h.b16 %v1411
      %v1475 = vunpack.c.h.b16 %v1412
      %v1476 = vunpack.c.l.b16 %v1413
      %v1477 = vunpack.c.l.b16 %v1414
      %v1478 = vunpack.c.l.b16 %v1415
      %v1479 = vunpack.c.h.b16 %v1413
      %v1480 = vunpack.c.h.b16 %v1414
      %v1481 = vunpack.c.h.b16 %v1415
      %v1482 = vunpack.c.l.b16 %v1416
      %v1483 = vunpack.c.l.b16 %v1417
      %v1484 = vunpack.c.l.b16 %v1418
      %v1485 = vunpack.c.h.b16 %v1416
      %v1486 = vunpack.c.h.b16 %v1417
      %v1487 = vunpack.c.h.b16 %v1418
      %v1488 = vunpack.c.l.b16 %v1419
      %v1489 = vunpack.c.l.b16 %v1420
      %v1490 = vunpack.c.l.b16 %v1421
      %v1491 = vunpack.c.h.b16 %v1419
      %v1492 = vunpack.c.h.b16 %v1420
      %v1493 = vunpack.c.h.b16 %v1421
      %v1494 = vpack.c.b16 %v1447, %v1446
      %v1495 = vpack.c.b16 %v1448, %v1448
      %v1496 = vpack.c.b16 %v1450, %v1449
      %v1497 = vpack.c.b16 %v1451, %v1451
      %v1498 = vpack.c.b16 %v1453, %v1452
      %v1499 = vpack.c.b16 %v1454, %v1454
      %v1500 = vpack.c.b16 %v1456, %v1455
      %v1501 = vpack.c.b16 %v1457, %v1457
      %v1502 = vpack.c.b16 %v1459, %v1458
      %v1503 = vpack.c.b16 %v1460, %v1460
      %v1504 = vpack.c.b16 %v1462, %v1461
      %v1505 = vpack.c.b16 %v1463, %v1463
      %v1506 = vpack.c.b16 %v1465, %v1464
      %v1507 = vpack.c.b16 %v1466, %v1466
      %v1508 = vpack.c.b16 %v1468, %v1467
      %v1509 = vpack.c.b16 %v1469, %v1469
      %v1510 = vpack.c.b16 %v1471, %v1470
      %v1511 = vpack.c.b16 %v1472, %v1472
      %v1512 = vpack.c.b16 %v1474, %v1473
      %v1513 = vpack.c.b16 %v1475, %v1475
      %v1514 = vpack.c.b16 %v1477, %v1476
      %v1515 = vpack.c.b16 %v1478, %v1478
      %v1516 = vpack.c.b16 %v1480, %v1479
      %v1517 = vpack.c.b16 %v1481, %v1481
      %v1518 = vpack.c.b16 %v1483, %v1482
      %v1519 = vpack.c.b16 %v1484, %v1484
      %v1520 = vpack.c.b16 %v1486, %v1485
      %v1521 = vpack.c.b16 %v1487, %v1487
      %v1522 = vpack.c.b16 %v1489, %v1488
      %v1523 = vpack.c.b16 %v1490, %v1490
      %v1524 = vpack.c.b16 %v1492, %v1491
      %v1525 = vpack.c.b16 %v1493, %v1493
      %1558 = vst [vmem:[%s204] sm:$0xff] %v1494
      %1559 = vst [vmem:[%s204 + $0x8] sm:$0xf] %v1495
      %1560 = vst [vmem:[%s204 + $0xc] sm:$0xff] %v1496
      %1561 = vst [vmem:[%s204 + $0x14] sm:$0xf] %v1497
      %1562 = vst [vmem:[%s204 + $0x18] sm:$0xff] %v1498
      %1563 = vst [vmem:[%s204 + $0x20] sm:$0xf] %v1499
      %1564 = vst [vmem:[%s204 + $0x24] sm:$0xff] %v1500
      %1565 = vst [vmem:[%s204 + $0x2c] sm:$0xf] %v1501
      %1566 = vst [vmem:[%s204 + $0x30] sm:$0xff] %v1502
      %1567 = vst [vmem:[%s204 + $0x38] sm:$0xf] %v1503
      %1568 = vst [vmem:[%s204 + $0x3c] sm:$0xff] %v1504
      %1569 = vst [vmem:[%s204 + $0x44] sm:$0xf] %v1505
      %1570 = vst [vmem:[%s204 + $0x48] sm:$0xff] %v1506
      %1571 = vst [vmem:[%s204 + $0x50] sm:$0xf] %v1507
      %1572 = vst [vmem:[%s204 + $0x54] sm:$0xff] %v1508
      %1573 = vst [vmem:[%s204 + $0x5c] sm:$0xf] %v1509
      %1574 = vst [vmem:[%s204 + $0x60] sm:$0xff] %v1510
      %1575 = vst [vmem:[%s204 + $0x68] sm:$0xf] %v1511
      %1576 = vst [vmem:[%s204 + $0x6c] sm:$0xff] %v1512
      %1577 = vst [vmem:[%s204 + $0x74] sm:$0xf] %v1513
      %1578 = vst [vmem:[%s204 + $0x78] sm:$0xff] %v1514
      %1579 = vst [vmem:[%s204 + $0x80] sm:$0xf] %v1515
      %1580 = vst [vmem:[%s204 + $0x84] sm:$0xff] %v1516
      %1581 = vst [vmem:[%s204 + $0x8c] sm:$0xf] %v1517
      %1582 = vst [vmem:[%s204 + $0x90] sm:$0xff] %v1518
      %1583 = vst [vmem:[%s204 + $0x98] sm:$0xf] %v1519
      %1584 = vst [vmem:[%s204 + $0x9c] sm:$0xff] %v1520
      %1585 = vst [vmem:[%s204 + $0xa4] sm:$0xf] %v1521
      %1586 = vst [vmem:[%s204 + $0xa8] sm:$0xff] %v1522
      %1587 = vst [vmem:[%s204 + $0xb0] sm:$0xf] %v1523
      %1588 = vst [vmem:[%s204 + $0xb4] sm:$0xff] %v1524
      %1589 = vst [vmem:[%s204 + $0xbc] sm:$0xf] %v1525
      %s1590 = smul.u32 16, %s15
      %p1591 = scmp.lt.s32.totalorder %s1590, 63
      %s1592 = scalar_select %p1591, %s1590, 63
      %s1593 = smul.addr %s1592, 3
      %s1594 = smul.addr %s1593, 4
      %s1595 = scalar_lea.vmem %s4, %s1594
      // Predicated region
      $region37: #{inception_a.3} parent=35 // pred_check
        %p1596 = pneg %p122
      $region38: #{inception_a.3} parent=35 // pred_check_branch
        %1598 = sbr.rel (%p1596) target = $region40
      $region39: #{inception_a.3} parent=35 // pred_region
        %s1599 = smul.u32 16, %s15
      $region40: #{inception_a.3} parent=35 // pred_fallthru
        _
    $region36: #{inception_a.3} parent=5 // pred_fallthru
      _
    %p1600 = scmp.le.s32.totalorder 2, %s10
    // Predicated region
    $region41: #{inception_a.3} parent=5 // pred_check
      %p1601 = pneg %p1600
    $region42: #{inception_a.3} parent=5 // pred_check_branch
      %1603 = sbr.rel (%p1601) target = $region44
    $region43: #{inception_a.3} parent=5 // pred_region
      %s1604 = ssub.s32 %s10, 2
      // Predicated region
      $region45: #{inception_a.3} parent=43 // pred_check
        %p1605 = pneg %p128
      $region46: #{inception_a.3} parent=43 // pred_check_branch
        %1607 = sbr.rel (%p1605) target = $region48
      $region47: #{inception_a.3} parent=43 // pred_region
        %s1608 = smul.u32 16, %s16
        %p1609 = scmp.lt.s32.totalorder %s1608, 63
        %s1610 = scalar_select %p1609, %s1608, 63
        %s1611 = smul.addr %s1610, 3
        %s1612 = smul.addr %s1611, 4
        %s1613 = scalar_lea.vmem %s4, %s1612
      $region48: #{inception_a.3} parent=43 // pred_fallthru
        _
    $region44: #{inception_a.3} parent=5 // pred_fallthru
      _
  $region6: #{inception_a.3} parent=0 // loop_footer
    %s14 = sadd.s32 1, %s10
  $region7: #{inception_a.3} parent=0 // loop_footer_branch
    %9 = sbr.rel target = $region3
  $region8: #{inception_a.3} parent=0 // loop_exit
    _

// kernel: inception_a.4
$region0: #{inception_a.4}
  #allocation0 [shape = 'u32[]', space=smem, size = 0x4, offset = 0x4, fixed_abs, tag = 'smem constant byte address 0x4 - core index']
  #allocation1 [shape = 'u32[144,128]{1,0:T(1,128)}', space=vmem, size = 0x12000, scoped, tag = 'internal scratch']
  #allocation2 [shape = 'f32[64,256]{1,0:T(8,128)}', space=vmem, size = 0x10000, scoped, tag = 'scratch operand']
  %s0 = inlined_call_operand.vmem [shape: bf16[2,18,18,128], index: 0, kind: input, shape index: {}]
  %s1 = inlined_call_operand.vmem [shape: bf16[3,384,256], index: 1, kind: input, shape index: {}]
  %s2 = inlined_call_operand.vmem [shape: f32[1,256], index: 2, kind: input, shape index: {}]
  %s3 = inlined_call_operand.vmem [shape: bf16[2,16,16,256], index: 3, kind: output, shape index: {}]
  %s4 = sld [smem:[#allocation0]]
  $region45: #{inception_a.4} parent=0
    _
  %s6 = ssub.s32 1, %s4
  %s7 = scalar_select 0, %s6, %s4
  loop: start=0, step=1, limit=10
  $region2: #{inception_a.4} parent=0 // loop_pre_header
    _
  $region3: #{inception_a.4} parent=0 // loop_header
    %s9 = sphi 0, %s13
    %p10 = scmp.ge.s32.totalorder %s9, 10
    %s16 = sphi 0, %s28
    %s17 = sphi 0, %s24
    %s18 = sphi 0, %s16
    %s19 = sphi 0, %s17
    %s20 = sphi 0, %s18
    %s21 = sphi 0, %s19
    %s31 = sphi 0, %s33
    %s34 = sphi 0, %s31
    %s35 = sphi 0, %s34
    %s51 = sphi 0, %s35
    %s55 = sphi 0, %s55
    %s57 = sphi 0, %s55
    %s58 = sphi 0, %s57
    %s72 = sphi 0, %s58
    %s76 = sphi 0, %s76
    %s78 = sphi 0, %s76
    %s79 = sphi 0, %s78
    %s93 = sphi 0, %s79
    %s101 = sphi 0, %s103
    %s104 = sphi 0, %s101
    %s105 = sphi 0, %s104
    %s121 = sphi 0, %s105
  $region4: #{inception_a.4} parent=0 // loop_header_branch
    %12 = sbr.rel (%p10) target = $region8
  $region5: #{inception_a.4} parent=0 // loop_body
    %s14 = ssub.s32 %s9, 1
    %s15 = ssub.s32 %s9, 2
    %s22 = sadd.s32 1, %s17
    %p23 = scmp.ge.s32.totalorder %s22, 4
    %s24 = scalar_select %p23, 0, %s22
    %s25 = sadd.s32 1, %s16
    %s26 = scalar_select %p23, %s25, %s16
    %p27 = scmp.ge.s32.totalorder %s26, 2
    %s28 = scalar_select %p27, 0, %s26
    %s29 = ssub.s32 %s16, %s28
    %p30 = scmp.eq.s32.totalorder %s29, 0
    %s32 = sadd.s32 %s31, 1
    %s33 = scalar_select %p30, %s31, %s32
    %p36 = pneg %p30
    %p37 = scmp.eq.s32.totalorder %s9, 7
    %p38 = por %p36, %p37
    %p39 = scmp.ne.s32.totalorder %s31, %s34
    %p40 = scmp.eq.s32.totalorder %s9, 0
    %p41 = por %p39, %p40
    %p42 = scmp.ne.s32.totalorder %s31, %s34
    %p43 = scmp.eq.s32.totalorder %s14, 7
    %p44 = por %p42, %p43
    %p45 = scmp.ne.s32.totalorder %s34, %s35
    %p46 = scmp.eq.s32.totalorder %s14, 0
    %p47 = por %p45, %p46
    %p48 = scmp.ne.s32.totalorder %s34, %s35
    %p49 = scmp.eq.s32.totalorder %s15, 7
    %p50 = por %p48, %p49
    %p52 = scmp.ne.s32.totalorder %s35, %s51
    %p53 = scmp.eq.s32.totalorder %s15, 0
    %p54 = por %p52, %p53
    %s56 = sadd.s32 %s55, 1
    %p59 = scmp.eq.s32.totalorder %s9, 7
    %p60 = scmp.ne.s32.totalorder %s55, %s57
    %p61 = scmp.eq.s32.totalorder %s9, 0
    %p62 = por %p60, %p61
    %p63 = scmp.ne.s32.totalorder %s55, %s57
    %p64 = scmp.eq.s32.totalorder %s14, 7
    %p65 = por %p63, %p64
    %p66 = scmp.ne.s32.totalorder %s57, %s58
    %p67 = scmp.eq.s32.totalorder %s14, 0
    %p68 = por %p66, %p67
    %p69 = scmp.ne.s32.totalorder %s57, %s58
    %p70 = scmp.eq.s32.totalorder %s15, 7
    %p71 = por %p69, %p70
    %p73 = scmp.ne.s32.totalorder %s58, %s72
    %p74 = scmp.eq.s32.totalorder %s15, 0
    %p75 = por %p73, %p74
    %s77 = sadd.s32 %s76, 1
    %p80 = scmp.eq.s32.totalorder %s9, 7
    %p81 = scmp.ne.s32.totalorder %s76, %s78
    %p82 = scmp.eq.s32.totalorder %s9, 0
    %p83 = por %p81, %p82
    %p84 = scmp.ne.s32.totalorder %s76, %s78
    %p85 = scmp.eq.s32.totalorder %s14, 7
    %p86 = por %p84, %p85
    %p87 = scmp.ne.s32.totalorder %s78, %s79
    %p88 = scmp.eq.s32.totalorder %s14, 0
    %p89 = por %p87, %p88
    %p90 = scmp.ne.s32.totalorder %s78, %s79
    %p91 = scmp.eq.s32.totalorder %s15, 7
    %p92 = por %p90, %p91
    %p94 = scmp.ne.s32.totalorder %s79, %s93
    %p95 = scmp.eq.s32.totalorder %s15, 0
    %p96 = por %p94, %p95
    %s97 = ssub.s32 %s16, %s28
    %s98 = ssub.s32 %s17, %s24
    %s99 = sor.u32 %s97, %s98
    %p100 = scmp.eq.s32.totalorder %s99, 0
    %s102 = sadd.s32 %s101, 1
    %s103 = scalar_select %p100, %s101, %s102
    %p106 = pneg %p100
    %p107 = scmp.eq.s32.totalorder %s9, 7
    %p108 = por %p106, %p107
    %p109 = scmp.ne.s32.totalorder %s101, %s104
    %p110 = scmp.eq.s32.totalorder %s9, 0
    %p111 = por %p109, %p110
    %p112 = scmp.ne.s32.totalorder %s101, %s104
    %p113 = scmp.eq.s32.totalorder %s14, 7
    %p114 = por %p112, %p113
    %p115 = scmp.ne.s32.totalorder %s104, %s105
    %p116 = scmp.eq.s32.totalorder %s14, 0
    %p117 = por %p115, %p116
    %p118 = scmp.ne.s32.totalorder %s104, %s105
    %p119 = scmp.eq.s32.totalorder %s15, 7
    %p120 = por %p118, %p119
    %p122 = scmp.ne.s32.totalorder %s105, %s121
    %p123 = scmp.eq.s32.totalorder %s15, 0
    %p124 = por %p122, %p123
    %p125 = scmp.le.s32.totalorder 1, %s9
    %p126 = scmp.lt.s32.totalorder %s9, 9
    %p127 = pnand %p125, %p126
    %p128 = pneg %p127
    // Predicated region
    $region9: #{inception_a.4} parent=5 // pred_check
      _
    $region10: #{inception_a.4} parent=5 // pred_check_branch
      %130 = sbr.rel (%p127) target = $region12
    $region11: #{inception_a.4} parent=5 // pred_region
      %s131 = ssub.s32 %s9, 1
      // Predicated region
      $region13: #{inception_a.4} parent=11 // pred_check
        %p132 = pneg %p68
      $region14: #{inception_a.4} parent=11 // pred_check_branch
        %134 = sbr.rel (%p132) target = $region16
      $region15: #{inception_a.4} parent=11 // pred_region
        _
      $region16: #{inception_a.4} parent=11 // pred_fallthru
        _
      // Predicated region
      $region17: #{inception_a.4} parent=11 // pred_check
        %p135 = pneg %p89
      $region18: #{inception_a.4} parent=11 // pred_check_branch
        %137 = sbr.rel (%p135) target = $region20
      $region19: #{inception_a.4} parent=11 // pred_region
        _
      $region20: #{inception_a.4} parent=11 // pred_fallthru
        _
    $region12: #{inception_a.4} parent=5 // pred_fallthru
      _
    %p138 = scmp.lt.s32.totalorder %s9, 8
    // Predicated region
    $region21: #{inception_a.4} parent=5 // pred_check
      %p139 = pneg %p138
    $region22: #{inception_a.4} parent=5 // pred_check_branch
      %141 = sbr.rel (%p139) target = $region24
    $region23: #{inception_a.4} parent=5 // pred_region
      // Predicated region
      $region25: #{inception_a.4} parent=23 // pred_check
        %p142 = pneg %p41
      $region26: #{inception_a.4} parent=23 // pred_check_branch
        %144 = sbr.rel (%p142) target = $region28
      $region27: #{inception_a.4} parent=23 // pred_region
        %p145 = scmp.lt.s32.totalorder %s16, 1
        %s146 = scalar_select %p145, %s16, 1
        %s147 = smul.addr %s146, 54
        %s148 = smul.addr %s147, 4
        %s149 = scalar_lea.vmem %s0, %s148
      $region28: #{inception_a.4} parent=23 // pred_fallthru
        _
    $region24: #{inception_a.4} parent=5 // pred_fallthru
      _
    %p150 = scmp.le.s32.totalorder 1, %s9
    %p151 = scmp.lt.s32.totalorder %s9, 9
    %p152 = pnand %p150, %p151
    %p153 = pneg %p152
    // Predicated region
    $region29: #{inception_a.4} parent=5 // pred_check
      _
    $region30: #{inception_a.4} parent=5 // pred_check_branch
      %155 = sbr.rel (%p152) target = $region32
    $region31: #{inception_a.4} parent=5 // pred_region
      %s156 = ssub.s32 %s9, 1
      %p157 = scmp.lt.s32.totalorder %s18, 1
      %s158 = scalar_select %p157, %s18, 1
      %s159 = smul.addr %s158, 54
      %s160 = smul.addr %s159, 4
      %s161 = scalar_lea.vmem %s0, %s160
      %p162 = pneg %p47
      %p163 = pneg %p44
      %p164 = pneg %p68
      %p165 = pneg %p65
      %p166 = pneg %p89
      %p167 = pneg %p86
      %p168 = pneg %p117
      %p169 = pneg %p114
      %s170 = smul.u32 4, %s19
      %p171 = scmp.lt.s32.totalorder %s18, 1
      %s172 = scalar_select %p171, %s18, 1
      %p173 = scmp.lt.s32.totalorder %s170, 15
      %s174 = scalar_select %p173, %s170, 15
      %s175 = smul.addr %s174, 4
      %s176 = smul.addr %s172, 64
      %s177 = sadd.s32 %s175, %s176
      %s178 = smul.addr %s177, 4
      %s179 = scalar_lea.vmem %s3, %s178
      %p180 = scmp.lt.s32.totalorder %s18, 1
      %s181 = scalar_select %p180, %s18, 1
      %s182 = smul.addr %s181, 54
      %s183 = smul.addr %s182, 4
      %s184 = scalar_lea.vmem %s0, %s183
      %s185 = smul.u32 4, %s19
      %p186 = scmp.lt.s32.totalorder %s18, 1
      %s187 = scalar_select %p186, %s18, 1
      %p188 = scmp.lt.s32.totalorder %s185, 15
      %s189 = scalar_select %p188, %s185, 15
      %s190 = smul.addr %s189, 4
      %s191 = smul.addr %s187, 64
      %s192 = sadd.s32 %s190, %s191
      %s193 = smul.addr %s192, 4
      %s194 = scalar_lea.vmem %s3, %s193
      %s195 = smul.u32 4, %s19
      %s197 = smul.u32 %s19, 4
      %s198 = smul.u32 %s197, 3
      %s199 = smul.addr %s198, 4
      %s200 = scalar_lea.vmem %s184, %s199
      %v201 = vld [vmem:[%s200] sm:$0xf]
      %v202 = vld [vmem:[%s200 + $0x4] sm:$0xf]
      %v203 = vld [vmem:[%s200 + $0x8] sm:$0x1]
      %v204 = vld [vmem:[%s200 + $0xc] sm:$0xf]
      %v205 = vld [vmem:[%s200 + $0x10] sm:$0xf]
      %v206 = vld [vmem:[%s200 + $0x14] sm:$0x1]
      %v207 = vld [vmem:[%s200 + $0x18] sm:$0xf]
      %v208 = vld [vmem:[%s200 + $0x1c] sm:$0xf]
      %v209 = vld [vmem:[%s200 + $0x20] sm:$0x1]
      %v210 = vld [vmem:[%s200 + $0x24] sm:$0xf]
      %v211 = vld [vmem:[%s200 + $0x28] sm:$0xf]
      %v212 = vld [vmem:[%s200 + $0x2c] sm:$0x1]
      %v213 = vld [vmem:[%s200 + $0x30] sm:$0xf]
      %v214 = vld [vmem:[%s200 + $0x34] sm:$0xf]
      %v215 = vld [vmem:[%s200 + $0x38] sm:$0x1]
      %v216 = vld [vmem:[%s200 + $0x3c] sm:$0xf]
      %v217 = vld [vmem:[%s200 + $0x40] sm:$0xf]
      %v218 = vld [vmem:[%s200 + $0x44] sm:$0x1]
      %v231 = vunpack.c.l.b16 %v201
      %v232 = vunpack.c.l.b16 %v202
      %v233 = vunpack.c.l.b16 %v204
      %v234 = vunpack.c.l.b16 %v205
      %v235 = vunpack.c.l.b16 %v207
      %v236 = vunpack.c.l.b16 %v208
      %v237 = vunpack.c.l.b16 %v210
      %v238 = vunpack.c.l.b16 %v211
      %v239 = vunpack.c.l.b16 %v213
      %v240 = vunpack.c.l.b16 %v214
      %v241 = vunpack.c.l.b16 %v216
      %v242 = vunpack.c.l.b16 %v217
      %v243 = vpack.c.b16 %v232, %v231
      %v244 = vpack.c.b16 %v234, %v233
      %v245 = vpack.c.b16 %v236, %v235
      %v246 = vpack.c.b16 %v238, %v237
      %v247 = vpack.c.b16 %v240, %v239
      %v248 = vpack.c.b16 %v242, %v241
      %v261 = vunpack.c.l.b16 %v203
      %v262 = vunpack.c.l.b16 %v206
      %v263 = vunpack.c.l.b16 %v209
      %v264 = vunpack.c.l.b16 %v212
      %v265 = vunpack.c.l.b16 %v215
      %v266 = vunpack.c.l.b16 %v218
      %v267 = vpack.c.b16 %v261, %v261
      %v268 = vpack.c.b16 %v262, %v262
      %v269 = vpack.c.b16 %v263, %v263
      %v270 = vpack.c.b16 %v264, %v264
      %v271 = vpack.c.b16 %v265, %v265
      %v272 = vpack.c.b16 %v266, %v266
      %vm273 = vsmask.f32 7424
      %v275 = vshrl.u32 %v243, 16
      %v277 = vshll.u32 %v243, 16
      %v279 = vrot.slane %v277, 1
      %v280 = vor.u32 %v275, %v279
      %v282 = vshll.u32 %v267, 16
      %v284 = vrot.slane %v282, 1
      %v285 = vsel %vm273, %v280, %v284
      %v287 = vshrl.u32 %v244, 16
      %v289 = vshll.u32 %v244, 16
      %v291 = vrot.slane %v289, 1
      %v292 = vor.u32 %v287, %v291
      %v294 = vshll.u32 %v268, 16
      %v296 = vrot.slane %v294, 1
      %v297 = vsel %vm273, %v292, %v296
      %v299 = vshrl.u32 %v245, 16
      %v301 = vshll.u32 %v245, 16
      %v303 = vrot.slane %v301, 1
      %v304 = vor.u32 %v299, %v303
      %v306 = vshll.u32 %v269, 16
      %v308 = vrot.slane %v306, 1
      %v309 = vsel %vm273, %v304, %v308
      %v311 = vshrl.u32 %v246, 16
      %v313 = vshll.u32 %v246, 16
      %v315 = vrot.slane %v313, 1
      %v316 = vor.u32 %v311, %v315
      %v318 = vshll.u32 %v270, 16
      %v320 = vrot.slane %v318, 1
      %v321 = vsel %vm273, %v316, %v320
      %v323 = vshrl.u32 %v247, 16
      %v325 = vshll.u32 %v247, 16
      %v327 = vrot.slane %v325, 1
      %v328 = vor.u32 %v323, %v327
      %v330 = vshll.u32 %v271, 16
      %v332 = vrot.slane %v330, 1
      %v333 = vsel %vm273, %v328, %v332
      %v335 = vshrl.u32 %v248, 16
      %v337 = vshll.u32 %v248, 16
      %v339 = vrot.slane %v337, 1
      %v340 = vor.u32 %v335, %v339
      %v342 = vshll.u32 %v272, 16
      %v344 = vrot.slane %v342, 1
      %v345 = vsel %vm273, %v340, %v344
      %vm352 = vcmask 1046528
      %v353 = vrot.slane %v243, 1
      %v354 = vrot.slane %v267, 1
      %v355 = vsel %vm352, %v353, %v354
      %v356 = vrot.slane %v244, 1
      %v357 = vrot.slane %v268, 1
      %v358 = vsel %vm352, %v356, %v357
      %v359 = vrot.slane %v245, 1
      %v360 = vrot.slane %v269, 1
      %v361 = vsel %vm352, %v359, %v360
      %v362 = vrot.slane %v246, 1
      %v363 = vrot.slane %v270, 1
      %v364 = vsel %vm352, %v362, %v363
      %v365 = vrot.slane %v247, 1
      %v366 = vrot.slane %v271, 1
      %v367 = vsel %vm352, %v365, %v366
      %v368 = vrot.slane %v248, 1
      %v369 = vrot.slane %v272, 1
      %v370 = vsel %vm352, %v368, %v369
      %v377 = vld [vmem:[%s1] sm:$0xff]
      %v378 = vld [vmem:[%s1 + $0x8] sm:$0xff]
      %v379 = vld [vmem:[%s1 + $0x10] sm:$0xff]
      %v380 = vld [vmem:[%s1 + $0x18] sm:$0xff]
      %v381 = vld [vmem:[%s1 + $0x20] sm:$0xff]
      %v382 = vld [vmem:[%s1 + $0x28] sm:$0xff]
      %v383 = vld [vmem:[%s1 + $0x30] sm:$0xff]
      %v384 = vld [vmem:[%s1 + $0x38] sm:$0xff]
      %v385 = vld [vmem:[%s1 + $0x40] sm:$0xff]
      %v386 = vld [vmem:[%s1 + $0x48] sm:$0xff]
      %v387 = vld [vmem:[%s1 + $0x50] sm:$0xff]
      %v388 = vld [vmem:[%s1 + $0x58] sm:$0xff]
      %v389 = vld [vmem:[%s1 + $0x60] sm:$0xff]
      %v390 = vld [vmem:[%s1 + $0x68] sm:$0xff]
      %v391 = vld [vmem:[%s1 + $0x70] sm:$0xff]
      %v392 = vld [vmem:[%s1 + $0x78] sm:$0xff]
      %v393 = vld [vmem:[%s1 + $0x80] sm:$0xff]
      %v394 = vld [vmem:[%s1 + $0x88] sm:$0xff]
      %v395 = vld [vmem:[%s1 + $0x90] sm:$0xff]
      %v396 = vld [vmem:[%s1 + $0x98] sm:$0xff]
      %v397 = vld [vmem:[%s1 + $0xa0] sm:$0xff]
      %v398 = vld [vmem:[%s1 + $0xa8] sm:$0xff]
      %v399 = vld [vmem:[%s1 + $0xb0] sm:$0xff]
      %v400 = vld [vmem:[%s1 + $0xb8] sm:$0xff]
      %v401 = vld [vmem:[%s1 + $0xc0] sm:$0xff]
      %v402 = vld [vmem:[%s1 + $0xc8] sm:$0xff]
      %v403 = vld [vmem:[%s1 + $0xd0] sm:$0xff]
      %v404 = vld [vmem:[%s1 + $0xd8] sm:$0xff]
      %v405 = vld [vmem:[%s1 + $0xe0] sm:$0xff]
      %v406 = vld [vmem:[%s1 + $0xe8] sm:$0xff]
      %v407 = vld [vmem:[%s1 + $0xf0] sm:$0xff]
      %v408 = vld [vmem:[%s1 + $0xf8] sm:$0xff]
      %v409 = vld [vmem:[%s1 + $0x100] sm:$0xff]
      %v410 = vld [vmem:[%s1 + $0x108] sm:$0xff]
      %v411 = vld [vmem:[%s1 + $0x110] sm:$0xff]
      %v412 = vld [vmem:[%s1 + $0x118] sm:$0xff]
      %v413 = vld [vmem:[%s1 + $0x120] sm:$0xff]
      %v414 = vld [vmem:[%s1 + $0x128] sm:$0xff]
      %v415 = vld [vmem:[%s1 + $0x130] sm:$0xff]
      %v416 = vld [vmem:[%s1 + $0x138] sm:$0xff]
      %v417 = vld [vmem:[%s1 + $0x140] sm:$0xff]
      %v418 = vld [vmem:[%s1 + $0x148] sm:$0xff]
      %v419 = vld [vmem:[%s1 + $0x150] sm:$0xff]
      %v420 = vld [vmem:[%s1 + $0x158] sm:$0xff]
      %v421 = vld [vmem:[%s1 + $0x160] sm:$0xff]
      %v422 = vld [vmem:[%s1 + $0x168] sm:$0xff]
      %v423 = vld [vmem:[%s1 + $0x170] sm:$0xff]
      %v424 = vld [vmem:[%s1 + $0x178] sm:$0xff]
      %v425 = vld [vmem:[%s1 + $0x180] sm:$0xff]
      %v426 = vld [vmem:[%s1 + $0x188] sm:$0xff]
      %v427 = vld [vmem:[%s1 + $0x190] sm:$0xff]
      %v428 = vld [vmem:[%s1 + $0x198] sm:$0xff]
      %v429 = vld [vmem:[%s1 + $0x1a0] sm:$0xff]
      %v430 = vld [vmem:[%s1 + $0x1a8] sm:$0xff]
      %v431 = vld [vmem:[%s1 + $0x1b0] sm:$0xff]
      %v432 = vld [vmem:[%s1 + $0x1b8] sm:$0xff]
      %v433 = vld [vmem:[%s1 + $0x1c0] sm:$0xff]
      %v434 = vld [vmem:[%s1 + $0x1c8] sm:$0xff]
      %v435 = vld [vmem:[%s1 + $0x1d0] sm:$0xff]
      %v436 = vld [vmem:[%s1 + $0x1d8] sm:$0xff]
      %v437 = vld [vmem:[%s1 + $0x1e0] sm:$0xff]
      %v438 = vld [vmem:[%s1 + $0x1e8] sm:$0xff]
      %v439 = vld [vmem:[%s1 + $0x1f0] sm:$0xff]
      %v440 = vld [vmem:[%s1 + $0x1f8] sm:$0xff]
      %v441 = vld [vmem:[%s1 + $0x200] sm:$0xff]
      %v442 = vld [vmem:[%s1 + $0x208] sm:$0xff]
      %v443 = vld [vmem:[%s1 + $0x210] sm:$0xff]
      %v444 = vld [vmem:[%s1 + $0x218] sm:$0xff]
      %v445 = vld [vmem:[%s1 + $0x220] sm:$0xff]
      %v446 = vld [vmem:[%s1 + $0x228] sm:$0xff]
      %v447 = vld [vmem:[%s1 + $0x230] sm:$0xff]
      %v448 = vld [vmem:[%s1 + $0x238] sm:$0xff]
      %v449 = vld [vmem:[%s1 + $0x240] sm:$0xff]
      %v450 = vld [vmem:[%s1 + $0x248] sm:$0xff]
      %v451 = vld [vmem:[%s1 + $0x250] sm:$0xff]
      %v452 = vld [vmem:[%s1 + $0x258] sm:$0xff]
      %v453 = vld [vmem:[%s1 + $0x260] sm:$0xff]
      %v454 = vld [vmem:[%s1 + $0x268] sm:$0xff]
      %v455 = vld [vmem:[%s1 + $0x270] sm:$0xff]
      %v456 = vld [vmem:[%s1 + $0x278] sm:$0xff]
      %v457 = vld [vmem:[%s1 + $0x280] sm:$0xff]
      %v458 = vld [vmem:[%s1 + $0x288] sm:$0xff]
      %v459 = vld [vmem:[%s1 + $0x290] sm:$0xff]
      %v460 = vld [vmem:[%s1 + $0x298] sm:$0xff]
      %v461 = vld [vmem:[%s1 + $0x2a0] sm:$0xff]
      %v462 = vld [vmem:[%s1 + $0x2a8] sm:$0xff]
      %v463 = vld [vmem:[%s1 + $0x2b0] sm:$0xff]
      %v464 = vld [vmem:[%s1 + $0x2b8] sm:$0xff]
      %v465 = vld [vmem:[%s1 + $0x2c0] sm:$0xff]
      %v466 = vld [vmem:[%s1 + $0x2c8] sm:$0xff]
      %v467 = vld [vmem:[%s1 + $0x2d0] sm:$0xff]
      %v468 = vld [vmem:[%s1 + $0x2d8] sm:$0xff]
      %v469 = vld [vmem:[%s1 + $0x2e0] sm:$0xff]
      %v470 = vld [vmem:[%s1 + $0x2e8] sm:$0xff]
      %v471 = vld [vmem:[%s1 + $0x2f0] sm:$0xff]
      %v472 = vld [vmem:[%s1 + $0x2f8] sm:$0xff]
      %v473 = vld [vmem:[%s1 + $0x300] sm:$0xff]
      %v474 = vld [vmem:[%s1 + $0x308] sm:$0xff]
      %v475 = vld [vmem:[%s1 + $0x310] sm:$0xff]
      %v476 = vld [vmem:[%s1 + $0x318] sm:$0xff]
      %v477 = vld [vmem:[%s1 + $0x320] sm:$0xff]
      %v478 = vld [vmem:[%s1 + $0x328] sm:$0xff]
      %v479 = vld [vmem:[%s1 + $0x330] sm:$0xff]
      %v480 = vld [vmem:[%s1 + $0x338] sm:$0xff]
      %v481 = vld [vmem:[%s1 + $0x340] sm:$0xff]
      %v482 = vld [vmem:[%s1 + $0x348] sm:$0xff]
      %v483 = vld [vmem:[%s1 + $0x350] sm:$0xff]
      %v484 = vld [vmem:[%s1 + $0x358] sm:$0xff]
      %v485 = vld [vmem:[%s1 + $0x360] sm:$0xff]
      %v486 = vld [vmem:[%s1 + $0x368] sm:$0xff]
      %v487 = vld [vmem:[%s1 + $0x370] sm:$0xff]
      %v488 = vld [vmem:[%s1 + $0x378] sm:$0xff]
      %v489 = vld [vmem:[%s1 + $0x380] sm:$0xff]
      %v490 = vld [vmem:[%s1 + $0x388] sm:$0xff]
      %v491 = vld [vmem:[%s1 + $0x390] sm:$0xff]
      %v492 = vld [vmem:[%s1 + $0x398] sm:$0xff]
      %v493 = vld [vmem:[%s1 + $0x3a0] sm:$0xff]
      %v494 = vld [vmem:[%s1 + $0x3a8] sm:$0xff]
      %v495 = vld [vmem:[%s1 + $0x3b0] sm:$0xff]
      %v496 = vld [vmem:[%s1 + $0x3b8] sm:$0xff]
      %v497 = vld [vmem:[%s1 + $0x3c0] sm:$0xff]
      %v498 = vld [vmem:[%s1 + $0x3c8] sm:$0xff]
      %v499 = vld [vmem:[%s1 + $0x3d0] sm:$0xff]
      %v500 = vld [vmem:[%s1 + $0x3d8] sm:$0xff]
      %v501 = vld [vmem:[%s1 + $0x3e0] sm:$0xff]
      %v502 = vld [vmem:[%s1 + $0x3e8] sm:$0xff]
      %v503 = vld [vmem:[%s1 + $0x3f0] sm:$0xff]
      %v504 = vld [vmem:[%s1 + $0x3f8] sm:$0xff]
      %v505 = vld [vmem:[%s1 + $0x400] sm:$0xff]
      %v506 = vld [vmem:[%s1 + $0x408] sm:$0xff]
      %v507 = vld [vmem:[%s1 + $0x410] sm:$0xff]
      %v508 = vld [vmem:[%s1 + $0x418] sm:$0xff]
      %v509 = vld [vmem:[%s1 + $0x420] sm:$0xff]
      %v510 = vld [vmem:[%s1 + $0x428] sm:$0xff]
      %v511 = vld [vmem:[%s1 + $0x430] sm:$0xff]
      %v512 = vld [vmem:[%s1 + $0x438] sm:$0xff]
      %v513 = vld [vmem:[%s1 + $0x440] sm:$0xff]
      %v514 = vld [vmem:[%s1 + $0x448] sm:$0xff]
      %v515 = vld [vmem:[%s1 + $0x450] sm:$0xff]
      %v516 = vld [vmem:[%s1 + $0x458] sm:$0xff]
      %v517 = vld [vmem:[%s1 + $0x460] sm:$0xff]
      %v518 = vld [vmem:[%s1 + $0x468] sm:$0xff]
      %v519 = vld [vmem:[%s1 + $0x470] sm:$0xff]
      %v520 = vld [vmem:[%s1 + $0x478] sm:$0xff]
      %v569 = vunpack.c.l.b16 %v377
      %v570 = vunpack.c.h.b16 %v377
      %v571 = vunpack.c.l.b16 %v378
      %v572 = vunpack.c.h.b16 %v378
      %v573 = vunpack.c.l.b16 %v379
      %v574 = vunpack.c.h.b16 %v379
      %v575 = vunpack.c.l.b16 %v380
      %v576 = vunpack.c.h.b16 %v380
      %v577 = vunpack.c.l.b16 %v381
      %v578 = vunpack.c.h.b16 %v381
      %v579 = vunpack.c.l.b16 %v382
      %v580 = vunpack.c.h.b16 %v382
      %v581 = vunpack.c.l.b16 %v383
      %v582 = vunpack.c.h.b16 %v383
      %v583 = vunpack.c.l.b16 %v384
      %v584 = vunpack.c.h.b16 %v384
      %v585 = vunpack.c.l.b16 %v385
      %v586 = vunpack.c.h.b16 %v385
      %v587 = vunpack.c.l.b16 %v386
      %v588 = vunpack.c.h.b16 %v386
      %v589 = vunpack.c.l.b16 %v387
      %v590 = vunpack.c.h.b16 %v387
      %v591 = vunpack.c.l.b16 %v388
      %v592 = vunpack.c.h.b16 %v388
      %v593 = vunpack.c.l.b16 %v389
      %v594 = vunpack.c.h.b16 %v389
      %v595 = vunpack.c.l.b16 %v390
      %v596 = vunpack.c.h.b16 %v390
      %v597 = vunpack.c.l.b16 %v391
      %v598 = vunpack.c.h.b16 %v391
      %v599 = vunpack.c.l.b16 %v392
      %v600 = vunpack.c.h.b16 %v392
      %v601 = vunpack.c.l.b16 %v393
      %v602 = vunpack.c.h.b16 %v393
      %v603 = vunpack.c.l.b16 %v394
      %v604 = vunpack.c.h.b16 %v394
      %v605 = vunpack.c.l.b16 %v395
      %v606 = vunpack.c.h.b16 %v395
      %v607 = vunpack.c.l.b16 %v396
      %v608 = vunpack.c.h.b16 %v396
      %v609 = vunpack.c.l.b16 %v397
      %v610 = vunpack.c.h.b16 %v397
      %v611 = vunpack.c.l.b16 %v398
      %v612 = vunpack.c.h.b16 %v398
      %v613 = vunpack.c.l.b16 %v399
      %v614 = vunpack.c.h.b16 %v399
      %v615 = vunpack.c.l.b16 %v400
      %v616 = vunpack.c.h.b16 %v400
      %v617 = vunpack.c.l.b16 %v401
      %v618 = vunpack.c.h.b16 %v401
      %v619 = vunpack.c.l.b16 %v402
      %v620 = vunpack.c.h.b16 %v402
      %v621 = vunpack.c.l.b16 %v403
      %v622 = vunpack.c.h.b16 %v403
      %v623 = vunpack.c.l.b16 %v404
      %v624 = vunpack.c.h.b16 %v404
      %v625 = vunpack.c.l.b16 %v405
      %v626 = vunpack.c.h.b16 %v405
      %v627 = vunpack.c.l.b16 %v406
      %v628 = vunpack.c.h.b16 %v406
      %v629 = vunpack.c.l.b16 %v407
      %v630 = vunpack.c.h.b16 %v407
      %v631 = vunpack.c.l.b16 %v408
      %v632 = vunpack.c.h.b16 %v408
      %v633 = vunpack.c.l.b16 %v409
      %v634 = vunpack.c.h.b16 %v409
      %v635 = vunpack.c.l.b16 %v410
      %v636 = vunpack.c.h.b16 %v410
      %v637 = vunpack.c.l.b16 %v411
      %v638 = vunpack.c.h.b16 %v411
      %v639 = vunpack.c.l.b16 %v412
      %v640 = vunpack.c.h.b16 %v412
      %v641 = vunpack.c.l.b16 %v413
      %v642 = vunpack.c.h.b16 %v413
      %v643 = vunpack.c.l.b16 %v414
      %v644 = vunpack.c.h.b16 %v414
      %v645 = vunpack.c.l.b16 %v415
      %v646 = vunpack.c.h.b16 %v415
      %v647 = vunpack.c.l.b16 %v416
      %v648 = vunpack.c.h.b16 %v416
      %v649 = vunpack.c.l.b16 %v417
      %v650 = vunpack.c.h.b16 %v417
      %v651 = vunpack.c.l.b16 %v418
      %v652 = vunpack.c.h.b16 %v418
      %v653 = vunpack.c.l.b16 %v419
      %v654 = vunpack.c.h.b16 %v419
      %v655 = vunpack.c.l.b16 %v420
      %v656 = vunpack.c.h.b16 %v420
      %v657 = vunpack.c.l.b16 %v421
      %v658 = vunpack.c.h.b16 %v421
      %v659 = vunpack.c.l.b16 %v422
      %v660 = vunpack.c.h.b16 %v422
      %v661 = vunpack.c.l.b16 %v423
      %v662 = vunpack.c.h.b16 %v423
      %v663 = vunpack.c.l.b16 %v424
      %v664 = vunpack.c.h.b16 %v424
      %v665 = vpack.c.b16 %v571, %v569
      %v666 = vpack.c.b16 %v572, %v570
      %v667 = vpack.c.b16 %v575, %v573
      %v668 = vpack.c.b16 %v576, %v574
      %v669 = vpack.c.b16 %v579, %v577
      %v670 = vpack.c.b16 %v580, %v578
      %v671 = vpack.c.b16 %v583, %v581
      %v672 = vpack.c.b16 %v584, %v582
      %v673 = vpack.c.b16 %v587, %v585
      %v674 = vpack.c.b16 %v588, %v586
      %v675 = vpack.c.b16 %v591, %v589
      %v676 = vpack.c.b16 %v592, %v590
      %v677 = vpack.c.b16 %v595, %v593
      %v678 = vpack.c.b16 %v596, %v594
      %v679 = vpack.c.b16 %v599, %v597
      %v680 = vpack.c.b16 %v600, %v598
      %v681 = vpack.c.b16 %v603, %v601
      %v682 = vpack.c.b16 %v604, %v602
      %v683 = vpack.c.b16 %v607, %v605
      %v684 = vpack.c.b16 %v608, %v606
      %v685 = vpack.c.b16 %v611, %v609
      %v686 = vpack.c.b16 %v612, %v610
      %v687 = vpack.c.b16 %v615, %v613
      %v688 = vpack.c.b16 %v616, %v614
      %v689 = vpack.c.b16 %v619, %v617
      %v690 = vpack.c.b16 %v620, %v618
      %v691 = vpack.c.b16 %v623, %v621
      %v692 = vpack.c.b16 %v624, %v622
      %v693 = vpack.c.b16 %v627, %v625
      %v694 = vpack.c.b16 %v628, %v626
      %v695 = vpack.c.b16 %v631, %v629
      %v696 = vpack.c.b16 %v632, %v630
      %v697 = vpack.c.b16 %v635, %v633
      %v698 = vpack.c.b16 %v636, %v634
      %v699 = vpack.c.b16 %v639, %v637
      %v700 = vpack.c.b16 %v640, %v638
      %v701 = vpack.c.b16 %v643, %v641
      %v702 = vpack.c.b16 %v644, %v642
      %v703 = vpack.c.b16 %v647, %v645
      %v704 = vpack.c.b16 %v648, %v646
      %v705 = vpack.c.b16 %v651, %v649
      %v706 = vpack.c.b16 %v652, %v650
      %v707 = vpack.c.b16 %v655, %v653
      %v708 = vpack.c.b16 %v656, %v654
      %v709 = vpack.c.b16 %v659, %v657
      %v710 = vpack.c.b16 %v660, %v658
      %v711 = vpack.c.b16 %v663, %v661
      %v712 = vpack.c.b16 %v664, %v662
      %761 = vmatprep.subr.bf16.mxu0 %v666
      %762 = vmatpush1.bf16.msra.mxu0 %v665
      %763 = vmatprep.subr.bf16.mxu0 %v668
      %764 = vmatpush1.bf16.msra.mxu0 %v667
      %765 = vmatprep.subr.bf16.mxu0 %v670
      %766 = vmatpush1.bf16.msra.mxu0 %v669
      %767 = vmatprep.subr.bf16.mxu0 %v672
      %768 = vmatpush1.bf16.msra.mxu0 %v671
      %769 = vmatprep.subr.bf16.mxu0 %v674
      %770 = vmatpush1.bf16.msra.mxu0 %v673
      %771 = vmatprep.subr.bf16.mxu0 %v676
      %772 = vmatpush1.bf16.msra.mxu0 %v675
      %773 = vmatprep.subr.bf16.mxu0 %v678
      %774 = vmatpush1.bf16.msra.mxu0 %v677
      %775 = vmatprep.subr.bf16.mxu0 %v680
      %776 = vmatpush1.bf16.msra.mxu0 %v679
      %777 = vmatprep.subr.bf16.mxu0 %v682
      %778 = vmatpush1.bf16.msra.mxu0 %v681
      %779 = vmatprep.subr.bf16.mxu0 %v684
      %780 = vmatpush1.bf16.msra.mxu0 %v683
      %781 = vmatprep.subr.bf16.mxu0 %v686
      %782 = vmatpush1.bf16.msra.mxu0 %v685
      %783 = vmatprep.subr.bf16.mxu0 %v688
      %784 = vmatpush1.bf16.msra.mxu0 %v687
      %785 = vmatprep.subr.bf16.mxu0 %v690
      %786 = vmatpush1.bf16.msra.mxu0 %v689
      %787 = vmatprep.subr.bf16.mxu0 %v692
      %788 = vmatpush1.bf16.msra.mxu0 %v691
      %789 = vmatprep.subr.bf16.mxu0 %v694
      %790 = vmatpush1.bf16.msra.mxu0 %v693
      %791 = vmatprep.subr.bf16.mxu0 %v696
      %792 = vmatpush1.bf16.msra.mxu0 %v695
      %793 = vmatprep.mubr.bf16.mxu0 %v285
      %794 = vmatmul.mubr.bf16.gmra.mrb[0].mxu0 %v243
      %v795 = vpop.f32.mrb[0].mxu0
      %v796 = vadd.f32 0.0, %v795
      %v797 = vpop.f32.mrb[0].mxu0
      %v798 = vadd.f32 0.0, %v797
      %v799 = vpop.f32.mrb[0].mxu0
      %v800 = vadd.f32 0.0, %v799
      %v801 = vpop.f32.mrb[0].mxu0
      %v802 = vadd.f32 0.0, %v801
      %803 = vmatprep.mubr.bf16.mxu0 %v297
      %804 = vmatmul.mubr.bf16.gmra.mrb[0].mxu0 %v244
      %v805 = vpop.f32.mrb[0].mxu0
      %v806 = vadd.f32 0.0, %v805
      %v807 = vpop.f32.mrb[0].mxu0
      %v808 = vadd.f32 0.0, %v807
      %v809 = vpop.f32.mrb[0].mxu0
      %v810 = vadd.f32 0.0, %v809
      %v811 = vpop.f32.mrb[0].mxu0
      %v812 = vadd.f32 0.0, %v811
      %813 = vmatprep.mubr.bf16.mxu0 %v309
      %814 = vmatmul.mubr.bf16.gmra.mrb[0].mxu0 %v245
      %v815 = vpop.f32.mrb[0].mxu0
      %v816 = vadd.f32 0.0, %v815
      %v817 = vpop.f32.mrb[0].mxu0
      %v818 = vadd.f32 0.0, %v817
      %v819 = vpop.f32.mrb[0].mxu0
      %v820 = vadd.f32 0.0, %v819
      %v821 = vpop.f32.mrb[0].mxu0
      %v822 = vadd.f32 0.0, %v821
      %823 = vmatprep.mubr.bf16.mxu0 %v321
      %824 = vmatmul.mubr.bf16.gmra.mrb[0].mxu0 %v246
      %v825 = vpop.f32.mrb[0].mxu0
      %v826 = vadd.f32 0.0, %v825
      %v827 = vpop.f32.mrb[0].mxu0
      %v828 = vadd.f32 0.0, %v827
      %v829 = vpop.f32.mrb[0].mxu0
      %v830 = vadd.f32 0.0, %v829
      %v831 = vpop.f32.mrb[0].mxu0
      %v832 = vadd.f32 0.0, %v831
      %833 = vdwg.mxu0
      %834 = vmatprep.subr.bf16.mxu0 %v698
      %835 = vmatpush1.bf16.msra.mxu0 %v697
      %836 = vmatprep.subr.bf16.mxu0 %v700
      %837 = vmatpush1.bf16.msra.mxu0 %v699
      %838 = vmatprep.subr.bf16.mxu0 %v702
      %839 = vmatpush1.bf16.msra.mxu0 %v701
      %840 = vmatprep.subr.bf16.mxu0 %v704
      %841 = vmatpush1.bf16.msra.mxu0 %v703
      %842 = vmatprep.subr.bf16.mxu0 %v706
      %843 = vmatpush1.bf16.msra.mxu0 %v705
      %844 = vmatprep.subr.bf16.mxu0 %v708
      %845 = vmatpush1.bf16.msra.mxu0 %v707
      %846 = vmatprep.subr.bf16.mxu0 %v710
      %847 = vmatpush1.bf16.msra.mxu0 %v709
      %848 = vmatprep.subr.bf16.mxu0 %v712
      %849 = vmatpush1.bf16.msra.mxu0 %v711
      %850 = vmatprep.subr.bf16.mxu0 0
      %851 = vmatpush1.bf16.msra.mxu0 0
      %852 = vmatprep.subr.bf16.mxu0 0
      %853 = vmatpush1.bf16.msra.mxu0 0
      %854 = vmatprep.subr.bf16.mxu0 0
      %855 = vmatpush1.bf16.msra.mxu0 0
      %856 = vmatprep.subr.bf16.mxu0 0
      %857 = vmatpush1.bf16.msra.mxu0 0
      %858 = vmatprep.subr.bf16.mxu0 0
      %859 = vmatpush1.bf16.msra.mxu0 0
      %860 = vmatprep.subr.bf16.mxu0 0
      %861 = vmatpush1.bf16.msra.mxu0 0
      %862 = vmatprep.subr.bf16.mxu0 0
      %863 = vmatpush1.bf16.msra.mxu0 0
      %864 = vmatprep.subr.bf16.mxu0 0
      %865 = vmatpush1.bf16.msra.mxu0 0
      %866 = vmatprep.mubr.bf16.mxu0 0
      %867 = vmatmul.mubr.bf16.gmra.mrb[0].mxu0 %v355
      %v868 = vpop.f32.mrb[0].mxu0
      %v869 = vadd.f32 %v796, %v868
      %v870 = vpop.f32.mrb[0].mxu0
      %v871 = vadd.f32 %v798, %v870
      %v872 = vpop.f32.mrb[0].mxu0
      %v873 = vadd.f32 %v800, %v872
      %v874 = vpop.f32.mrb[0].mxu0
      %v875 = vadd.f32 %v802, %v874
      %876 = vmatprep.mubr.bf16.mxu0 0
      %877 = vmatmul.mubr.bf16.gmra.mrb[0].mxu0 %v358
      %v878 = vpop.f32.mrb[0].mxu0
      %v879 = vadd.f32 %v806, %v878
      %v880 = vpop.f32.mrb[0].mxu0
      %v881 = vadd.f32 %v808, %v880
      %v882 = vpop.f32.mrb[0].mxu0
      %v883 = vadd.f32 %v810, %v882
      %v884 = vpop.f32.mrb[0].mxu0
      %v885 = vadd.f32 %v812, %v884
      %886 = vmatprep.mubr.bf16.mxu0 0
      %887 = vmatmul.mubr.bf16.gmra.mrb[0].mxu0 %v361
      %v888 = vpop.f32.mrb[0].mxu0
      %v889 = vadd.f32 %v816, %v888
      %v890 = vpop.f32.mrb[0].mxu0
      %v891 = vadd.f32 %v818, %v890
      %v892 = vpop.f32.mrb[0].mxu0
      %v893 = vadd.f32 %v820, %v892
      %v894 = vpop.f32.mrb[0].mxu0
      %v895 = vadd.f32 %v822, %v894
      %896 = vmatprep.mubr.bf16.mxu0 0
      %897 = vmatmul.mubr.bf16.gmra.mrb[0].mxu0 %v364
      %v898 = vpop.f32.mrb[0].mxu0
      %v899 = vadd.f32 %v826, %v898
      %v900 = vpop.f32.mrb[0].mxu0
      %v901 = vadd.f32 %v828, %v900
      %v902 = vpop.f32.mrb[0].mxu0
      %v903 = vadd.f32 %v830, %v902
      %v904 = vpop.f32.mrb[0].mxu0
      %v905 = vadd.f32 %v832, %v904
      %906 = vdwg.mxu0
      %907 = vst [vmem:[#allocation2] sm:$0xff] %v869
      %908 = vst [vmem:[#allocation2 + $0x8] sm:$0xff] %v871
      %909 = vst [vmem:[#allocation2 + $0x10] sm:$0xff] %v873
      %910 = vst [vmem:[#allocation2 + $0x18] sm:$0xff] %v875
      %911 = vst [vmem:[#allocation2 + $0x20] sm:$0xff] %v879
      %912 = vst [vmem:[#allocation2 + $0x28] sm:$0xff] %v881
      %913 = vst [vmem:[#allocation2 + $0x30] sm:$0xff] %v883
      %914 = vst [vmem:[#allocation2 + $0x38] sm:$0xff] %v885
      %915 = vst [vmem:[#allocation2 + $0x40] sm:$0xff] %v889
      %916 = vst [vmem:[#allocation2 + $0x48] sm:$0xff] %v891
      %917 = vst [vmem:[#allocation2 + $0x50] sm:$0xff] %v893
      %918 = vst [vmem:[#allocation2 + $0x58] sm:$0xff] %v895
      %919 = vst [vmem:[#allocation2 + $0x60] sm:$0xff] %v899
      %920 = vst [vmem:[#allocation2 + $0x68] sm:$0xff] %v901
      %921 = vst [vmem:[#allocation2 + $0x70] sm:$0xff] %v903
      %922 = vst [vmem:[#allocation2 + $0x78] sm:$0xff] %v905
      %v923 = vld [vmem:[#allocation2] sm:$0xff]
      %v924 = vld [vmem:[#allocation2 + $0x8] sm:$0xff]
      %v925 = vld [vmem:[#allocation2 + $0x10] sm:$0xff]
      %v926 = vld [vmem:[#allocation2 + $0x18] sm:$0xff]
      %v927 = vld [vmem:[#allocation2 + $0x20] sm:$0xff]
      %v928 = vld [vmem:[#allocation2 + $0x28] sm:$0xff]
      %v929 = vld [vmem:[#allocation2 + $0x30] sm:$0xff]
      %v930 = vld [vmem:[#allocation2 + $0x38] sm:$0xff]
      %v931 = vld [vmem:[#allocation2 + $0x40] sm:$0xff]
      %v932 = vld [vmem:[#allocation2 + $0x48] sm:$0xff]
      %v933 = vld [vmem:[#allocation2 + $0x50] sm:$0xff]
      %v934 = vld [vmem:[#allocation2 + $0x58] sm:$0xff]
      %v935 = vld [vmem:[#allocation2 + $0x60] sm:$0xff]
      %v936 = vld [vmem:[#allocation2 + $0x68] sm:$0xff]
      %v937 = vld [vmem:[#allocation2 + $0x70] sm:$0xff]
      %v938 = vld [vmem:[#allocation2 + $0x78] sm:$0xff]
      %v987 = vunpack.c.l.b16 %v425
      %v988 = vunpack.c.h.b16 %v425
      %v989 = vunpack.c.l.b16 %v426
      %v990 = vunpack.c.h.b16 %v426
      %v991 = vunpack.c.l.b16 %v427
      %v992 = vunpack.c.h.b16 %v427
      %v993 = vunpack.c.l.b16 %v428
      %v994 = vunpack.c.h.b16 %v428
      %v995 = vunpack.c.l.b16 %v429
      %v996 = vunpack.c.h.b16 %v429
      %v997 = vunpack.c.l.b16 %v430
      %v998 = vunpack.c.h.b16 %v430
      %v999 = vunpack.c.l.b16 %v431
      %v1000 = vunpack.c.h.b16 %v431
      %v1001 = vunpack.c.l.b16 %v432
      %v1002 = vunpack.c.h.b16 %v432
      %v1003 = vunpack.c.l.b16 %v433
      %v1004 = vunpack.c.h.b16 %v433
      %v1005 = vunpack.c.l.b16 %v434
      %v1006 = vunpack.c.h.b16 %v434
      %v1007 = vunpack.c.l.b16 %v435
      %v1008 = vunpack.c.h.b16 %v435
      %v1009 = vunpack.c.l.b16 %v436
      %v1010 = vunpack.c.h.b16 %v436
      %v1011 = vunpack.c.l.b16 %v437
      %v1012 = vunpack.c.h.b16 %v437
      %v1013 = vunpack.c.l.b16 %v438
      %v1014 = vunpack.c.h.b16 %v438
      %v1015 = vunpack.c.l.b16 %v439
      %v1016 = vunpack.c.h.b16 %v439
      %v1017 = vunpack.c.l.b16 %v440
      %v1018 = vunpack.c.h.b16 %v440
      %v1019 = vunpack.c.l.b16 %v441
      %v1020 = vunpack.c.h.b16 %v441
      %v1021 = vunpack.c.l.b16 %v442
      %v1022 = vunpack.c.h.b16 %v442
      %v1023 = vunpack.c.l.b16 %v443
      %v1024 = vunpack.c.h.b16 %v443
      %v1025 = vunpack.c.l.b16 %v444
      %v1026 = vunpack.c.h.b16 %v444
      %v1027 = vunpack.c.l.b16 %v445
      %v1028 = vunpack.c.h.b16 %v445
      %v1029 = vunpack.c.l.b16 %v446
      %v1030 = vunpack.c.h.b16 %v446
      %v1031 = vunpack.c.l.b16 %v447
      %v1032 = vunpack.c.h.b16 %v447
      %v1033 = vunpack.c.l.b16 %v448
      %v1034 = vunpack.c.h.b16 %v448
      %v1035 = vunpack.c.l.b16 %v449
      %v1036 = vunpack.c.h.b16 %v449
      %v1037 = vunpack.c.l.b16 %v450
      %v1038 = vunpack.c.h.b16 %v450
      %v1039 = vunpack.c.l.b16 %v451
      %v1040 = vunpack.c.h.b16 %v451
      %v1041 = vunpack.c.l.b16 %v452
      %v1042 = vunpack.c.h.b16 %v452
      %v1043 = vunpack.c.l.b16 %v453
      %v1044 = vunpack.c.h.b16 %v453
      %v1045 = vunpack.c.l.b16 %v454
      %v1046 = vunpack.c.h.b16 %v454
      %v1047 = vunpack.c.l.b16 %v455
      %v1048 = vunpack.c.h.b16 %v455
      %v1049 = vunpack.c.l.b16 %v456
      %v1050 = vunpack.c.h.b16 %v456
      %v1051 = vunpack.c.l.b16 %v457
      %v1052 = vunpack.c.h.b16 %v457
      %v1053 = vunpack.c.l.b16 %v458
      %v1054 = vunpack.c.h.b16 %v458
      %v1055 = vunpack.c.l.b16 %v459
      %v1056 = vunpack.c.h.b16 %v459
      %v1057 = vunpack.c.l.b16 %v460
      %v1058 = vunpack.c.h.b16 %v460
      %v1059 = vunpack.c.l.b16 %v461
      %v1060 = vunpack.c.h.b16 %v461
      %v1061 = vunpack.c.l.b16 %v462
      %v1062 = vunpack.c.h.b16 %v462
      %v1063 = vunpack.c.l.b16 %v463
      %v1064 = vunpack.c.h.b16 %v463
      %v1065 = vunpack.c.l.b16 %v464
      %v1066 = vunpack.c.h.b16 %v464
      %v1067 = vunpack.c.l.b16 %v465
      %v1068 = vunpack.c.h.b16 %v465
      %v1069 = vunpack.c.l.b16 %v466
      %v1070 = vunpack.c.h.b16 %v466
      %v1071 = vunpack.c.l.b16 %v467
      %v1072 = vunpack.c.h.b16 %v467
      %v1073 = vunpack.c.l.b16 %v468
      %v1074 = vunpack.c.h.b16 %v468
      %v1075 = vunpack.c.l.b16 %v469
      %v1076 = vunpack.c.h.b16 %v469
      %v1077 = vunpack.c.l.b16 %v470
      %v1078 = vunpack.c.h.b16 %v470
      %v1079 = vunpack.c.l.b16 %v471
      %v1080 = vunpack.c.h.b16 %v471
      %v1081 = vunpack.c.l.b16 %v472
      %v1082 = vunpack.c.h.b16 %v472
      %v1083 = vpack.c.b16 %v989, %v987
      %v1084 = vpack.c.b16 %v990, %v988
      %v1085 = vpack.c.b16 %v993, %v991
      %v1086 = vpack.c.b16 %v994, %v992
      %v1087 = vpack.c.b16 %v997, %v995
      %v1088 = vpack.c.b16 %v998, %v996
      %v1089 = vpack.c.b16 %v1001, %v999
      %v1090 = vpack.c.b16 %v1002, %v1000
      %v1091 = vpack.c.b16 %v1005, %v1003
      %v1092 = vpack.c.b16 %v1006, %v1004
      %v1093 = vpack.c.b16 %v1009, %v1007
      %v1094 = vpack.c.b16 %v1010, %v1008
      %v1095 = vpack.c.b16 %v1013, %v1011
      %v1096 = vpack.c.b16 %v1014, %v1012
      %v1097 = vpack.c.b16 %v1017, %v1015
      %v1098 = vpack.c.b16 %v1018, %v1016
      %v1099 = vpack.c.b16 %v1021, %v1019
      %v1100 = vpack.c.b16 %v1022, %v1020
      %v1101 = vpack.c.b16 %v1025, %v1023
      %v1102 = vpack.c.b16 %v1026, %v1024
      %v1103 = vpack.c.b16 %v1029, %v1027
      %v1104 = vpack.c.b16 %v1030, %v1028
      %v1105 = vpack.c.b16 %v1033, %v1031
      %v1106 = vpack.c.b16 %v1034, %v1032
      %v1107 = vpack.c.b16 %v1037, %v1035
      %v1108 = vpack.c.b16 %v1038, %v1036
      %v1109 = vpack.c.b16 %v1041, %v1039
      %v1110 = vpack.c.b16 %v1042, %v1040
      %v1111 = vpack.c.b16 %v1045, %v1043
      %v1112 = vpack.c.b16 %v1046, %v1044
      %v1113 = vpack.c.b16 %v1049, %v1047
      %v1114 = vpack.c.b16 %v1050, %v1048
      %v1115 = vpack.c.b16 %v1053, %v1051
      %v1116 = vpack.c.b16 %v1054, %v1052
      %v1117 = vpack.c.b16 %v1057, %v1055
      %v1118 = vpack.c.b16 %v1058, %v1056
      %v1119 = vpack.c.b16 %v1061, %v1059
      %v1120 = vpack.c.b16 %v1062, %v1060
      %v1121 = vpack.c.b16 %v1065, %v1063
      %v1122 = vpack.c.b16 %v1066, %v1064
      %v1123 = vpack.c.b16 %v1069, %v1067
      %v1124 = vpack.c.b16 %v1070, %v1068
      %v1125 = vpack.c.b16 %v1073, %v1071
      %v1126 = vpack.c.b16 %v1074, %v1072
      %v1127 = vpack.c.b16 %v1077, %v1075
      %v1128 = vpack.c.b16 %v1078, %v1076
      %v1129 = vpack.c.b16 %v1081, %v1079
      %v1130 = vpack.c.b16 %v1082, %v1080
      %1179 = vmatprep.subr.bf16.mxu0 %v1084
      %1180 = vmatpush1.bf16.msra.mxu0 %v1083
      %1181 = vmatprep.subr.bf16.mxu0 %v1086
      %1182 = vmatpush1.bf16.msra.mxu0 %v1085
      %1183 = vmatprep.subr.bf16.mxu0 %v1088
      %1184 = vmatpush1.bf16.msra.mxu0 %v1087
      %1185 = vmatprep.subr.bf16.mxu0 %v1090
      %1186 = vmatpush1.bf16.msra.mxu0 %v1089
      %1187 = vmatprep.subr.bf16.mxu0 %v1092
      %1188 = vmatpush1.bf16.msra.mxu0 %v1091
      %1189 = vmatprep.subr.bf16.mxu0 %v1094
      %1190 = vmatpush1.bf16.msra.mxu0 %v1093
      %1191 = vmatprep.subr.bf16.mxu0 %v1096
      %1192 = vmatpush1.bf16.msra.mxu0 %v1095
      %1193 = vmatprep.subr.bf16.mxu0 %v1098
      %1194 = vmatpush1.bf16.msra.mxu0 %v1097
      %1195 = vmatprep.subr.bf16.mxu0 %v1100
      %1196 = vmatpush1.bf16.msra.mxu0 %v1099
      %1197 = vmatprep.subr.bf16.mxu0 %v1102
      %1198 = vmatpush1.bf16.msra.mxu0 %v1101
      %1199 = vmatprep.subr.bf16.mxu0 %v1104
      %1200 = vmatpush1.bf16.msra.mxu0 %v1103
      %1201 = vmatprep.subr.bf16.mxu0 %v1106
      %1202 = vmatpush1.bf16.msra.mxu0 %v1105
      %1203 = vmatprep.subr.bf16.mxu0 %v1108
      %1204 = vmatpush1.bf16.msra.mxu0 %v1107
      %1205 = vmatprep.subr.bf16.mxu0 %v1110
      %1206 = vmatpush1.bf16.msra.mxu0 %v1109
      %1207 = vmatprep.subr.bf16.mxu0 %v1112
      %1208 = vmatpush1.bf16.msra.mxu0 %v1111
      %1209 = vmatprep.subr.bf16.mxu0 %v1114
      %1210 = vmatpush1.bf16.msra.mxu0 %v1113
      %1211 = vmatprep.mubr.bf16.mxu0 %v297
      %1212 = vmatmul.mubr.bf16.gmra.mrb[0].mxu0 %v244
      %v1213 = vpop.f32.mrb[0].mxu0
      %v1214 = vadd.f32 0.0, %v1213
      %v1215 = vpop.f32.mrb[0].mxu0
      %v1216 = vadd.f32 0.0, %v1215
      %v1217 = vpop.f32.mrb[0].mxu0
      %v1218 = vadd.f32 0.0, %v1217
      %v1219 = vpop.f32.mrb[0].mxu0
      %v1220 = vadd.f32 0.0, %v1219
      %1221 = vmatprep.mubr.bf16.mxu0 %v309
      %1222 = vmatmul.mubr.bf16.gmra.mrb[0].mxu0 %v245
      %v1223 = vpop.f32.mrb[0].mxu0
      %v1224 = vadd.f32 0.0, %v1223
      %v1225 = vpop.f32.mrb[0].mxu0
      %v1226 = vadd.f32 0.0, %v1225
      %v1227 = vpop.f32.mrb[0].mxu0
      %v1228 = vadd.f32 0.0, %v1227
      %v1229 = vpop.f32.mrb[0].mxu0
      %v1230 = vadd.f32 0.0, %v1229
      %1231 = vmatprep.mubr.bf16.mxu0 %v321
      %1232 = vmatmul.mubr.bf16.gmra.mrb[0].mxu0 %v246
      %v1233 = vpop.f32.mrb[0].mxu0
      %v1234 = vadd.f32 0.0, %v1233
      %v1235 = vpop.f32.mrb[0].mxu0
      %v1236 = vadd.f32 0.0, %v1235
      %v1237 = vpop.f32.mrb[0].mxu0
      %v1238 = vadd.f32 0.0, %v1237
      %v1239 = vpop.f32.mrb[0].mxu0
      %v1240 = vadd.f32 0.0, %v1239
      %1241 = vmatprep.mubr.bf16.mxu0 %v333
      %1242 = vmatmul.mubr.bf16.gmra.mrb[0].mxu0 %v247
      %v1243 = vpop.f32.mrb[0].mxu0
      %v1244 = vadd.f32 0.0, %v1243
      %v1245 = vpop.f32.mrb[0].mxu0
      %v1246 = vadd.f32 0.0, %v1245
      %v1247 = vpop.f32.mrb[0].mxu0
      %v1248 = vadd.f32 0.0, %v1247
      %v1249 = vpop.f32.mrb[0].mxu0
      %v1250 = vadd.f32 0.0, %v1249
      %1251 = vdwg.mxu0
      %1252 = vmatprep.subr.bf16.mxu0 %v1116
      %1253 = vmatpush1.bf16.msra.mxu0 %v1115
      %1254 = vmatprep.subr.bf16.mxu0 %v1118
      %1255 = vmatpush1.bf16.msra.mxu0 %v1117
      %1256 = vmatprep.subr.bf16.mxu0 %v1120
      %1257 = vmatpush1.bf16.msra.mxu0 %v1119
      %1258 = vmatprep.subr.bf16.mxu0 %v1122
      %1259 = vmatpush1.bf16.msra.mxu0 %v1121
      %1260 = vmatprep.subr.bf16.mxu0 %v1124
      %1261 = vmatpush1.bf16.msra.mxu0 %v1123
      %1262 = vmatprep.subr.bf16.mxu0 %v1126
      %1263 = vmatpush1.bf16.msra.mxu0 %v1125
      %1264 = vmatprep.subr.bf16.mxu0 %v1128
      %1265 = vmatpush1.bf16.msra.mxu0 %v1127
      %1266 = vmatprep.subr.bf16.mxu0 %v1130
      %1267 = vmatpush1.bf16.msra.mxu0 %v1129
      %1268 = vmatprep.subr.bf16.mxu0 0
      %1269 = vmatpush1.bf16.msra.mxu0 0
      %1270 = vmatprep.subr.bf16.mxu0 0
      %1271 = vmatpush1.bf16.msra.mxu0 0
      %1272 = vmatprep.subr.bf16.mxu0 0
      %1273 = vmatpush1.bf16.msra.mxu0 0
      %1274 = vmatprep.subr.bf16.mxu0 0
      %1275 = vmatpush1.bf16.msra.mxu0 0
      %1276 = vmatprep.subr.bf16.mxu0 0
      %1277 = vmatpush1.bf16.msra.mxu0 0
      %1278 = vmatprep.subr.bf16.mxu0 0
      %1279 = vmatpush1.bf16.msra.mxu0 0
      %1280 = vmatprep.subr.bf16.mxu0 0
      %1281 = vmatpush1.bf16.msra.mxu0 0
      %1282 = vmatprep.subr.bf16.mxu0 0
      %1283 = vmatpush1.bf16.msra.mxu0 0
      %1284 = vmatprep.mubr.bf16.mxu0 0
      %1285 = vmatmul.mubr.bf16.gmra.mrb[0].mxu0 %v358
      %v1286 = vpop.f32.mrb[0].mxu0
      %v1287 = vadd.f32 %v1214, %v1286
      %v1288 = vpop.f32.mrb[0].mxu0
      %v1289 = vadd.f32 %v1216, %v1288
      %v1290 = vpop.f32.mrb[0].mxu0
      %v1291 = vadd.f32 %v1218, %v1290
      %v1292 = vpop.f32.mrb[0].mxu0
      %v1293 = vadd.f32 %v1220, %v1292
      %1294 = vmatprep.mubr.bf16.mxu0 0
      %1295 = vmatmul.mubr.bf16.gmra.mrb[0].mxu0 %v361
      %v1296 = vpop.f32.mrb[0].mxu0
      %v1297 = vadd.f32 %v1224, %v1296
      %v1298 = vpop.f32.mrb[0].mxu0
      %v1299 = vadd.f32 %v1226, %v1298
      %v1300 = vpop.f32.mrb[0].mxu0
      %v1301 = vadd.f32 %v1228, %v1300
      %v1302 = vpop.f32.mrb[0].mxu0
      %v1303 = vadd.f32 %v1230, %v1302
      %1304 = vmatprep.mubr.bf16.mxu0 0
      %1305 = vmatmul.mubr.bf16.gmra.mrb[0].mxu0 %v364
      %v1306 = vpop.f32.mrb[0].mxu0
      %v1307 = vadd.f32 %v1234, %v1306
      %v1308 = vpop.f32.mrb[0].mxu0
      %v1309 = vadd.f32 %v1236, %v1308
      %v1310 = vpop.f32.mrb[0].mxu0
      %v1311 = vadd.f32 %v1238, %v1310
      %v1312 = vpop.f32.mrb[0].mxu0
      %v1313 = vadd.f32 %v1240, %v1312
      %1314 = vmatprep.mubr.bf16.mxu0 0
      %1315 = vmatmul.mubr.bf16.gmra.mrb[0].mxu0 %v367
      %v1316 = vpop.f32.mrb[0].mxu0
      %v1317 = vadd.f32 %v1244, %v1316
      %v1318 = vpop.f32.mrb[0].mxu0
      %v1319 = vadd.f32 %v1246, %v1318
      %v1320 = vpop.f32.mrb[0].mxu0
      %v1321 = vadd.f32 %v1248, %v1320
      %v1322 = vpop.f32.mrb[0].mxu0
      %v1323 = vadd.f32 %v1250, %v1322
      %1324 = vdwg.mxu0
      %v1325 = vadd.f32 %v923, %v1287
      %v1326 = vadd.f32 %v924, %v1289
      %v1327 = vadd.f32 %v925, %v1291
      %v1328 = vadd.f32 %v926, %v1293
      %v1329 = vadd.f32 %v927, %v1297
      %v1330 = vadd.f32 %v928, %v1299
      %v1331 = vadd.f32 %v929, %v1301
      %v1332 = vadd.f32 %v930, %v1303
      %v1333 = vadd.f32 %v931, %v1307
      %v1334 = vadd.f32 %v932, %v1309
      %v1335 = vadd.f32 %v933, %v1311
      %v1336 = vadd.f32 %v934, %v1313
      %v1337 = vadd.f32 %v935, %v1317
      %v1338 = vadd.f32 %v936, %v1319
      %v1339 = vadd.f32 %v937, %v1321
      %v1340 = vadd.f32 %v938, %v1323
      %1341 = vst [vmem:[#allocation2] sm:$0xff] %v1325
      %1342 = vst [vmem:[#allocation2 + $0x8] sm:$0xff] %v1326
      %1343 = vst [vmem:[#allocation2 + $0x10] sm:$0xff] %v1327
      %1344 = vst [vmem:[#allocation2 + $0x18] sm:$0xff] %v1328
      %1345 = vst [vmem:[#allocation2 + $0x20] sm:$0xff] %v1329
      %1346 = vst [vmem:[#allocation2 + $0x28] sm:$0xff] %v1330
      %1347 = vst [vmem:[#allocation2 + $0x30] sm:$0xff] %v1331
      %1348 = vst [vmem:[#allocation2 + $0x38] sm:$0xff] %v1332
      %1349 = vst [vmem:[#allocation2 + $0x40] sm:$0xff] %v1333
      %1350 = vst [vmem:[#allocation2 + $0x48] sm:$0xff] %v1334
      %1351 = vst [vmem:[#allocation2 + $0x50] sm:$0xff] %v1335
      %1352 = vst [vmem:[#allocation2 + $0x58] sm:$0xff] %v1336
      %1353 = vst [vmem:[#allocation2 + $0x60] sm:$0xff] %v1337
      %1354 = vst [vmem:[#allocation2 + $0x68] sm:$0xff] %v1338
      %1355 = vst [vmem:[#allocation2 + $0x70] sm:$0xff] %v1339
      %1356 = vst [vmem:[#allocation2 + $0x78] sm:$0xff] %v1340
      %v1357 = vld [vmem:[#allocation2] sm:$0xff]
      %v1358 = vld [vmem:[#allocation2 + $0x8] sm:$0xff]
      %v1359 = vld [vmem:[#allocation2 + $0x10] sm:$0xff]
      %v1360 = vld [vmem:[#allocation2 + $0x18] sm:$0xff]
      %v1361 = vld [vmem:[#allocation2 + $0x20] sm:$0xff]
      %v1362 = vld [vmem:[#allocation2 + $0x28] sm:$0xff]
      %v1363 = vld [vmem:[#allocation2 + $0x30] sm:$0xff]
      %v1364 = vld [vmem:[#allocation2 + $0x38] sm:$0xff]
      %v1365 = vld [vmem:[#allocation2 + $0x40] sm:$0xff]
      %v1366 = vld [vmem:[#allocation2 + $0x48] sm:$0xff]
      %v1367 = vld [vmem:[#allocation2 + $0x50] sm:$0xff]
      %v1368 = vld [vmem:[#allocation2 + $0x58] sm:$0xff]
      %v1369 = vld [vmem:[#allocation2 + $0x60] sm:$0xff]
      %v1370 = vld [vmem:[#allocation2 + $0x68] sm:$0xff]
      %v1371 = vld [vmem:[#allocation2 + $0x70] sm:$0xff]
      %v1372 = vld [vmem:[#allocation2 + $0x78] sm:$0xff]
      %v1421 = vunpack.c.l.b16 %v473
      %v1422 = vunpack.c.h.b16 %v473
      %v1423 = vunpack.c.l.b16 %v474
      %v1424 = vunpack.c.h.b16 %v474
      %v1425 = vunpack.c.l.b16 %v475
      %v1426 = vunpack.c.h.b16 %v475
      %v1427 = vunpack.c.l.b16 %v476
      %v1428 = vunpack.c.h.b16 %v476
      %v1429 = vunpack.c.l.b16 %v477
      %v1430 = vunpack.c.h.b16 %v477
      %v1431 = vunpack.c.l.b16 %v478
      %v1432 = vunpack.c.h.b16 %v478
      %v1433 = vunpack.c.l.b16 %v479
      %v1434 = vunpack.c.h.b16 %v479
      %v1435 = vunpack.c.l.b16 %v480
      %v1436 = vunpack.c.h.b16 %v480
      %v1437 = vunpack.c.l.b16 %v481
      %v1438 = vunpack.c.h.b16 %v481
      %v1439 = vunpack.c.l.b16 %v482
      %v1440 = vunpack.c.h.b16 %v482
      %v1441 = vunpack.c.l.b16 %v483
      %v1442 = vunpack.c.h.b16 %v483
      %v1443 = vunpack.c.l.b16 %v484
      %v1444 = vunpack.c.h.b16 %v484
      %v1445 = vunpack.c.l.b16 %v485
      %v1446 = vunpack.c.h.b16 %v485
      %v1447 = vunpack.c.l.b16 %v486
      %v1448 = vunpack.c.h.b16 %v486
      %v1449 = vunpack.c.l.b16 %v487
      %v1450 = vunpack.c.h.b16 %v487
      %v1451 = vunpack.c.l.b16 %v488
      %v1452 = vunpack.c.h.b16 %v488
      %v1453 = vunpack.c.l.b16 %v489
      %v1454 = vunpack.c.h.b16 %v489
      %v1455 = vunpack.c.l.b16 %v490
      %v1456 = vunpack.c.h.b16 %v490
      %v1457 = vunpack.c.l.b16 %v491
      %v1458 = vunpack.c.h.b16 %v491
      %v1459 = vunpack.c.l.b16 %v492
      %v1460 = vunpack.c.h.b16 %v492
      %v1461 = vunpack.c.l.b16 %v493
      %v1462 = vunpack.c.h.b16 %v493
      %v1463 = vunpack.c.l.b16 %v494
      %v1464 = vunpack.c.h.b16 %v494
      %v1465 = vunpack.c.l.b16 %v495
      %v1466 = vunpack.c.h.b16 %v495
      %v1467 = vunpack.c.l.b16 %v496
      %v1468 = vunpack.c.h.b16 %v496
      %v1469 = vunpack.c.l.b16 %v497
      %v1470 = vunpack.c.h.b16 %v497
      %v1471 = vunpack.c.l.b16 %v498
      %v1472 = vunpack.c.h.b16 %v498
      %v1473 = vunpack.c.l.b16 %v499
      %v1474 = vunpack.c.h.b16 %v499
      %v1475 = vunpack.c.l.b16 %v500
      %v1476 = vunpack.c.h.b16 %v500
      %v1477 = vunpack.c.l.b16 %v501
      %v1478 = vunpack.c.h.b16 %v501
      %v1479 = vunpack.c.l.b16 %v502
      %v1480 = vunpack.c.h.b16 %v502
      %v1481 = vunpack.c.l.b16 %v503
      %v1482 = vunpack.c.h.b16 %v503
      %v1483 = vunpack.c.l.b16 %v504
      %v1484 = vunpack.c.h.b16 %v504
      %v1485 = vunpack.c.l.b16 %v505
      %v1486 = vunpack.c.h.b16 %v505
      %v1487 = vunpack.c.l.b16 %v506
      %v1488 = vunpack.c.h.b16 %v506
      %v1489 = vunpack.c.l.b16 %v507
      %v1490 = vunpack.c.h.b16 %v507
      %v1491 = vunpack.c.l.b16 %v508
      %v1492 = vunpack.c.h.b16 %v508
      %v1493 = vunpack.c.l.b16 %v509
      %v1494 = vunpack.c.h.b16 %v509
      %v1495 = vunpack.c.l.b16 %v510
      %v1496 = vunpack.c.h.b16 %v510
      %v1497 = vunpack.c.l.b16 %v511
      %v1498 = vunpack.c.h.b16 %v511
      %v1499 = vunpack.c.l.b16 %v512
      %v1500 = vunpack.c.h.b16 %v512
      %v1501 = vunpack.c.l.b16 %v513
      %v1502 = vunpack.c.h.b16 %v513
      %v1503 = vunpack.c.l.b16 %v514
      %v1504 = vunpack.c.h.b16 %v514
      %v1505 = vunpack.c.l.b16 %v515
      %v1506 = vunpack.c.h.b16 %v515
      %v1507 = vunpack.c.l.b16 %v516
      %v1508 = vunpack.c.h.b16 %v516
      %v1509 = vunpack.c.l.b16 %v517
      %v1510 = vunpack.c.h.b16 %v517
      %v1511 = vunpack.c.l.b16 %v518
      %v1512 = vunpack.c.h.b16 %v518
      %v1513 = vunpack.c.l.b16 %v519
      %v1514 = vunpack.c.h.b16 %v519
      %v1515 = vunpack.c.l.b16 %v520
      %v1516 = vunpack.c.h.b16 %v520
      %v1517 = vpack.c.b16 %v1423, %v1421
      %v1518 = vpack.c.b16 %v1424, %v1422
      %v1519 = vpack.c.b16 %v1427, %v1425
      %v1520 = vpack.c.b16 %v1428, %v1426
      %v1521 = vpack.c.b16 %v1431, %v1429
      %v1522 = vpack.c.b16 %v1432, %v1430
      %v1523 = vpack.c.b16 %v1435, %v1433
      %v1524 = vpack.c.b16 %v1436, %v1434
      %v1525 = vpack.c.b16 %v1439, %v1437
      %v1526 = vpack.c.b16 %v1440, %v1438
      %v1527 = vpack.c.b16 %v1443, %v1441
      %v1528 = vpack.c.b16 %v1444, %v1442
      %v1529 = vpack.c.b16 %v1447, %v1445
      %v1530 = vpack.c.b16 %v1448, %v1446
      %v1531 = vpack.c.b16 %v1451, %v1449
      %v1532 = vpack.c.b16 %v1452, %v1450
      %v1533 = vpack.c.b16 %v1455, %v1453
      %v1534 = vpack.c.b16 %v1456, %v1454
      %v1535 = vpack.c.b16 %v1459, %v1457
      %v1536 = vpack.c.b16 %v1460, %v1458
      %v1537 = vpack.c.b16 %v1463, %v1461
      %v1538 = vpack.c.b16 %v1464, %v1462
      %v1539 = vpack.c.b16 %v1467, %v1465
      %v1540 = vpack.c.b16 %v1468, %v1466
      %v1541 = vpack.c.b16 %v1471, %v1469
      %v1542 = vpack.c.b16 %v1472, %v1470
      %v1543 = vpack.c.b16 %v1475, %v1473
      %v1544 = vpack.c.b16 %v1476, %v1474
      %v1545 = vpack.c.b16 %v1479, %v1477
      %v1546 = vpack.c.b16 %v1480, %v1478
      %v1547 = vpack.c.b16 %v1483, %v1481
      %v1548 = vpack.c.b16 %v1484, %v1482
      %v1549 = vpack.c.b16 %v1487, %v1485
      %v1550 = vpack.c.b16 %v1488, %v1486
      %v1551 = vpack.c.b16 %v1491, %v1489
      %v1552 = vpack.c.b16 %v1492, %v1490
      %v1553 = vpack.c.b16 %v1495, %v1493
      %v1554 = vpack.c.b16 %v1496, %v1494
      %v1555 = vpack.c.b16 %v1499, %v1497
      %v1556 = vpack.c.b16 %v1500, %v1498
      %v1557 = vpack.c.b16 %v1503, %v1501
      %v1558 = vpack.c.b16 %v1504, %v1502
      %v1559 = vpack.c.b16 %v1507, %v1505
      %v1560 = vpack.c.b16 %v1508, %v1506
      %v1561 = vpack.c.b16 %v1511, %v1509
      %v1562 = vpack.c.b16 %v1512, %v1510
      %v1563 = vpack.c.b16 %v1515, %v1513
      %v1564 = vpack.c.b16 %v1516, %v1514
      %1613 = vmatprep.subr.bf16.mxu0 %v1518
      %1614 = vmatpush1.bf16.msra.mxu0 %v1517
      %1615 = vmatprep.subr.bf16.mxu0 %v1520
      %1616 = vmatpush1.bf16.msra.mxu0 %v1519
      %1617 = vmatprep.subr.bf16.mxu0 %v1522
      %1618 = vmatpush1.bf16.msra.mxu0 %v1521
      %1619 = vmatprep.subr.bf16.mxu0 %v1524
      %1620 = vmatpush1.bf16.msra.mxu0 %v1523
      %1621 = vmatprep.subr.bf16.mxu0 %v1526
      %1622 = vmatpush1.bf16.msra.mxu0 %v1525
      %1623 = vmatprep.subr.bf16.mxu0 %v1528
      %1624 = vmatpush1.bf16.msra.mxu0 %v1527
      %1625 = vmatprep.subr.bf16.mxu0 %v1530
      %1626 = vmatpush1.bf16.msra.mxu0 %v1529
      %1627 = vmatprep.subr.bf16.mxu0 %v1532
      %1628 = vmatpush1.bf16.msra.mxu0 %v1531
      %1629 = vmatprep.subr.bf16.mxu0 %v1534
      %1630 = vmatpush1.bf16.msra.mxu0 %v1533
      %1631 = vmatprep.subr.bf16.mxu0 %v1536
      %1632 = vmatpush1.bf16.msra.mxu0 %v1535
      %1633 = vmatprep.subr.bf16.mxu0 %v1538
      %1634 = vmatpush1.bf16.msra.mxu0 %v1537
      %1635 = vmatprep.subr.bf16.mxu0 %v1540
      %1636 = vmatpush1.bf16.msra.mxu0 %v1539
      %1637 = vmatprep.subr.bf16.mxu0 %v1542
      %1638 = vmatpush1.bf16.msra.mxu0 %v1541
      %1639 = vmatprep.subr.bf16.mxu0 %v1544
      %1640 = vmatpush1.bf16.msra.mxu0 %v1543
      %1641 = vmatprep.subr.bf16.mxu0 %v1546
      %1642 = vmatpush1.bf16.msra.mxu0 %v1545
      %1643 = vmatprep.subr.bf16.mxu0 %v1548
      %1644 = vmatpush1.bf16.msra.mxu0 %v1547
      %1645 = vmatprep.mubr.bf16.mxu0 %v309
      %1646 = vmatmul.mubr.bf16.gmra.mrb[0].mxu0 %v245
      %v1647 = vpop.f32.mrb[0].mxu0
      %v1648 = vadd.f32 0.0, %v1647
      %v1649 = vpop.f32.mrb[0].mxu0
      %v1650 = vadd.f32 0.0, %v1649
      %v1651 = vpop.f32.mrb[0].mxu0
      %v1652 = vadd.f32 0.0, %v1651
      %v1653 = vpop.f32.mrb[0].mxu0
      %v1654 = vadd.f32 0.0, %v1653
      %1655 = vmatprep.mubr.bf16.mxu0 %v321
      %1656 = vmatmul.mubr.bf16.gmra.mrb[0].mxu0 %v246
      %v1657 = vpop.f32.mrb[0].mxu0
      %v1658 = vadd.f32 0.0, %v1657
      %v1659 = vpop.f32.mrb[0].mxu0
      %v1660 = vadd.f32 0.0, %v1659
      %v1661 = vpop.f32.mrb[0].mxu0
      %v1662 = vadd.f32 0.0, %v1661
      %v1663 = vpop.f32.mrb[0].mxu0
      %v1664 = vadd.f32 0.0, %v1663
      %1665 = vmatprep.mubr.bf16.mxu0 %v333
      %1666 = vmatmul.mubr.bf16.gmra.mrb[0].mxu0 %v247
      %v1667 = vpop.f32.mrb[0].mxu0
      %v1668 = vadd.f32 0.0, %v1667
      %v1669 = vpop.f32.mrb[0].mxu0
      %v1670 = vadd.f32 0.0, %v1669
      %v1671 = vpop.f32.mrb[0].mxu0
      %v1672 = vadd.f32 0.0, %v1671
      %v1673 = vpop.f32.mrb[0].mxu0
      %v1674 = vadd.f32 0.0, %v1673
      %1675 = vmatprep.mubr.bf16.mxu0 %v345
      %1676 = vmatmul.mubr.bf16.gmra.mrb[0].mxu0 %v248
      %v1677 = vpop.f32.mrb[0].mxu0
      %v1678 = vadd.f32 0.0, %v1677
      %v1679 = vpop.f32.mrb[0].mxu0
      %v1680 = vadd.f32 0.0, %v1679
      %v1681 = vpop.f32.mrb[0].mxu0
      %v1682 = vadd.f32 0.0, %v1681
      %v1683 = vpop.f32.mrb[0].mxu0
      %v1684 = vadd.f32 0.0, %v1683
      %1685 = vdwg.mxu0
      %1686 = vmatprep.subr.bf16.mxu0 %v1550
      %1687 = vmatpush1.bf16.msra.mxu0 %v1549
      %1688 = vmatprep.subr.bf16.mxu0 %v1552
      %1689 = vmatpush1.bf16.msra.mxu0 %v1551
      %1690 = vmatprep.subr.bf16.mxu0 %v1554
      %1691 = vmatpush1.bf16.msra.mxu0 %v1553
      %1692 = vmatprep.subr.bf16.mxu0 %v1556
      %1693 = vmatpush1.bf16.msra.mxu0 %v1555
      %1694 = vmatprep.subr.bf16.mxu0 %v1558
      %1695 = vmatpush1.bf16.msra.mxu0 %v1557
      %1696 = vmatprep.subr.bf16.mxu0 %v1560
      %1697 = vmatpush1.bf16.msra.mxu0 %v1559
      %1698 = vmatprep.subr.bf16.mxu0 %v1562
      %1699 = vmatpush1.bf16.msra.mxu0 %v1561
      %1700 = vmatprep.subr.bf16.mxu0 %v1564
      %1701 = vmatpush1.bf16.msra.mxu0 %v1563
      %1702 = vmatprep.subr.bf16.mxu0 0
      %1703 = vmatpush1.bf16.msra.mxu0 0
      %1704 = vmatprep.subr.bf16.mxu0 0
      %1705 = vmatpush1.bf16.msra.mxu0 0
      %1706 = vmatprep.subr.bf16.mxu0 0
      %1707 = vmatpush1.bf16.msra.mxu0 0
      %1708 = vmatprep.subr.bf16.mxu0 0
      %1709 = vmatpush1.bf16.msra.mxu0 0
      %1710 = vmatprep.subr.bf16.mxu0 0
      %1711 = vmatpush1.bf16.msra.mxu0 0
      %1712 = vmatprep.subr.bf16.mxu0 0
      %1713 = vmatpush1.bf16.msra.mxu0 0
      %1714 = vmatprep.subr.bf16.mxu0 0
      %1715 = vmatpush1.bf16.msra.mxu0 0
      %1716 = vmatprep.subr.bf16.mxu0 0
      %1717 = vmatpush1.bf16.msra.mxu0 0
      %1718 = vmatprep.mubr.bf16.mxu0 0
      %1719 = vmatmul.mubr.bf16.gmra.mrb[0].mxu0 %v361
      %v1720 = vpop.f32.mrb[0].mxu0
      %v1721 = vadd.f32 %v1648, %v1720
      %v1722 = vpop.f32.mrb[0].mxu0
      %v1723 = vadd.f32 %v1650, %v1722
      %v1724 = vpop.f32.mrb[0].mxu0
      %v1725 = vadd.f32 %v1652, %v1724
      %v1726 = vpop.f32.mrb[0].mxu0
      %v1727 = vadd.f32 %v1654, %v1726
      %1728 = vmatprep.mubr.bf16.mxu0 0
      %1729 = vmatmul.mubr.bf16.gmra.mrb[0].mxu0 %v364
      %v1730 = vpop.f32.mrb[0].mxu0
      %v1731 = vadd.f32 %v1658, %v1730
      %v1732 = vpop.f32.mrb[0].mxu0
      %v1733 = vadd.f32 %v1660, %v1732
      %v1734 = vpop.f32.mrb[0].mxu0
      %v1735 = vadd.f32 %v1662, %v1734
      %v1736 = vpop.f32.mrb[0].mxu0
      %v1737 = vadd.f32 %v1664, %v1736
      %1738 = vmatprep.mubr.bf16.mxu0 0
      %1739 = vmatmul.mubr.bf16.gmra.mrb[0].mxu0 %v367
      %v1740 = vpop.f32.mrb[0].mxu0
      %v1741 = vadd.f32 %v1668, %v1740
      %v1742 = vpop.f32.mrb[0].mxu0
      %v1743 = vadd.f32 %v1670, %v1742
      %v1744 = vpop.f32.mrb[0].mxu0
      %v1745 = vadd.f32 %v1672, %v1744
      %v1746 = vpop.f32.mrb[0].mxu0
      %v1747 = vadd.f32 %v1674, %v1746
      %1748 = vmatprep.mubr.bf16.mxu0 0
      %1749 = vmatmul.mubr.bf16.gmra.mrb[0].mxu0 %v370
      %v1750 = vpop.f32.mrb[0].mxu0
      %v1751 = vadd.f32 %v1678, %v1750
      %v1752 = vpop.f32.mrb[0].mxu0
      %v1753 = vadd.f32 %v1680, %v1752
      %v1754 = vpop.f32.mrb[0].mxu0
      %v1755 = vadd.f32 %v1682, %v1754
      %v1756 = vpop.f32.mrb[0].mxu0
      %v1757 = vadd.f32 %v1684, %v1756
      %1758 = vdwg.mxu0
      %v1759 = vadd.f32 %v1357, %v1721
      %v1760 = vadd.f32 %v1358, %v1723
      %v1761 = vadd.f32 %v1359, %v1725
      %v1762 = vadd.f32 %v1360, %v1727
      %v1763 = vadd.f32 %v1361, %v1731
      %v1764 = vadd.f32 %v1362, %v1733
      %v1765 = vadd.f32 %v1363, %v1735
      %v1766 = vadd.f32 %v1364, %v1737
      %v1767 = vadd.f32 %v1365, %v1741
      %v1768 = vadd.f32 %v1366, %v1743
      %v1769 = vadd.f32 %v1367, %v1745
      %v1770 = vadd.f32 %v1368, %v1747
      %v1771 = vadd.f32 %v1369, %v1751
      %v1772 = vadd.f32 %v1370, %v1753
      %v1773 = vadd.f32 %v1371, %v1755
      %v1774 = vadd.f32 %v1372, %v1757
      %1775 = vst [vmem:[#allocation2] sm:$0xff] %v1759
      %1776 = vst [vmem:[#allocation2 + $0x8] sm:$0xff] %v1760
      %1777 = vst [vmem:[#allocation2 + $0x10] sm:$0xff] %v1761
      %1778 = vst [vmem:[#allocation2 + $0x18] sm:$0xff] %v1762
      %1779 = vst [vmem:[#allocation2 + $0x20] sm:$0xff] %v1763
      %1780 = vst [vmem:[#allocation2 + $0x28] sm:$0xff] %v1764
      %1781 = vst [vmem:[#allocation2 + $0x30] sm:$0xff] %v1765
      %1782 = vst [vmem:[#allocation2 + $0x38] sm:$0xff] %v1766
      %1783 = vst [vmem:[#allocation2 + $0x40] sm:$0xff] %v1767
      %1784 = vst [vmem:[#allocation2 + $0x48] sm:$0xff] %v1768
      %1785 = vst [vmem:[#allocation2 + $0x50] sm:$0xff] %v1769
      %1786 = vst [vmem:[#allocation2 + $0x58] sm:$0xff] %v1770
      %1787 = vst [vmem:[#allocation2 + $0x60] sm:$0xff] %v1771
      %1788 = vst [vmem:[#allocation2 + $0x68] sm:$0xff] %v1772
      %1789 = vst [vmem:[#allocation2 + $0x70] sm:$0xff] %v1773
      %1790 = vst [vmem:[#allocation2 + $0x78] sm:$0xff] %v1774
      %v1791 = vld [vmem:[#allocation2] sm:$0xff]
      %v1792 = vld [vmem:[#allocation2 + $0x8] sm:$0xff]
      %v1793 = vld [vmem:[#allocation2 + $0x10] sm:$0xff]
      %v1794 = vld [vmem:[#allocation2 + $0x18] sm:$0xff]
      %v1795 = vld [vmem:[#allocation2 + $0x20] sm:$0xff]
      %v1796 = vld [vmem:[#allocation2 + $0x28] sm:$0xff]
      %v1797 = vld [vmem:[#allocation2 + $0x30] sm:$0xff]
      %v1798 = vld [vmem:[#allocation2 + $0x38] sm:$0xff]
      %v1799 = vld [vmem:[#allocation2 + $0x40] sm:$0xff]
      %v1800 = vld [vmem:[#allocation2 + $0x48] sm:$0xff]
      %v1801 = vld [vmem:[#allocation2 + $0x50] sm:$0xff]
      %v1802 = vld [vmem:[#allocation2 + $0x58] sm:$0xff]
      %v1803 = vld [vmem:[#allocation2 + $0x60] sm:$0xff]
      %v1804 = vld [vmem:[#allocation2 + $0x68] sm:$0xff]
      %v1805 = vld [vmem:[#allocation2 + $0x70] sm:$0xff]
      %v1806 = vld [vmem:[#allocation2 + $0x78] sm:$0xff]
      %v1807 = vld [vmem:[%s2] sm:$0x3]
      %v1809 = vlaneseq
      %v1810 = vshrl.u32 %v1809, 7
      %v1811 = vsub.s32 0, %v1810
      %v1812 = vrot.slane %v1807, %v1811
      %v1813 = vlaneseq
      %v1814 = vshrl.u32 %v1813, 7
      %v1815 = vsub.s32 1, %v1814
      %v1816 = vrot.slane %v1807, %v1815
      %v1819 = vadd.f32 %v1791, %v1812
      %v1820 = vadd.f32 %v1792, %v1816
      %v1821 = vadd.f32 %v1793, %v1812
      %v1822 = vadd.f32 %v1794, %v1816
      %v1823 = vadd.f32 %v1795, %v1812
      %v1824 = vadd.f32 %v1796, %v1816
      %v1825 = vadd.f32 %v1797, %v1812
      %v1826 = vadd.f32 %v1798, %v1816
      %v1827 = vadd.f32 %v1799, %v1812
      %v1828 = vadd.f32 %v1800, %v1816
      %v1829 = vadd.f32 %v1801, %v1812
      %v1830 = vadd.f32 %v1802, %v1816
      %v1831 = vadd.f32 %v1803, %v1812
      %v1832 = vadd.f32 %v1804, %v1816
      %v1833 = vadd.f32 %v1805, %v1812
      %v1834 = vadd.f32 %v1806, %v1816
      %v1835 = vmax.f32 %v1819, 0.0
      %v1836 = vmax.f32 %v1820, 0.0
      %v1837 = vmax.f32 %v1821, 0.0
      %v1838 = vmax.f32 %v1822, 0.0
      %v1839 = vmax.f32 %v1823, 0.0
      %v1840 = vmax.f32 %v1824, 0.0
      %v1841 = vmax.f32 %v1825, 0.0
      %v1842 = vmax.f32 %v1826, 0.0
      %v1843 = vmax.f32 %v1827, 0.0
      %v1844 = vmax.f32 %v1828, 0.0
      %v1845 = vmax.f32 %v1829, 0.0
      %v1846 = vmax.f32 %v1830, 0.0
      %v1847 = vmax.f32 %v1831, 0.0
      %v1848 = vmax.f32 %v1832, 0.0
      %v1849 = vmax.f32 %v1833, 0.0
      %v1850 = vmax.f32 %v1834, 0.0
      %v1851 = vpack.c.bf16 %v1837, %v1835
      %v1852 = vpack.c.bf16 %v1838, %v1836
      %v1853 = vpack.c.bf16 %v1841, %v1839
      %v1854 = vpack.c.bf16 %v1842, %v1840
      %v1855 = vpack.c.bf16 %v1845, %v1843
      %v1856 = vpack.c.bf16 %v1846, %v1844
      %v1857 = vpack.c.bf16 %v1849, %v1847
      %v1858 = vpack.c.bf16 %v1850, %v1848
      %v1867 = vunpack.c.l.b16 %v1851
      %v1868 = vunpack.c.l.b16 %v1852
      %v1869 = vunpack.c.h.b16 %v1851
      %v1870 = vunpack.c.h.b16 %v1852
      %v1871 = vunpack.c.l.b16 %v1853
      %v1872 = vunpack.c.l.b16 %v1854
      %v1873 = vunpack.c.h.b16 %v1853
      %v1874 = vunpack.c.h.b16 %v1854
      %v1875 = vunpack.c.l.b16 %v1855
      %v1876 = vunpack.c.l.b16 %v1856
      %v1877 = vunpack.c.h.b16 %v1855
      %v1878 = vunpack.c.h.b16 %v1856
      %v1879 = vunpack.c.l.b16 %v1857
      %v1880 = vunpack.c.l.b16 %v1858
      %v1881 = vunpack.c.h.b16 %v1857
      %v1882 = vunpack.c.h.b16 %v1858
      %v1883 = vpack.c.b16 %v1868, %v1867
      %v1884 = vpack.c.b16 %v1870, %v1869
      %v1885 = vpack.c.b16 %v1872, %v1871
      %v1886 = vpack.c.b16 %v1874, %v1873
      %v1887 = vpack.c.b16 %v1876, %v1875
      %v1888 = vpack.c.b16 %v1878, %v1877
      %v1889 = vpack.c.b16 %v1880, %v1879
      %v1890 = vpack.c.b16 %v1882, %v1881
      %1899 = vst [vmem:[%s194] sm:$0xff] %v1883
      %1900 = vst [vmem:[%s194 + $0x8] sm:$0xff] %v1884
      %1901 = vst [vmem:[%s194 + $0x10] sm:$0xff] %v1885
      %1902 = vst [vmem:[%s194 + $0x18] sm:$0xff] %v1886
      %1903 = vst [vmem:[%s194 + $0x20] sm:$0xff] %v1887
      %1904 = vst [vmem:[%s194 + $0x28] sm:$0xff] %v1888
      %1905 = vst [vmem:[%s194 + $0x30] sm:$0xff] %v1889
      %1906 = vst [vmem:[%s194 + $0x38] sm:$0xff] %v1890
      %s1907 = smul.u32 4, %s19
      %p1908 = scmp.lt.s32.totalorder %s18, 1
      %s1909 = scalar_select %p1908, %s18, 1
      %p1910 = scmp.lt.s32.totalorder %s1907, 15
      %s1911 = scalar_select %p1910, %s1907, 15
      %s1912 = smul.addr %s1911, 4
      %s1913 = smul.addr %s1909, 64
      %s1914 = sadd.s32 %s1912, %s1913
      %s1915 = smul.addr %s1914, 4
      %s1916 = scalar_lea.vmem %s3, %s1915
      // Predicated region
      $region33: #{inception_a.4} parent=31 // pred_check
        %p1917 = pneg %p114
      $region34: #{inception_a.4} parent=31 // pred_check_branch
        %1919 = sbr.rel (%p1917) target = $region36
      $region35: #{inception_a.4} parent=31 // pred_region
        %s1920 = smul.u32 4, %s19
      $region36: #{inception_a.4} parent=31 // pred_fallthru
        _
    $region32: #{inception_a.4} parent=5 // pred_fallthru
      _
    %p1921 = scmp.le.s32.totalorder 2, %s9
    // Predicated region
    $region37: #{inception_a.4} parent=5 // pred_check
      %p1922 = pneg %p1921
    $region38: #{inception_a.4} parent=5 // pred_check_branch
      %1924 = sbr.rel (%p1922) target = $region40
    $region39: #{inception_a.4} parent=5 // pred_region
      %s1925 = ssub.s32 %s9, 2
      // Predicated region
      $region41: #{inception_a.4} parent=39 // pred_check
        %p1926 = pneg %p120
      $region42: #{inception_a.4} parent=39 // pred_check_branch
        %1928 = sbr.rel (%p1926) target = $region44
      $region43: #{inception_a.4} parent=39 // pred_region
        %s1929 = smul.u32 4, %s21
        %p1930 = scmp.lt.s32.totalorder %s20, 1
        %s1931 = scalar_select %p1930, %s20, 1
        %p1932 = scmp.lt.s32.totalorder %s1929, 15
        %s1933 = scalar_select %p1932, %s1929, 15
        %s1934 = smul.addr %s1933, 4
        %s1935 = smul.addr %s1931, 64
        %s1936 = sadd.s32 %s1934, %s1935
        %s1937 = smul.addr %s1936, 4
        %s1938 = scalar_lea.vmem %s3, %s1937
      $region44: #{inception_a.4} parent=39 // pred_fallthru
        _
    $region40: #{inception_a.4} parent=5 // pred_fallthru
      _
  $region6: #{inception_a.4} parent=0 // loop_footer
    %s13 = sadd.s32 1, %s9
  $region7: #{inception_a.4} parent=0 // loop_footer_branch
    %8 = sbr.rel target = $region3
  $region8: #{inception_a.4} parent=0 // loop_exit
    _

// kernel: inception_a.5
$region0: #{inception_a.5}
  #allocation0 [shape = 'u32[]', space=smem, size = 0x4, offset = 0x4, fixed_abs, tag = 'smem constant byte address 0x4 - core index']
  #allocation1 [shape = 'u32[144,128]{1,0:T(1,128)}', space=vmem, size = 0x12000, scoped, tag = 'internal scratch']
  #allocation2 [shape = 'f32[64,128]{1,0:T(8,128)}', space=vmem, size = 0x8000, scoped, tag = 'scratch operand']
  %s0 = inlined_call_operand.vmem [shape: bf16[2,18,18,128], index: 0, kind: input, shape index: {}]
  %s1 = inlined_call_operand.vmem [shape: bf16[3,384,128], index: 1, kind: input, shape index: {}]
  %s2 = inlined_call_operand.vmem [shape: f32[1,128], index: 2, kind: input, shape index: {}]
  %s3 = inlined_call_operand.vmem [shape: bf16[2,16,16,128], index: 3, kind: output, shape index: {}]
  %s4 = sld [smem:[#allocation0]]
  $region45: #{inception_a.5} parent=0
    _
  %s6 = ssub.s32 1, %s4
  %s7 = scalar_select 0, %s6, %s4
  loop: start=0, step=1, limit=10
  $region2: #{inception_a.5} parent=0 // loop_pre_header
    _
  $region3: #{inception_a.5} parent=0 // loop_header
    %s9 = sphi 0, %s13
    %p10 = scmp.ge.s32.totalorder %s9, 10
    %s16 = sphi 0, %s28
    %s17 = sphi 0, %s24
    %s18 = sphi 0, %s16
    %s19 = sphi 0, %s17
    %s20 = sphi 0, %s18
    %s21 = sphi 0, %s19
    %s31 = sphi 0, %s33
    %s34 = sphi 0, %s31
    %s35 = sphi 0, %s34
    %s51 = sphi 0, %s35
    %s55 = sphi 0, %s55
    %s57 = sphi 0, %s55
    %s58 = sphi 0, %s57
    %s72 = sphi 0, %s58
    %s76 = sphi 0, %s76
    %s78 = sphi 0, %s76
    %s79 = sphi 0, %s78
    %s93 = sphi 0, %s79
    %s101 = sphi 0, %s103
    %s104 = sphi 0, %s101
    %s105 = sphi 0, %s104
    %s121 = sphi 0, %s105
  $region4: #{inception_a.5} parent=0 // loop_header_branch
    %12 = sbr.rel (%p10) target = $region8
  $region5: #{inception_a.5} parent=0 // loop_body
    %s14 = ssub.s32 %s9, 1
    %s15 = ssub.s32 %s9, 2
    %s22 = sadd.s32 1, %s17
    %p23 = scmp.ge.s32.totalorder %s22, 4
    %s24 = scalar_select %p23, 0, %s22
    %s25 = sadd.s32 1, %s16
    %s26 = scalar_select %p23, %s25, %s16
    %p27 = scmp.ge.s32.totalorder %s26, 2
    %s28 = scalar_select %p27, 0, %s26
    %s29 = ssub.s32 %s16, %s28
    %p30 = scmp.eq.s32.totalorder %s29, 0
    %s32 = sadd.s32 %s31, 1
    %s33 = scalar_select %p30, %s31, %s32
    %p36 = pneg %p30
    %p37 = scmp.eq.s32.totalorder %s9, 7
    %p38 = por %p36, %p37
    %p39 = scmp.ne.s32.totalorder %s31, %s34
    %p40 = scmp.eq.s32.totalorder %s9, 0
    %p41 = por %p39, %p40
    %p42 = scmp.ne.s32.totalorder %s31, %s34
    %p43 = scmp.eq.s32.totalorder %s14, 7
    %p44 = por %p42, %p43
    %p45 = scmp.ne.s32.totalorder %s34, %s35
    %p46 = scmp.eq.s32.totalorder %s14, 0
    %p47 = por %p45, %p46
    %p48 = scmp.ne.s32.totalorder %s34, %s35
    %p49 = scmp.eq.s32.totalorder %s15, 7
    %p50 = por %p48, %p49
    %p52 = scmp.ne.s32.totalorder %s35, %s51
    %p53 = scmp.eq.s32.totalorder %s15, 0
    %p54 = por %p52, %p53
    %s56 = sadd.s32 %s55, 1
    %p59 = scmp.eq.s32.totalorder %s9, 7
    %p60 = scmp.ne.s32.totalorder %s55, %s57
    %p61 = scmp.eq.s32.totalorder %s9, 0
    %p62 = por %p60, %p61
    %p63 = scmp.ne.s32.totalorder %s55, %s57
    %p64 = scmp.eq.s32.totalorder %s14, 7
    %p65 = por %p63, %p64
    %p66 = scmp.ne.s32.totalorder %s57, %s58
    %p67 = scmp.eq.s32.totalorder %s14, 0
    %p68 = por %p66, %p67
    %p69 = scmp.ne.s32.totalorder %s57, %s58
    %p70 = scmp.eq.s32.totalorder %s15, 7
    %p71 = por %p69, %p70
    %p73 = scmp.ne.s32.totalorder %s58, %s72
    %p74 = scmp.eq.s32.totalorder %s15, 0
    %p75 = por %p73, %p74
    %s77 = sadd.s32 %s76, 1
    %p80 = scmp.eq.s32.totalorder %s9, 7
    %p81 = scmp.ne.s32.totalorder %s76, %s78
    %p82 = scmp.eq.s32.totalorder %s9, 0
    %p83 = por %p81, %p82
    %p84 = scmp.ne.s32.totalorder %s76, %s78
    %p85 = scmp.eq.s32.totalorder %s14, 7
    %p86 = por %p84, %p85
    %p87 = scmp.ne.s32.totalorder %s78, %s79
    %p88 = scmp.eq.s32.totalorder %s14, 0
    %p89 = por %p87, %p88
    %p90 = scmp.ne.s32.totalorder %s78, %s79
    %p91 = scmp.eq.s32.totalorder %s15, 7
    %p92 = por %p90, %p91
    %p94 = scmp.ne.s32.totalorder %s79, %s93
    %p95 = scmp.eq.s32.totalorder %s15, 0
    %p96 = por %p94, %p95
    %s97 = ssub.s32 %s16, %s28
    %s98 = ssub.s32 %s17, %s24
    %s99 = sor.u32 %s97, %s98
    %p100 = scmp.eq.s32.totalorder %s99, 0
    %s102 = sadd.s32 %s101, 1
    %s103 = scalar_select %p100, %s101, %s102
    %p106 = pneg %p100
    %p107 = scmp.eq.s32.totalorder %s9, 7
    %p108 = por %p106, %p107
    %p109 = scmp.ne.s32.totalorder %s101, %s104
    %p110 = scmp.eq.s32.totalorder %s9, 0
    %p111 = por %p109, %p110
    %p112 = scmp.ne.s32.totalorder %s101, %s104
    %p113 = scmp.eq.s32.totalorder %s14, 7
    %p114 = por %p112, %p113
    %p115 = scmp.ne.s32.totalorder %s104, %s105
    %p116 = scmp.eq.s32.totalorder %s14, 0
    %p117 = por %p115, %p116
    %p118 = scmp.ne.s32.totalorder %s104, %s105
    %p119 = scmp.eq.s32.totalorder %s15, 7
    %p120 = por %p118, %p119
    %p122 = scmp.ne.s32.totalorder %s105, %s121
    %p123 = scmp.eq.s32.totalorder %s15, 0
    %p124 = por %p122, %p123
    %p125 = scmp.le.s32.totalorder 1, %s9
    %p126 = scmp.lt.s32.totalorder %s9, 9
    %p127 = pnand %p125, %p126
    %p128 = pneg %p127
    // Predicated region
    $region9: #{inception_a.5} parent=5 // pred_check
      _
    $region10: #{inception_a.5} parent=5 // pred_check_branch
      %130 = sbr.rel (%p127) target = $region12
    $region11: #{inception_a.5} parent=5 // pred_region
      %s131 = ssub.s32 %s9, 1
      // Predicated region
      $region13: #{inception_a.5} parent=11 // pred_check
        %p132 = pneg %p68
      $region14: #{inception_a.5} parent=11 // pred_check_branch
        %134 = sbr.rel (%p132) target = $region16
      $region15: #{inception_a.5} parent=11 // pred_region
        _
      $region16: #{inception_a.5} parent=11 // pred_fallthru
        _
      // Predicated region
      $region17: #{inception_a.5} parent=11 // pred_check
        %p135 = pneg %p89
      $region18: #{inception_a.5} parent=11 // pred_check_branch
        %137 = sbr.rel (%p135) target = $region20
      $region19: #{inception_a.5} parent=11 // pred_region
        _
      $region20: #{inception_a.5} parent=11 // pred_fallthru
        _
    $region12: #{inception_a.5} parent=5 // pred_fallthru
      _
    %p138 = scmp.lt.s32.totalorder %s9, 8
    // Predicated region
    $region21: #{inception_a.5} parent=5 // pred_check
      %p139 = pneg %p138
    $region22: #{inception_a.5} parent=5 // pred_check_branch
      %141 = sbr.rel (%p139) target = $region24
    $region23: #{inception_a.5} parent=5 // pred_region
      // Predicated region
      $region25: #{inception_a.5} parent=23 // pred_check
        %p142 = pneg %p41
      $region26: #{inception_a.5} parent=23 // pred_check_branch
        %144 = sbr.rel (%p142) target = $region28
      $region27: #{inception_a.5} parent=23 // pred_region
        %p145 = scmp.lt.s32.totalorder %s16, 1
        %s146 = scalar_select %p145, %s16, 1
        %s147 = smul.addr %s146, 54
        %s148 = smul.addr %s147, 4
        %s149 = scalar_lea.vmem %s0, %s148
      $region28: #{inception_a.5} parent=23 // pred_fallthru
        _
    $region24: #{inception_a.5} parent=5 // pred_fallthru
      _
    %p150 = scmp.le.s32.totalorder 1, %s9
    %p151 = scmp.lt.s32.totalorder %s9, 9
    %p152 = pnand %p150, %p151
    %p153 = pneg %p152
    // Predicated region
    $region29: #{inception_a.5} parent=5 // pred_check
      _
    $region30: #{inception_a.5} parent=5 // pred_check_branch
      %155 = sbr.rel (%p152) target = $region32
    $region31: #{inception_a.5} parent=5 // pred_region
      %s156 = ssub.s32 %s9, 1
      %p157 = scmp.lt.s32.totalorder %s18, 1
      %s158 = scalar_select %p157, %s18, 1
      %s159 = smul.addr %s158, 54
      %s160 = smul.addr %s159, 4
      %s161 = scalar_lea.vmem %s0, %s160
      %p162 = pneg %p47
      %p163 = pneg %p44
      %p164 = pneg %p68
      %p165 = pneg %p65
      %p166 = pneg %p89
      %p167 = pneg %p86
      %p168 = pneg %p117
      %p169 = pneg %p114
      %s170 = smul.u32 4, %s19
      %p171 = scmp.lt.s32.totalorder %s18, 1
      %s172 = scalar_select %p171, %s18, 1
      %p173 = scmp.lt.s32.totalorder %s170, 15
      %s174 = scalar_select %p173, %s170, 15
      %s175 = smul.addr %s174, 2
      %s176 = smul.addr %s172, 32
      %s177 = sadd.s32 %s175, %s176
      %s178 = smul.addr %s177, 4
      %s179 = scalar_lea.vmem %s3, %s178
      %p180 = scmp.lt.s32.totalorder %s18, 1
      %s181 = scalar_select %p180, %s18, 1
      %s182 = smul.addr %s181, 54
      %s183 = smul.addr %s182, 4
      %s184 = scalar_lea.vmem %s0, %s183
      %s185 = smul.u32 4, %s19
      %p186 = scmp.lt.s32.totalorder %s18, 1
      %s187 = scalar_select %p186, %s18, 1
      %p188 = scmp.lt.s32.totalorder %s185, 15
      %s189 = scalar_select %p188, %s185, 15
      %s190 = smul.addr %s189, 2
      %s191 = smul.addr %s187, 32
      %s192 = sadd.s32 %s190, %s191
      %s193 = smul.addr %s192, 4
      %s194 = scalar_lea.vmem %s3, %s193
      %s195 = smul.u32 4, %s19
      %s197 = smul.u32 %s19, 4
      %s198 = smul.u32 %s197, 3
      %s199 = smul.addr %s198, 4
      %s200 = scalar_lea.vmem %s184, %s199
      %v201 = vld [vmem:[%s200] sm:$0xf]
      %v202 = vld [vmem:[%s200 + $0x4] sm:$0xf]
      %v203 = vld [vmem:[%s200 + $0x8] sm:$0x1]
      %v204 = vld [vmem:[%s200 + $0xc] sm:$0xf]
      %v205 = vld [vmem:[%s200 + $0x10] sm:$0xf]
      %v206 = vld [vmem:[%s200 + $0x14] sm:$0x1]
      %v207 = vld [vmem:[%s200 + $0x18] sm:$0xf]
      %v208 = vld [vmem:[%s200 + $0x1c] sm:$0xf]
      %v209 = vld [vmem:[%s200 + $0x20] sm:$0x1]
      %v210 = vld [vmem:[%s200 + $0x24] sm:$0xf]
      %v211 = vld [vmem:[%s200 + $0x28] sm:$0xf]
      %v212 = vld [vmem:[%s200 + $0x2c] sm:$0x1]
      %v213 = vld [vmem:[%s200 + $0x30] sm:$0xf]
      %v214 = vld [vmem:[%s200 + $0x34] sm:$0xf]
      %v215 = vld [vmem:[%s200 + $0x38] sm:$0x1]
      %v216 = vld [vmem:[%s200 + $0x3c] sm:$0xf]
      %v217 = vld [vmem:[%s200 + $0x40] sm:$0xf]
      %v218 = vld [vmem:[%s200 + $0x44] sm:$0x1]
      %v231 = vunpack.c.l.b16 %v201
      %v232 = vunpack.c.l.b16 %v202
      %v233 = vunpack.c.l.b16 %v204
      %v234 = vunpack.c.l.b16 %v205
      %v235 = vunpack.c.l.b16 %v207
      %v236 = vunpack.c.l.b16 %v208
      %v237 = vunpack.c.l.b16 %v210
      %v238 = vunpack.c.l.b16 %v211
      %v239 = vunpack.c.l.b16 %v213
      %v240 = vunpack.c.l.b16 %v214
      %v241 = vunpack.c.l.b16 %v216
      %v242 = vunpack.c.l.b16 %v217
      %v243 = vpack.c.b16 %v232, %v231
      %v244 = vpack.c.b16 %v234, %v233
      %v245 = vpack.c.b16 %v236, %v235
      %v246 = vpack.c.b16 %v238, %v237
      %v247 = vpack.c.b16 %v240, %v239
      %v248 = vpack.c.b16 %v242, %v241
      %v261 = vunpack.c.l.b16 %v203
      %v262 = vunpack.c.l.b16 %v206
      %v263 = vunpack.c.l.b16 %v209
      %v264 = vunpack.c.l.b16 %v212
      %v265 = vunpack.c.l.b16 %v215
      %v266 = vunpack.c.l.b16 %v218
      %v267 = vpack.c.b16 %v261, %v261
      %v268 = vpack.c.b16 %v262, %v262
      %v269 = vpack.c.b16 %v263, %v263
      %v270 = vpack.c.b16 %v264, %v264
      %v271 = vpack.c.b16 %v265, %v265
      %v272 = vpack.c.b16 %v266, %v266
      %vm273 = vsmask.f32 7424
      %v275 = vshrl.u32 %v243, 16
      %v277 = vshll.u32 %v243, 16
      %v279 = vrot.slane %v277, 1
      %v280 = vor.u32 %v275, %v279
      %v282 = vshll.u32 %v267, 16
      %v284 = vrot.slane %v282, 1
      %v285 = vsel %vm273, %v280, %v284
      %v287 = vshrl.u32 %v244, 16
      %v289 = vshll.u32 %v244, 16
      %v291 = vrot.slane %v289, 1
      %v292 = vor.u32 %v287, %v291
      %v294 = vshll.u32 %v268, 16
      %v296 = vrot.slane %v294, 1
      %v297 = vsel %vm273, %v292, %v296
      %v299 = vshrl.u32 %v245, 16
      %v301 = vshll.u32 %v245, 16
      %v303 = vrot.slane %v301, 1
      %v304 = vor.u32 %v299, %v303
      %v306 = vshll.u32 %v269, 16
      %v308 = vrot.slane %v306, 1
      %v309 = vsel %vm273, %v304, %v308
      %v311 = vshrl.u32 %v246, 16
      %v313 = vshll.u32 %v246, 16
      %v315 = vrot.slane %v313, 1
      %v316 = vor.u32 %v311, %v315
      %v318 = vshll.u32 %v270, 16
      %v320 = vrot.slane %v318, 1
      %v321 = vsel %vm273, %v316, %v320
      %v323 = vshrl.u32 %v247, 16
      %v325 = vshll.u32 %v247, 16
      %v327 = vrot.slane %v325, 1
      %v328 = vor.u32 %v323, %v327
      %v330 = vshll.u32 %v271, 16
      %v332 = vrot.slane %v330, 1
      %v333 = vsel %vm273, %v328, %v332
      %v335 = vshrl.u32 %v248, 16
      %v337 = vshll.u32 %v248, 16
      %v339 = vrot.slane %v337, 1
      %v340 = vor.u32 %v335, %v339
      %v342 = vshll.u32 %v272, 16
      %v344 = vrot.slane %v342, 1
      %v345 = vsel %vm273, %v340, %v344
      %vm352 = vcmask 1046528
      %v353 = vrot.slane %v243, 1
      %v354 = vrot.slane %v267, 1
      %v355 = vsel %vm352, %v353, %v354
      %v356 = vrot.slane %v244, 1
      %v357 = vrot.slane %v268, 1
      %v358 = vsel %vm352, %v356, %v357
      %v359 = vrot.slane %v245, 1
      %v360 = vrot.slane %v269, 1
      %v361 = vsel %vm352, %v359, %v360
      %v362 = vrot.slane %v246, 1
      %v363 = vrot.slane %v270, 1
      %v364 = vsel %vm352, %v362, %v363
      %v365 = vrot.slane %v247, 1
      %v366 = vrot.slane %v271, 1
      %v367 = vsel %vm352, %v365, %v366
      %v368 = vrot.slane %v248, 1
      %v369 = vrot.slane %v272, 1
      %v370 = vsel %vm352, %v368, %v369
      %v377 = vld [vmem:[%s1] sm:$0xf]
      %v378 = vld [vmem:[%s1 + $0x4] sm:$0xf]
      %v379 = vld [vmem:[%s1 + $0x8] sm:$0xf]
      %v380 = vld [vmem:[%s1 + $0xc] sm:$0xf]
      %v381 = vld [vmem:[%s1 + $0x10] sm:$0xf]
      %v382 = vld [vmem:[%s1 + $0x14] sm:$0xf]
      %v383 = vld [vmem:[%s1 + $0x18] sm:$0xf]
      %v384 = vld [vmem:[%s1 + $0x1c] sm:$0xf]
      %v385 = vld [vmem:[%s1 + $0x20] sm:$0xf]
      %v386 = vld [vmem:[%s1 + $0x24] sm:$0xf]
      %v387 = vld [vmem:[%s1 + $0x28] sm:$0xf]
      %v388 = vld [vmem:[%s1 + $0x2c] sm:$0xf]
      %v389 = vld [vmem:[%s1 + $0x30] sm:$0xf]
      %v390 = vld [vmem:[%s1 + $0x34] sm:$0xf]
      %v391 = vld [vmem:[%s1 + $0x38] sm:$0xf]
      %v392 = vld [vmem:[%s1 + $0x3c] sm:$0xf]
      %v393 = vld [vmem:[%s1 + $0x40] sm:$0xf]
      %v394 = vld [vmem:[%s1 + $0x44] sm:$0xf]
      %v395 = vld [vmem:[%s1 + $0x48] sm:$0xf]
      %v396 = vld [vmem:[%s1 + $0x4c] sm:$0xf]
      %v397 = vld [vmem:[%s1 + $0x50] sm:$0xf]
      %v398 = vld [vmem:[%s1 + $0x54] sm:$0xf]
      %v399 = vld [vmem:[%s1 + $0x58] sm:$0xf]
      %v400 = vld [vmem:[%s1 + $0x5c] sm:$0xf]
      %v401 = vld [vmem:[%s1 + $0x60] sm:$0xf]
      %v402 = vld [vmem:[%s1 + $0x64] sm:$0xf]
      %v403 = vld [vmem:[%s1 + $0x68] sm:$0xf]
      %v404 = vld [vmem:[%s1 + $0x6c] sm:$0xf]
      %v405 = vld [vmem:[%s1 + $0x70] sm:$0xf]
      %v406 = vld [vmem:[%s1 + $0x74] sm:$0xf]
      %v407 = vld [vmem:[%s1 + $0x78] sm:$0xf]
      %v408 = vld [vmem:[%s1 + $0x7c] sm:$0xf]
      %v409 = vld [vmem:[%s1 + $0x80] sm:$0xf]
      %v410 = vld [vmem:[%s1 + $0x84] sm:$0xf]
      %v411 = vld [vmem:[%s1 + $0x88] sm:$0xf]
      %v412 = vld [vmem:[%s1 + $0x8c] sm:$0xf]
      %v413 = vld [vmem:[%s1 + $0x90] sm:$0xf]
      %v414 = vld [vmem:[%s1 + $0x94] sm:$0xf]
      %v415 = vld [vmem:[%s1 + $0x98] sm:$0xf]
      %v416 = vld [vmem:[%s1 + $0x9c] sm:$0xf]
      %v417 = vld [vmem:[%s1 + $0xa0] sm:$0xf]
      %v418 = vld [vmem:[%s1 + $0xa4] sm:$0xf]
      %v419 = vld [vmem:[%s1 + $0xa8] sm:$0xf]
      %v420 = vld [vmem:[%s1 + $0xac] sm:$0xf]
      %v421 = vld [vmem:[%s1 + $0xb0] sm:$0xf]
      %v422 = vld [vmem:[%s1 + $0xb4] sm:$0xf]
      %v423 = vld [vmem:[%s1 + $0xb8] sm:$0xf]
      %v424 = vld [vmem:[%s1 + $0xbc] sm:$0xf]
      %v425 = vld [vmem:[%s1 + $0xc0] sm:$0xf]
      %v426 = vld [vmem:[%s1 + $0xc4] sm:$0xf]
      %v427 = vld [vmem:[%s1 + $0xc8] sm:$0xf]
      %v428 = vld [vmem:[%s1 + $0xcc] sm:$0xf]
      %v429 = vld [vmem:[%s1 + $0xd0] sm:$0xf]
      %v430 = vld [vmem:[%s1 + $0xd4] sm:$0xf]
      %v431 = vld [vmem:[%s1 + $0xd8] sm:$0xf]
      %v432 = vld [vmem:[%s1 + $0xdc] sm:$0xf]
      %v433 = vld [vmem:[%s1 + $0xe0] sm:$0xf]
      %v434 = vld [vmem:[%s1 + $0xe4] sm:$0xf]
      %v435 = vld [vmem:[%s1 + $0xe8] sm:$0xf]
      %v436 = vld [vmem:[%s1 + $0xec] sm:$0xf]
      %v437 = vld [vmem:[%s1 + $0xf0] sm:$0xf]
      %v438 = vld [vmem:[%s1 + $0xf4] sm:$0xf]
      %v439 = vld [vmem:[%s1 + $0xf8] sm:$0xf]
      %v440 = vld [vmem:[%s1 + $0xfc] sm:$0xf]
      %v441 = vld [vmem:[%s1 + $0x100] sm:$0xf]
      %v442 = vld [vmem:[%s1 + $0x104] sm:$0xf]
      %v443 = vld [vmem:[%s1 + $0x108] sm:$0xf]
      %v444 = vld [vmem:[%s1 + $0x10c] sm:$0xf]
      %v445 = vld [vmem:[%s1 + $0x110] sm:$0xf]
      %v446 = vld [vmem:[%s1 + $0x114] sm:$0xf]
      %v447 = vld [vmem:[%s1 + $0x118] sm:$0xf]
      %v448 = vld [vmem:[%s1 + $0x11c] sm:$0xf]
      %v449 = vld [vmem:[%s1 + $0x120] sm:$0xf]
      %v450 = vld [vmem:[%s1 + $0x124] sm:$0xf]
      %v451 = vld [vmem:[%s1 + $0x128] sm:$0xf]
      %v452 = vld [vmem:[%s1 + $0x12c] sm:$0xf]
      %v453 = vld [vmem:[%s1 + $0x130] sm:$0xf]
      %v454 = vld [vmem:[%s1 + $0x134] sm:$0xf]
      %v455 = vld [vmem:[%s1 + $0x138] sm:$0xf]
      %v456 = vld [vmem:[%s1 + $0x13c] sm:$0xf]
      %v457 = vld [vmem:[%s1 + $0x140] sm:$0xf]
      %v458 = vld [vmem:[%s1 + $0x144] sm:$0xf]
      %v459 = vld [vmem:[%s1 + $0x148] sm:$0xf]
      %v460 = vld [vmem:[%s1 + $0x14c] sm:$0xf]
      %v461 = vld [vmem:[%s1 + $0x150] sm:$0xf]
      %v462 = vld [vmem:[%s1 + $0x154] sm:$0xf]
      %v463 = vld [vmem:[%s1 + $0x158] sm:$0xf]
      %v464 = vld [vmem:[%s1 + $0x15c] sm:$0xf]
      %v465 = vld [vmem:[%s1 + $0x160] sm:$0xf]
      %v466 = vld [vmem:[%s1 + $0x164] sm:$0xf]
      %v467 = vld [vmem:[%s1 + $0x168] sm:$0xf]
      %v468 = vld [vmem:[%s1 + $0x16c] sm:$0xf]
      %v469 = vld [vmem:[%s1 + $0x170] sm:$0xf]
      %v470 = vld [vmem:[%s1 + $0x174] sm:$0xf]
      %v471 = vld [vmem:[%s1 + $0x178] sm:$0xf]
      %v472 = vld [vmem:[%s1 + $0x17c] sm:$0xf]
      %v473 = vld [vmem:[%s1 + $0x180] sm:$0xf]
      %v474 = vld [vmem:[%s1 + $0x184] sm:$0xf]
      %v475 = vld [vmem:[%s1 + $0x188] sm:$0xf]
      %v476 = vld [vmem:[%s1 + $0x18c] sm:$0xf]
      %v477 = vld [vmem:[%s1 + $0x190] sm:$0xf]
      %v478 = vld [vmem:[%s1 + $0x194] sm:$0xf]
      %v479 = vld [vmem:[%s1 + $0x198] sm:$0xf]
      %v480 = vld [vmem:[%s1 + $0x19c] sm:$0xf]
      %v481 = vld [vmem:[%s1 + $0x1a0] sm:$0xf]
      %v482 = vld [vmem:[%s1 + $0x1a4] sm:$0xf]
      %v483 = vld [vmem:[%s1 + $0x1a8] sm:$0xf]
      %v484 = vld [vmem:[%s1 + $0x1ac] sm:$0xf]
      %v485 = vld [vmem:[%s1 + $0x1b0] sm:$0xf]
      %v486 = vld [vmem:[%s1 + $0x1b4] sm:$0xf]
      %v487 = vld [vmem:[%s1 + $0x1b8] sm:$0xf]
      %v488 = vld [vmem:[%s1 + $0x1bc] sm:$0xf]
      %v489 = vld [vmem:[%s1 + $0x1c0] sm:$0xf]
      %v490 = vld [vmem:[%s1 + $0x1c4] sm:$0xf]
      %v491 = vld [vmem:[%s1 + $0x1c8] sm:$0xf]
      %v492 = vld [vmem:[%s1 + $0x1cc] sm:$0xf]
      %v493 = vld [vmem:[%s1 + $0x1d0] sm:$0xf]
      %v494 = vld [vmem:[%s1 + $0x1d4] sm:$0xf]
      %v495 = vld [vmem:[%s1 + $0x1d8] sm:$0xf]
      %v496 = vld [vmem:[%s1 + $0x1dc] sm:$0xf]
      %v497 = vld [vmem:[%s1 + $0x1e0] sm:$0xf]
      %v498 = vld [vmem:[%s1 + $0x1e4] sm:$0xf]
      %v499 = vld [vmem:[%s1 + $0x1e8] sm:$0xf]
      %v500 = vld [vmem:[%s1 + $0x1ec] sm:$0xf]
      %v501 = vld [vmem:[%s1 + $0x1f0] sm:$0xf]
      %v502 = vld [vmem:[%s1 + $0x1f4] sm:$0xf]
      %v503 = vld [vmem:[%s1 + $0x1f8] sm:$0xf]
      %v504 = vld [vmem:[%s1 + $0x1fc] sm:$0xf]
      %v505 = vld [vmem:[%s1 + $0x200] sm:$0xf]
      %v506 = vld [vmem:[%s1 + $0x204] sm:$0xf]
      %v507 = vld [vmem:[%s1 + $0x208] sm:$0xf]
      %v508 = vld [vmem:[%s1 + $0x20c] sm:$0xf]
      %v509 = vld [vmem:[%s1 + $0x210] sm:$0xf]
      %v510 = vld [vmem:[%s1 + $0x214] sm:$0xf]
      %v511 = vld [vmem:[%s1 + $0x218] sm:$0xf]
      %v512 = vld [vmem:[%s1 + $0x21c] sm:$0xf]
      %v513 = vld [vmem:[%s1 + $0x220] sm:$0xf]
      %v514 = vld [vmem:[%s1 + $0x224] sm:$0xf]
      %v515 = vld [vmem:[%s1 + $0x228] sm:$0xf]
      %v516 = vld [vmem:[%s1 + $0x22c] sm:$0xf]
      %v517 = vld [vmem:[%s1 + $0x230] sm:$0xf]
      %v518 = vld [vmem:[%s1 + $0x234] sm:$0xf]
      %v519 = vld [vmem:[%s1 + $0x238] sm:$0xf]
      %v520 = vld [vmem:[%s1 + $0x23c] sm:$0xf]
      %v569 = vunpack.c.l.b16 %v377
      %v570 = vunpack.c.l.b16 %v378
      %v571 = vunpack.c.l.b16 %v379
      %v572 = vunpack.c.l.b16 %v380
      %v573 = vunpack.c.l.b16 %v381
      %v574 = vunpack.c.l.b16 %v382
      %v575 = vunpack.c.l.b16 %v383
      %v576 = vunpack.c.l.b16 %v384
      %v577 = vunpack.c.l.b16 %v385
      %v578 = vunpack.c.l.b16 %v386
      %v579 = vunpack.c.l.b16 %v387
      %v580 = vunpack.c.l.b16 %v388
      %v581 = vunpack.c.l.b16 %v389
      %v582 = vunpack.c.l.b16 %v390
      %v583 = vunpack.c.l.b16 %v391
      %v584 = vunpack.c.l.b16 %v392
      %v585 = vunpack.c.l.b16 %v393
      %v586 = vunpack.c.l.b16 %v394
      %v587 = vunpack.c.l.b16 %v395
      %v588 = vunpack.c.l.b16 %v396
      %v589 = vunpack.c.l.b16 %v397
      %v590 = vunpack.c.l.b16 %v398
      %v591 = vunpack.c.l.b16 %v399
      %v592 = vunpack.c.l.b16 %v400
      %v593 = vunpack.c.l.b16 %v401
      %v594 = vunpack.c.l.b16 %v402
      %v595 = vunpack.c.l.b16 %v403
      %v596 = vunpack.c.l.b16 %v404
      %v597 = vunpack.c.l.b16 %v405
      %v598 = vunpack.c.l.b16 %v406
      %v599 = vunpack.c.l.b16 %v407
      %v600 = vunpack.c.l.b16 %v408
      %v601 = vunpack.c.l.b16 %v409
      %v602 = vunpack.c.l.b16 %v410
      %v603 = vunpack.c.l.b16 %v411
      %v604 = vunpack.c.l.b16 %v412
      %v605 = vunpack.c.l.b16 %v413
      %v606 = vunpack.c.l.b16 %v414
      %v607 = vunpack.c.l.b16 %v415
      %v608 = vunpack.c.l.b16 %v416
      %v609 = vunpack.c.l.b16 %v417
      %v610 = vunpack.c.l.b16 %v418
      %v611 = vunpack.c.l.b16 %v419
      %v612 = vunpack.c.l.b16 %v420
      %v613 = vunpack.c.l.b16 %v421
      %v614 = vunpack.c.l.b16 %v422
      %v615 = vunpack.c.l.b16 %v423
      %v616 = vunpack.c.l.b16 %v424
      %v617 = vpack.c.b16 %v570, %v569
      %v618 = vpack.c.b16 %v572, %v571
      %v619 = vpack.c.b16 %v574, %v573
      %v620 = vpack.c.b16 %v576, %v575
      %v621 = vpack.c.b16 %v578, %v577
      %v622 = vpack.c.b16 %v580, %v579
      %v623 = vpack.c.b16 %v582, %v581
      %v624 = vpack.c.b16 %v584, %v583
      %v625 = vpack.c.b16 %v586, %v585
      %v626 = vpack.c.b16 %v588, %v587
      %v627 = vpack.c.b16 %v590, %v589
      %v628 = vpack.c.b16 %v592, %v591
      %v629 = vpack.c.b16 %v594, %v593
      %v630 = vpack.c.b16 %v596, %v595
      %v631 = vpack.c.b16 %v598, %v597
      %v632 = vpack.c.b16 %v600, %v599
      %v633 = vpack.c.b16 %v602, %v601
      %v634 = vpack.c.b16 %v604, %v603
      %v635 = vpack.c.b16 %v606, %v605
      %v636 = vpack.c.b16 %v608, %v607
      %v637 = vpack.c.b16 %v610, %v609
      %v638 = vpack.c.b16 %v612, %v611
      %v639 = vpack.c.b16 %v614, %v613
      %v640 = vpack.c.b16 %v616, %v615
      %665 = vmatprep.subr.bf16.mxu0 0
      %666 = vmatpush1.bf16.msra.mxu0 %v617
      %667 = vmatprep.subr.bf16.mxu0 0
      %668 = vmatpush1.bf16.msra.mxu0 %v618
      %669 = vmatprep.subr.bf16.mxu0 0
      %670 = vmatpush1.bf16.msra.mxu0 %v619
      %671 = vmatprep.subr.bf16.mxu0 0
      %672 = vmatpush1.bf16.msra.mxu0 %v620
      %673 = vmatprep.subr.bf16.mxu0 0
      %674 = vmatpush1.bf16.msra.mxu0 %v621
      %675 = vmatprep.subr.bf16.mxu0 0
      %676 = vmatpush1.bf16.msra.mxu0 %v622
      %677 = vmatprep.subr.bf16.mxu0 0
      %678 = vmatpush1.bf16.msra.mxu0 %v623
      %679 = vmatprep.subr.bf16.mxu0 0
      %680 = vmatpush1.bf16.msra.mxu0 %v624
      %681 = vmatprep.subr.bf16.mxu0 0
      %682 = vmatpush1.bf16.msra.mxu0 %v625
      %683 = vmatprep.subr.bf16.mxu0 0
      %684 = vmatpush1.bf16.msra.mxu0 %v626
      %685 = vmatprep.subr.bf16.mxu0 0
      %686 = vmatpush1.bf16.msra.mxu0 %v627
      %687 = vmatprep.subr.bf16.mxu0 0
      %688 = vmatpush1.bf16.msra.mxu0 %v628
      %689 = vmatprep.subr.bf16.mxu0 0
      %690 = vmatpush1.bf16.msra.mxu0 %v629
      %691 = vmatprep.subr.bf16.mxu0 0
      %692 = vmatpush1.bf16.msra.mxu0 %v630
      %693 = vmatprep.subr.bf16.mxu0 0
      %694 = vmatpush1.bf16.msra.mxu0 %v631
      %695 = vmatprep.subr.bf16.mxu0 0
      %696 = vmatpush1.bf16.msra.mxu0 %v632
      %697 = vmatprep.mubr.bf16.mxu0 %v285
      %698 = vmatmul.mubr.bf16.gmra.mrb[0].mxu0 %v243
      %v699 = vpop.f32.mrb[0].mxu0
      %v700 = vadd.f32 0.0, %v699
      %v701 = vpop.f32.mrb[0].mxu0
      %v702 = vpop.f32.mrb[0].mxu0
      %v703 = vadd.f32 0.0, %v702
      %v704 = vpop.f32.mrb[0].mxu0
      %705 = vmatprep.mubr.bf16.mxu0 %v297
      %706 = vmatmul.mubr.bf16.gmra.mrb[0].mxu0 %v244
      %v707 = vpop.f32.mrb[0].mxu0
      %v708 = vadd.f32 0.0, %v707
      %v709 = vpop.f32.mrb[0].mxu0
      %v710 = vpop.f32.mrb[0].mxu0
      %v711 = vadd.f32 0.0, %v710
      %v712 = vpop.f32.mrb[0].mxu0
      %713 = vmatprep.mubr.bf16.mxu0 %v309
      %714 = vmatmul.mubr.bf16.gmra.mrb[0].mxu0 %v245
      %v715 = vpop.f32.mrb[0].mxu0
      %v716 = vadd.f32 0.0, %v715
      %v717 = vpop.f32.mrb[0].mxu0
      %v718 = vpop.f32.mrb[0].mxu0
      %v719 = vadd.f32 0.0, %v718
      %v720 = vpop.f32.mrb[0].mxu0
      %721 = vmatprep.mubr.bf16.mxu0 %v321
      %722 = vmatmul.mubr.bf16.gmra.mrb[0].mxu0 %v246
      %v723 = vpop.f32.mrb[0].mxu0
      %v724 = vadd.f32 0.0, %v723
      %v725 = vpop.f32.mrb[0].mxu0
      %v726 = vpop.f32.mrb[0].mxu0
      %v727 = vadd.f32 0.0, %v726
      %v728 = vpop.f32.mrb[0].mxu0
      %729 = vdwg.mxu0
      %730 = vmatprep.subr.bf16.mxu0 0
      %731 = vmatpush1.bf16.msra.mxu0 %v633
      %732 = vmatprep.subr.bf16.mxu0 0
      %733 = vmatpush1.bf16.msra.mxu0 %v634
      %734 = vmatprep.subr.bf16.mxu0 0
      %735 = vmatpush1.bf16.msra.mxu0 %v635
      %736 = vmatprep.subr.bf16.mxu0 0
      %737 = vmatpush1.bf16.msra.mxu0 %v636
      %738 = vmatprep.subr.bf16.mxu0 0
      %739 = vmatpush1.bf16.msra.mxu0 %v637
      %740 = vmatprep.subr.bf16.mxu0 0
      %741 = vmatpush1.bf16.msra.mxu0 %v638
      %742 = vmatprep.subr.bf16.mxu0 0
      %743 = vmatpush1.bf16.msra.mxu0 %v639
      %744 = vmatprep.subr.bf16.mxu0 0
      %745 = vmatpush1.bf16.msra.mxu0 %v640
      %746 = vmatprep.subr.bf16.mxu0 0
      %747 = vmatpush1.bf16.msra.mxu0 0
      %748 = vmatprep.subr.bf16.mxu0 0
      %749 = vmatpush1.bf16.msra.mxu0 0
      %750 = vmatprep.subr.bf16.mxu0 0
      %751 = vmatpush1.bf16.msra.mxu0 0
      %752 = vmatprep.subr.bf16.mxu0 0
      %753 = vmatpush1.bf16.msra.mxu0 0
      %754 = vmatprep.subr.bf16.mxu0 0
      %755 = vmatpush1.bf16.msra.mxu0 0
      %756 = vmatprep.subr.bf16.mxu0 0
      %757 = vmatpush1.bf16.msra.mxu0 0
      %758 = vmatprep.subr.bf16.mxu0 0
      %759 = vmatpush1.bf16.msra.mxu0 0
      %760 = vmatprep.subr.bf16.mxu0 0
      %761 = vmatpush1.bf16.msra.mxu0 0
      %762 = vmatprep.mubr.bf16.mxu0 0
      %763 = vmatmul.mubr.bf16.gmra.mrb[0].mxu0 %v355
      %v764 = vpop.f32.mrb[0].mxu0
      %v765 = vadd.f32 %v700, %v764
      %v766 = vpop.f32.mrb[0].mxu0
      %v767 = vpop.f32.mrb[0].mxu0
      %v768 = vadd.f32 %v703, %v767
      %v769 = vpop.f32.mrb[0].mxu0
      %770 = vmatprep.mubr.bf16.mxu0 0
      %771 = vmatmul.mubr.bf16.gmra.mrb[0].mxu0 %v358
      %v772 = vpop.f32.mrb[0].mxu0
      %v773 = vadd.f32 %v708, %v772
      %v774 = vpop.f32.mrb[0].mxu0
      %v775 = vpop.f32.mrb[0].mxu0
      %v776 = vadd.f32 %v711, %v775
      %v777 = vpop.f32.mrb[0].mxu0
      %778 = vmatprep.mubr.bf16.mxu0 0
      %779 = vmatmul.mubr.bf16.gmra.mrb[0].mxu0 %v361
      %v780 = vpop.f32.mrb[0].mxu0
      %v781 = vadd.f32 %v716, %v780
      %v782 = vpop.f32.mrb[0].mxu0
      %v783 = vpop.f32.mrb[0].mxu0
      %v784 = vadd.f32 %v719, %v783
      %v785 = vpop.f32.mrb[0].mxu0
      %786 = vmatprep.mubr.bf16.mxu0 0
      %787 = vmatmul.mubr.bf16.gmra.mrb[0].mxu0 %v364
      %v788 = vpop.f32.mrb[0].mxu0
      %v789 = vadd.f32 %v724, %v788
      %v790 = vpop.f32.mrb[0].mxu0
      %v791 = vpop.f32.mrb[0].mxu0
      %v792 = vadd.f32 %v727, %v791
      %v793 = vpop.f32.mrb[0].mxu0
      %794 = vdwg.mxu0
      %795 = vst [vmem:[#allocation2] sm:$0xff] %v765
      %796 = vst [vmem:[#allocation2 + $0x8] sm:$0xff] %v768
      %797 = vst [vmem:[#allocation2 + $0x10] sm:$0xff] %v773
      %798 = vst [vmem:[#allocation2 + $0x18] sm:$0xff] %v776
      %799 = vst [vmem:[#allocation2 + $0x20] sm:$0xff] %v781
      %800 = vst [vmem:[#allocation2 + $0x28] sm:$0xff] %v784
      %801 = vst [vmem:[#allocation2 + $0x30] sm:$0xff] %v789
      %802 = vst [vmem:[#allocation2 + $0x38] sm:$0xff] %v792
      %v803 = vld [vmem:[#allocation2] sm:$0xff]
      %v804 = vld [vmem:[#allocation2 + $0x8] sm:$0xff]
      %v805 = vld [vmem:[#allocation2 + $0x10] sm:$0xff]
      %v806 = vld [vmem:[#allocation2 + $0x18] sm:$0xff]
      %v807 = vld [vmem:[#allocation2 + $0x20] sm:$0xff]
      %v808 = vld [vmem:[#allocation2 + $0x28] sm:$0xff]
      %v809 = vld [vmem:[#allocation2 + $0x30] sm:$0xff]
      %v810 = vld [vmem:[#allocation2 + $0x38] sm:$0xff]
      %v859 = vunpack.c.l.b16 %v425
      %v860 = vunpack.c.l.b16 %v426
      %v861 = vunpack.c.l.b16 %v427
      %v862 = vunpack.c.l.b16 %v428
      %v863 = vunpack.c.l.b16 %v429
      %v864 = vunpack.c.l.b16 %v430
      %v865 = vunpack.c.l.b16 %v431
      %v866 = vunpack.c.l.b16 %v432
      %v867 = vunpack.c.l.b16 %v433
      %v868 = vunpack.c.l.b16 %v434
      %v869 = vunpack.c.l.b16 %v435
      %v870 = vunpack.c.l.b16 %v436
      %v871 = vunpack.c.l.b16 %v437
      %v872 = vunpack.c.l.b16 %v438
      %v873 = vunpack.c.l.b16 %v439
      %v874 = vunpack.c.l.b16 %v440
      %v875 = vunpack.c.l.b16 %v441
      %v876 = vunpack.c.l.b16 %v442
      %v877 = vunpack.c.l.b16 %v443
      %v878 = vunpack.c.l.b16 %v444
      %v879 = vunpack.c.l.b16 %v445
      %v880 = vunpack.c.l.b16 %v446
      %v881 = vunpack.c.l.b16 %v447
      %v882 = vunpack.c.l.b16 %v448
      %v883 = vunpack.c.l.b16 %v449
      %v884 = vunpack.c.l.b16 %v450
      %v885 = vunpack.c.l.b16 %v451
      %v886 = vunpack.c.l.b16 %v452
      %v887 = vunpack.c.l.b16 %v453
      %v888 = vunpack.c.l.b16 %v454
      %v889 = vunpack.c.l.b16 %v455
      %v890 = vunpack.c.l.b16 %v456
      %v891 = vunpack.c.l.b16 %v457
      %v892 = vunpack.c.l.b16 %v458
      %v893 = vunpack.c.l.b16 %v459
      %v894 = vunpack.c.l.b16 %v460
      %v895 = vunpack.c.l.b16 %v461
      %v896 = vunpack.c.l.b16 %v462
      %v897 = vunpack.c.l.b16 %v463
      %v898 = vunpack.c.l.b16 %v464
      %v899 = vunpack.c.l.b16 %v465
      %v900 = vunpack.c.l.b16 %v466
      %v901 = vunpack.c.l.b16 %v467
      %v902 = vunpack.c.l.b16 %v468
      %v903 = vunpack.c.l.b16 %v469
      %v904 = vunpack.c.l.b16 %v470
      %v905 = vunpack.c.l.b16 %v471
      %v906 = vunpack.c.l.b16 %v472
      %v907 = vpack.c.b16 %v860, %v859
      %v908 = vpack.c.b16 %v862, %v861
      %v909 = vpack.c.b16 %v864, %v863
      %v910 = vpack.c.b16 %v866, %v865
      %v911 = vpack.c.b16 %v868, %v867
      %v912 = vpack.c.b16 %v870, %v869
      %v913 = vpack.c.b16 %v872, %v871
      %v914 = vpack.c.b16 %v874, %v873
      %v915 = vpack.c.b16 %v876, %v875
      %v916 = vpack.c.b16 %v878, %v877
      %v917 = vpack.c.b16 %v880, %v879
      %v918 = vpack.c.b16 %v882, %v881
      %v919 = vpack.c.b16 %v884, %v883
      %v920 = vpack.c.b16 %v886, %v885
      %v921 = vpack.c.b16 %v888, %v887
      %v922 = vpack.c.b16 %v890, %v889
      %v923 = vpack.c.b16 %v892, %v891
      %v924 = vpack.c.b16 %v894, %v893
      %v925 = vpack.c.b16 %v896, %v895
      %v926 = vpack.c.b16 %v898, %v897
      %v927 = vpack.c.b16 %v900, %v899
      %v928 = vpack.c.b16 %v902, %v901
      %v929 = vpack.c.b16 %v904, %v903
      %v930 = vpack.c.b16 %v906, %v905
      %955 = vmatprep.subr.bf16.mxu0 0
      %956 = vmatpush1.bf16.msra.mxu0 %v907
      %957 = vmatprep.subr.bf16.mxu0 0
      %958 = vmatpush1.bf16.msra.mxu0 %v908
      %959 = vmatprep.subr.bf16.mxu0 0
      %960 = vmatpush1.bf16.msra.mxu0 %v909
      %961 = vmatprep.subr.bf16.mxu0 0
      %962 = vmatpush1.bf16.msra.mxu0 %v910
      %963 = vmatprep.subr.bf16.mxu0 0
      %964 = vmatpush1.bf16.msra.mxu0 %v911
      %965 = vmatprep.subr.bf16.mxu0 0
      %966 = vmatpush1.bf16.msra.mxu0 %v912
      %967 = vmatprep.subr.bf16.mxu0 0
      %968 = vmatpush1.bf16.msra.mxu0 %v913
      %969 = vmatprep.subr.bf16.mxu0 0
      %970 = vmatpush1.bf16.msra.mxu0 %v914
      %971 = vmatprep.subr.bf16.mxu0 0
      %972 = vmatpush1.bf16.msra.mxu0 %v915
      %973 = vmatprep.subr.bf16.mxu0 0
      %974 = vmatpush1.bf16.msra.mxu0 %v916
      %975 = vmatprep.subr.bf16.mxu0 0
      %976 = vmatpush1.bf16.msra.mxu0 %v917
      %977 = vmatprep.subr.bf16.mxu0 0
      %978 = vmatpush1.bf16.msra.mxu0 %v918
      %979 = vmatprep.subr.bf16.mxu0 0
      %980 = vmatpush1.bf16.msra.mxu0 %v919
      %981 = vmatprep.subr.bf16.mxu0 0
      %982 = vmatpush1.bf16.msra.mxu0 %v920
      %983 = vmatprep.subr.bf16.mxu0 0
      %984 = vmatpush1.bf16.msra.mxu0 %v921
      %985 = vmatprep.subr.bf16.mxu0 0
      %986 = vmatpush1.bf16.msra.mxu0 %v922
      %987 = vmatprep.mubr.bf16.mxu0 %v297
      %988 = vmatmul.mubr.bf16.gmra.mrb[0].mxu0 %v244
      %v989 = vpop.f32.mrb[0].mxu0
      %v990 = vadd.f32 0.0, %v989
      %v991 = vpop.f32.mrb[0].mxu0
      %v992 = vpop.f32.mrb[0].mxu0
      %v993 = vadd.f32 0.0, %v992
      %v994 = vpop.f32.mrb[0].mxu0
      %995 = vmatprep.mubr.bf16.mxu0 %v309
      %996 = vmatmul.mubr.bf16.gmra.mrb[0].mxu0 %v245
      %v997 = vpop.f32.mrb[0].mxu0
      %v998 = vadd.f32 0.0, %v997
      %v999 = vpop.f32.mrb[0].mxu0
      %v1000 = vpop.f32.mrb[0].mxu0
      %v1001 = vadd.f32 0.0, %v1000
      %v1002 = vpop.f32.mrb[0].mxu0
      %1003 = vmatprep.mubr.bf16.mxu0 %v321
      %1004 = vmatmul.mubr.bf16.gmra.mrb[0].mxu0 %v246
      %v1005 = vpop.f32.mrb[0].mxu0
      %v1006 = vadd.f32 0.0, %v1005
      %v1007 = vpop.f32.mrb[0].mxu0
      %v1008 = vpop.f32.mrb[0].mxu0
      %v1009 = vadd.f32 0.0, %v1008
      %v1010 = vpop.f32.mrb[0].mxu0
      %1011 = vmatprep.mubr.bf16.mxu0 %v333
      %1012 = vmatmul.mubr.bf16.gmra.mrb[0].mxu0 %v247
      %v1013 = vpop.f32.mrb[0].mxu0
      %v1014 = vadd.f32 0.0, %v1013
      %v1015 = vpop.f32.mrb[0].mxu0
      %v1016 = vpop.f32.mrb[0].mxu0
      %v1017 = vadd.f32 0.0, %v1016
      %v1018 = vpop.f32.mrb[0].mxu0
      %1019 = vdwg.mxu0
      %1020 = vmatprep.subr.bf16.mxu0 0
      %1021 = vmatpush1.bf16.msra.mxu0 %v923
      %1022 = vmatprep.subr.bf16.mxu0 0
      %1023 = vmatpush1.bf16.msra.mxu0 %v924
      %1024 = vmatprep.subr.bf16.mxu0 0
      %1025 = vmatpush1.bf16.msra.mxu0 %v925
      %1026 = vmatprep.subr.bf16.mxu0 0
      %1027 = vmatpush1.bf16.msra.mxu0 %v926
      %1028 = vmatprep.subr.bf16.mxu0 0
      %1029 = vmatpush1.bf16.msra.mxu0 %v927
      %1030 = vmatprep.subr.bf16.mxu0 0
      %1031 = vmatpush1.bf16.msra.mxu0 %v928
      %1032 = vmatprep.subr.bf16.mxu0 0
      %1033 = vmatpush1.bf16.msra.mxu0 %v929
      %1034 = vmatprep.subr.bf16.mxu0 0
      %1035 = vmatpush1.bf16.msra.mxu0 %v930
      %1036 = vmatprep.subr.bf16.mxu0 0
      %1037 = vmatpush1.bf16.msra.mxu0 0
      %1038 = vmatprep.subr.bf16.mxu0 0
      %1039 = vmatpush1.bf16.msra.mxu0 0
      %1040 = vmatprep.subr.bf16.mxu0 0
      %1041 = vmatpush1.bf16.msra.mxu0 0
      %1042 = vmatprep.subr.bf16.mxu0 0
      %1043 = vmatpush1.bf16.msra.mxu0 0
      %1044 = vmatprep.subr.bf16.mxu0 0
      %1045 = vmatpush1.bf16.msra.mxu0 0
      %1046 = vmatprep.subr.bf16.mxu0 0
      %1047 = vmatpush1.bf16.msra.mxu0 0
      %1048 = vmatprep.subr.bf16.mxu0 0
      %1049 = vmatpush1.bf16.msra.mxu0 0
      %1050 = vmatprep.subr.bf16.mxu0 0
      %1051 = vmatpush1.bf16.msra.mxu0 0
      %1052 = vmatprep.mubr.bf16.mxu0 0
      %1053 = vmatmul.mubr.bf16.gmra.mrb[0].mxu0 %v358
      %v1054 = vpop.f32.mrb[0].mxu0
      %v1055 = vadd.f32 %v990, %v1054
      %v1056 = vpop.f32.mrb[0].mxu0
      %v1057 = vpop.f32.mrb[0].mxu0
      %v1058 = vadd.f32 %v993, %v1057
      %v1059 = vpop.f32.mrb[0].mxu0
      %1060 = vmatprep.mubr.bf16.mxu0 0
      %1061 = vmatmul.mubr.bf16.gmra.mrb[0].mxu0 %v361
      %v1062 = vpop.f32.mrb[0].mxu0
      %v1063 = vadd.f32 %v998, %v1062
      %v1064 = vpop.f32.mrb[0].mxu0
      %v1065 = vpop.f32.mrb[0].mxu0
      %v1066 = vadd.f32 %v1001, %v1065
      %v1067 = vpop.f32.mrb[0].mxu0
      %1068 = vmatprep.mubr.bf16.mxu0 0
      %1069 = vmatmul.mubr.bf16.gmra.mrb[0].mxu0 %v364
      %v1070 = vpop.f32.mrb[0].mxu0
      %v1071 = vadd.f32 %v1006, %v1070
      %v1072 = vpop.f32.mrb[0].mxu0
      %v1073 = vpop.f32.mrb[0].mxu0
      %v1074 = vadd.f32 %v1009, %v1073
      %v1075 = vpop.f32.mrb[0].mxu0
      %1076 = vmatprep.mubr.bf16.mxu0 0
      %1077 = vmatmul.mubr.bf16.gmra.mrb[0].mxu0 %v367
      %v1078 = vpop.f32.mrb[0].mxu0
      %v1079 = vadd.f32 %v1014, %v1078
      %v1080 = vpop.f32.mrb[0].mxu0
      %v1081 = vpop.f32.mrb[0].mxu0
      %v1082 = vadd.f32 %v1017, %v1081
      %v1083 = vpop.f32.mrb[0].mxu0
      %1084 = vdwg.mxu0
      %v1085 = vadd.f32 %v803, %v1055
      %v1086 = vadd.f32 %v804, %v1058
      %v1087 = vadd.f32 %v805, %v1063
      %v1088 = vadd.f32 %v806, %v1066
      %v1089 = vadd.f32 %v807, %v1071
      %v1090 = vadd.f32 %v808, %v1074
      %v1091 = vadd.f32 %v809, %v1079
      %v1092 = vadd.f32 %v810, %v1082
      %1093 = vst [vmem:[#allocation2] sm:$0xff] %v1085
      %1094 = vst [vmem:[#allocation2 + $0x8] sm:$0xff] %v1086
      %1095 = vst [vmem:[#allocation2 + $0x10] sm:$0xff] %v1087
      %1096 = vst [vmem:[#allocation2 + $0x18] sm:$0xff] %v1088
      %1097 = vst [vmem:[#allocation2 + $0x20] sm:$0xff] %v1089
      %1098 = vst [vmem:[#allocation2 + $0x28] sm:$0xff] %v1090
      %1099 = vst [vmem:[#allocation2 + $0x30] sm:$0xff] %v1091
      %1100 = vst [vmem:[#allocation2 + $0x38] sm:$0xff] %v1092
      %v1101 = vld [vmem:[#allocation2] sm:$0xff]
      %v1102 = vld [vmem:[#allocation2 + $0x8] sm:$0xff]
      %v1103 = vld [vmem:[#allocation2 + $0x10] sm:$0xff]
      %v1104 = vld [vmem:[#allocation2 + $0x18] sm:$0xff]
      %v1105 = vld [vmem:[#allocation2 + $0x20] sm:$0xff]
      %v1106 = vld [vmem:[#allocation2 + $0x28] sm:$0xff]
      %v1107 = vld [vmem:[#allocation2 + $0x30] sm:$0xff]
      %v1108 = vld [vmem:[#allocation2 + $0x38] sm:$0xff]
      %v1157 = vunpack.c.l.b16 %v473
      %v1158 = vunpack.c.l.b16 %v474
      %v1159 = vunpack.c.l.b16 %v475
      %v1160 = vunpack.c.l.b16 %v476
      %v1161 = vunpack.c.l.b16 %v477
      %v1162 = vunpack.c.l.b16 %v478
      %v1163 = vunpack.c.l.b16 %v479
      %v1164 = vunpack.c.l.b16 %v480
      %v1165 = vunpack.c.l.b16 %v481
      %v1166 = vunpack.c.l.b16 %v482
      %v1167 = vunpack.c.l.b16 %v483
      %v1168 = vunpack.c.l.b16 %v484
      %v1169 = vunpack.c.l.b16 %v485
      %v1170 = vunpack.c.l.b16 %v486
      %v1171 = vunpack.c.l.b16 %v487
      %v1172 = vunpack.c.l.b16 %v488
      %v1173 = vunpack.c.l.b16 %v489
      %v1174 = vunpack.c.l.b16 %v490
      %v1175 = vunpack.c.l.b16 %v491
      %v1176 = vunpack.c.l.b16 %v492
      %v1177 = vunpack.c.l.b16 %v493
      %v1178 = vunpack.c.l.b16 %v494
      %v1179 = vunpack.c.l.b16 %v495
      %v1180 = vunpack.c.l.b16 %v496
      %v1181 = vunpack.c.l.b16 %v497
      %v1182 = vunpack.c.l.b16 %v498
      %v1183 = vunpack.c.l.b16 %v499
      %v1184 = vunpack.c.l.b16 %v500
      %v1185 = vunpack.c.l.b16 %v501
      %v1186 = vunpack.c.l.b16 %v502
      %v1187 = vunpack.c.l.b16 %v503
      %v1188 = vunpack.c.l.b16 %v504
      %v1189 = vunpack.c.l.b16 %v505
      %v1190 = vunpack.c.l.b16 %v506
      %v1191 = vunpack.c.l.b16 %v507
      %v1192 = vunpack.c.l.b16 %v508
      %v1193 = vunpack.c.l.b16 %v509
      %v1194 = vunpack.c.l.b16 %v510
      %v1195 = vunpack.c.l.b16 %v511
      %v1196 = vunpack.c.l.b16 %v512
      %v1197 = vunpack.c.l.b16 %v513
      %v1198 = vunpack.c.l.b16 %v514
      %v1199 = vunpack.c.l.b16 %v515
      %v1200 = vunpack.c.l.b16 %v516
      %v1201 = vunpack.c.l.b16 %v517
      %v1202 = vunpack.c.l.b16 %v518
      %v1203 = vunpack.c.l.b16 %v519
      %v1204 = vunpack.c.l.b16 %v520
      %v1205 = vpack.c.b16 %v1158, %v1157
      %v1206 = vpack.c.b16 %v1160, %v1159
      %v1207 = vpack.c.b16 %v1162, %v1161
      %v1208 = vpack.c.b16 %v1164, %v1163
      %v1209 = vpack.c.b16 %v1166, %v1165
      %v1210 = vpack.c.b16 %v1168, %v1167
      %v1211 = vpack.c.b16 %v1170, %v1169
      %v1212 = vpack.c.b16 %v1172, %v1171
      %v1213 = vpack.c.b16 %v1174, %v1173
      %v1214 = vpack.c.b16 %v1176, %v1175
      %v1215 = vpack.c.b16 %v1178, %v1177
      %v1216 = vpack.c.b16 %v1180, %v1179
      %v1217 = vpack.c.b16 %v1182, %v1181
      %v1218 = vpack.c.b16 %v1184, %v1183
      %v1219 = vpack.c.b16 %v1186, %v1185
      %v1220 = vpack.c.b16 %v1188, %v1187
      %v1221 = vpack.c.b16 %v1190, %v1189
      %v1222 = vpack.c.b16 %v1192, %v1191
      %v1223 = vpack.c.b16 %v1194, %v1193
      %v1224 = vpack.c.b16 %v1196, %v1195
      %v1225 = vpack.c.b16 %v1198, %v1197
      %v1226 = vpack.c.b16 %v1200, %v1199
      %v1227 = vpack.c.b16 %v1202, %v1201
      %v1228 = vpack.c.b16 %v1204, %v1203
      %1253 = vmatprep.subr.bf16.mxu0 0
      %1254 = vmatpush1.bf16.msra.mxu0 %v1205
      %1255 = vmatprep.subr.bf16.mxu0 0
      %1256 = vmatpush1.bf16.msra.mxu0 %v1206
      %1257 = vmatprep.subr.bf16.mxu0 0
      %1258 = vmatpush1.bf16.msra.mxu0 %v1207
      %1259 = vmatprep.subr.bf16.mxu0 0
      %1260 = vmatpush1.bf16.msra.mxu0 %v1208
      %1261 = vmatprep.subr.bf16.mxu0 0
      %1262 = vmatpush1.bf16.msra.mxu0 %v1209
      %1263 = vmatprep.subr.bf16.mxu0 0
      %1264 = vmatpush1.bf16.msra.mxu0 %v1210
      %1265 = vmatprep.subr.bf16.mxu0 0
      %1266 = vmatpush1.bf16.msra.mxu0 %v1211
      %1267 = vmatprep.subr.bf16.mxu0 0
      %1268 = vmatpush1.bf16.msra.mxu0 %v1212
      %1269 = vmatprep.subr.bf16.mxu0 0
      %1270 = vmatpush1.bf16.msra.mxu0 %v1213
      %1271 = vmatprep.subr.bf16.mxu0 0
      %1272 = vmatpush1.bf16.msra.mxu0 %v1214
      %1273 = vmatprep.subr.bf16.mxu0 0
      %1274 = vmatpush1.bf16.msra.mxu0 %v1215
      %1275 = vmatprep.subr.bf16.mxu0 0
      %1276 = vmatpush1.bf16.msra.mxu0 %v1216
      %1277 = vmatprep.subr.bf16.mxu0 0
      %1278 = vmatpush1.bf16.msra.mxu0 %v1217
      %1279 = vmatprep.subr.bf16.mxu0 0
      %1280 = vmatpush1.bf16.msra.mxu0 %v1218
      %1281 = vmatprep.subr.bf16.mxu0 0
      %1282 = vmatpush1.bf16.msra.mxu0 %v1219
      %1283 = vmatprep.subr.bf16.mxu0 0
      %1284 = vmatpush1.bf16.msra.mxu0 %v1220
      %1285 = vmatprep.mubr.bf16.mxu0 %v309
      %1286 = vmatmul.mubr.bf16.gmra.mrb[0].mxu0 %v245
      %v1287 = vpop.f32.mrb[0].mxu0
      %v1288 = vadd.f32 0.0, %v1287
      %v1289 = vpop.f32.mrb[0].mxu0
      %v1290 = vpop.f32.mrb[0].mxu0
      %v1291 = vadd.f32 0.0, %v1290
      %v1292 = vpop.f32.mrb[0].mxu0
      %1293 = vmatprep.mubr.bf16.mxu0 %v321
      %1294 = vmatmul.mubr.bf16.gmra.mrb[0].mxu0 %v246
      %v1295 = vpop.f32.mrb[0].mxu0
      %v1296 = vadd.f32 0.0, %v1295
      %v1297 = vpop.f32.mrb[0].mxu0
      %v1298 = vpop.f32.mrb[0].mxu0
      %v1299 = vadd.f32 0.0, %v1298
      %v1300 = vpop.f32.mrb[0].mxu0
      %1301 = vmatprep.mubr.bf16.mxu0 %v333
      %1302 = vmatmul.mubr.bf16.gmra.mrb[0].mxu0 %v247
      %v1303 = vpop.f32.mrb[0].mxu0
      %v1304 = vadd.f32 0.0, %v1303
      %v1305 = vpop.f32.mrb[0].mxu0
      %v1306 = vpop.f32.mrb[0].mxu0
      %v1307 = vadd.f32 0.0, %v1306
      %v1308 = vpop.f32.mrb[0].mxu0
      %1309 = vmatprep.mubr.bf16.mxu0 %v345
      %1310 = vmatmul.mubr.bf16.gmra.mrb[0].mxu0 %v248
      %v1311 = vpop.f32.mrb[0].mxu0
      %v1312 = vadd.f32 0.0, %v1311
      %v1313 = vpop.f32.mrb[0].mxu0
      %v1314 = vpop.f32.mrb[0].mxu0
      %v1315 = vadd.f32 0.0, %v1314
      %v1316 = vpop.f32.mrb[0].mxu0
      %1317 = vdwg.mxu0
      %1318 = vmatprep.subr.bf16.mxu0 0
      %1319 = vmatpush1.bf16.msra.mxu0 %v1221
      %1320 = vmatprep.subr.bf16.mxu0 0
      %1321 = vmatpush1.bf16.msra.mxu0 %v1222
      %1322 = vmatprep.subr.bf16.mxu0 0
      %1323 = vmatpush1.bf16.msra.mxu0 %v1223
      %1324 = vmatprep.subr.bf16.mxu0 0
      %1325 = vmatpush1.bf16.msra.mxu0 %v1224
      %1326 = vmatprep.subr.bf16.mxu0 0
      %1327 = vmatpush1.bf16.msra.mxu0 %v1225
      %1328 = vmatprep.subr.bf16.mxu0 0
      %1329 = vmatpush1.bf16.msra.mxu0 %v1226
      %1330 = vmatprep.subr.bf16.mxu0 0
      %1331 = vmatpush1.bf16.msra.mxu0 %v1227
      %1332 = vmatprep.subr.bf16.mxu0 0
      %1333 = vmatpush1.bf16.msra.mxu0 %v1228
      %1334 = vmatprep.subr.bf16.mxu0 0
      %1335 = vmatpush1.bf16.msra.mxu0 0
      %1336 = vmatprep.subr.bf16.mxu0 0
      %1337 = vmatpush1.bf16.msra.mxu0 0
      %1338 = vmatprep.subr.bf16.mxu0 0
      %1339 = vmatpush1.bf16.msra.mxu0 0
      %1340 = vmatprep.subr.bf16.mxu0 0
      %1341 = vmatpush1.bf16.msra.mxu0 0
      %1342 = vmatprep.subr.bf16.mxu0 0
      %1343 = vmatpush1.bf16.msra.mxu0 0
      %1344 = vmatprep.subr.bf16.mxu0 0
      %1345 = vmatpush1.bf16.msra.mxu0 0
      %1346 = vmatprep.subr.bf16.mxu0 0
      %1347 = vmatpush1.bf16.msra.mxu0 0
      %1348 = vmatprep.subr.bf16.mxu0 0
      %1349 = vmatpush1.bf16.msra.mxu0 0
      %1350 = vmatprep.mubr.bf16.mxu0 0
      %1351 = vmatmul.mubr.bf16.gmra.mrb[0].mxu0 %v361
      %v1352 = vpop.f32.mrb[0].mxu0
      %v1353 = vadd.f32 %v1288, %v1352
      %v1354 = vpop.f32.mrb[0].mxu0
      %v1355 = vpop.f32.mrb[0].mxu0
      %v1356 = vadd.f32 %v1291, %v1355
      %v1357 = vpop.f32.mrb[0].mxu0
      %1358 = vmatprep.mubr.bf16.mxu0 0
      %1359 = vmatmul.mubr.bf16.gmra.mrb[0].mxu0 %v364
      %v1360 = vpop.f32.mrb[0].mxu0
      %v1361 = vadd.f32 %v1296, %v1360
      %v1362 = vpop.f32.mrb[0].mxu0
      %v1363 = vpop.f32.mrb[0].mxu0
      %v1364 = vadd.f32 %v1299, %v1363
      %v1365 = vpop.f32.mrb[0].mxu0
      %1366 = vmatprep.mubr.bf16.mxu0 0
      %1367 = vmatmul.mubr.bf16.gmra.mrb[0].mxu0 %v367
      %v1368 = vpop.f32.mrb[0].mxu0
      %v1369 = vadd.f32 %v1304, %v1368
      %v1370 = vpop.f32.mrb[0].mxu0
      %v1371 = vpop.f32.mrb[0].mxu0
      %v1372 = vadd.f32 %v1307, %v1371
      %v1373 = vpop.f32.mrb[0].mxu0
      %1374 = vmatprep.mubr.bf16.mxu0 0
      %1375 = vmatmul.mubr.bf16.gmra.mrb[0].mxu0 %v370
      %v1376 = vpop.f32.mrb[0].mxu0
      %v1377 = vadd.f32 %v1312, %v1376
      %v1378 = vpop.f32.mrb[0].mxu0
      %v1379 = vpop.f32.mrb[0].mxu0
      %v1380 = vadd.f32 %v1315, %v1379
      %v1381 = vpop.f32.mrb[0].mxu0
      %1382 = vdwg.mxu0
      %v1383 = vadd.f32 %v1101, %v1353
      %v1384 = vadd.f32 %v1102, %v1356
      %v1385 = vadd.f32 %v1103, %v1361
      %v1386 = vadd.f32 %v1104, %v1364
      %v1387 = vadd.f32 %v1105, %v1369
      %v1388 = vadd.f32 %v1106, %v1372
      %v1389 = vadd.f32 %v1107, %v1377
      %v1390 = vadd.f32 %v1108, %v1380
      %1391 = vst [vmem:[#allocation2] sm:$0xff] %v1383
      %1392 = vst [vmem:[#allocation2 + $0x8] sm:$0xff] %v1384
      %1393 = vst [vmem:[#allocation2 + $0x10] sm:$0xff] %v1385
      %1394 = vst [vmem:[#allocation2 + $0x18] sm:$0xff] %v1386
      %1395 = vst [vmem:[#allocation2 + $0x20] sm:$0xff] %v1387
      %1396 = vst [vmem:[#allocation2 + $0x28] sm:$0xff] %v1388
      %1397 = vst [vmem:[#allocation2 + $0x30] sm:$0xff] %v1389
      %1398 = vst [vmem:[#allocation2 + $0x38] sm:$0xff] %v1390
      %v1399 = vld [vmem:[#allocation2] sm:$0xff]
      %v1400 = vld [vmem:[#allocation2 + $0x8] sm:$0xff]
      %v1401 = vld [vmem:[#allocation2 + $0x10] sm:$0xff]
      %v1402 = vld [vmem:[#allocation2 + $0x18] sm:$0xff]
      %v1403 = vld [vmem:[#allocation2 + $0x20] sm:$0xff]
      %v1404 = vld [vmem:[#allocation2 + $0x28] sm:$0xff]
      %v1405 = vld [vmem:[#allocation2 + $0x30] sm:$0xff]
      %v1406 = vld [vmem:[#allocation2 + $0x38] sm:$0xff]
      %v1407 = vld [vmem:[%s2] sm:$0x1]
      %v1409 = vlaneseq
      %v1410 = vshrl.u32 %v1409, 7
      %v1411 = vsub.s32 0, %v1410
      %v1412 = vrot.slane %v1407, %v1411
      %v1414 = vadd.f32 %v1399, %v1412
      %v1415 = vadd.f32 %v1400, %v1412
      %v1416 = vadd.f32 %v1401, %v1412
      %v1417 = vadd.f32 %v1402, %v1412
      %v1418 = vadd.f32 %v1403, %v1412
      %v1419 = vadd.f32 %v1404, %v1412
      %v1420 = vadd.f32 %v1405, %v1412
      %v1421 = vadd.f32 %v1406, %v1412
      %v1422 = vmax.f32 %v1414, 0.0
      %v1423 = vmax.f32 %v1415, 0.0
      %v1424 = vmax.f32 %v1416, 0.0
      %v1425 = vmax.f32 %v1417, 0.0
      %v1426 = vmax.f32 %v1418, 0.0
      %v1427 = vmax.f32 %v1419, 0.0
      %v1428 = vmax.f32 %v1420, 0.0
      %v1429 = vmax.f32 %v1421, 0.0
      %v1430 = vpack.c.bf16 %v1423, %v1422
      %v1431 = vpack.c.bf16 %v1425, %v1424
      %v1432 = vpack.c.bf16 %v1427, %v1426
      %v1433 = vpack.c.bf16 %v1429, %v1428
      %v1438 = vunpack.c.l.b16 %v1430
      %v1439 = vunpack.c.h.b16 %v1430
      %v1440 = vunpack.c.l.b16 %v1431
      %v1441 = vunpack.c.h.b16 %v1431
      %v1442 = vunpack.c.l.b16 %v1432
      %v1443 = vunpack.c.h.b16 %v1432
      %v1444 = vunpack.c.l.b16 %v1433
      %v1445 = vunpack.c.h.b16 %v1433
      %v1446 = vpack.c.b16 %v1438, %v1438
      %v1447 = vpack.c.b16 %v1439, %v1439
      %v1448 = vpack.c.b16 %v1440, %v1440
      %v1449 = vpack.c.b16 %v1441, %v1441
      %v1450 = vpack.c.b16 %v1442, %v1442
      %v1451 = vpack.c.b16 %v1443, %v1443
      %v1452 = vpack.c.b16 %v1444, %v1444
      %v1453 = vpack.c.b16 %v1445, %v1445
      %1462 = vst [vmem:[%s194] sm:$0xf] %v1446
      %1463 = vst [vmem:[%s194 + $0x4] sm:$0xf] %v1447
      %1464 = vst [vmem:[%s194 + $0x8] sm:$0xf] %v1448
      %1465 = vst [vmem:[%s194 + $0xc] sm:$0xf] %v1449
      %1466 = vst [vmem:[%s194 + $0x10] sm:$0xf] %v1450
      %1467 = vst [vmem:[%s194 + $0x14] sm:$0xf] %v1451
      %1468 = vst [vmem:[%s194 + $0x18] sm:$0xf] %v1452
      %1469 = vst [vmem:[%s194 + $0x1c] sm:$0xf] %v1453
      %s1470 = smul.u32 4, %s19
      %p1471 = scmp.lt.s32.totalorder %s18, 1
      %s1472 = scalar_select %p1471, %s18, 1
      %p1473 = scmp.lt.s32.totalorder %s1470, 15
      %s1474 = scalar_select %p1473, %s1470, 15
      %s1475 = smul.addr %s1474, 2
      %s1476 = smul.addr %s1472, 32
      %s1477 = sadd.s32 %s1475, %s1476
      %s1478 = smul.addr %s1477, 4
      %s1479 = scalar_lea.vmem %s3, %s1478
      // Predicated region
      $region33: #{inception_a.5} parent=31 // pred_check
        %p1480 = pneg %p114
      $region34: #{inception_a.5} parent=31 // pred_check_branch
        %1482 = sbr.rel (%p1480) target = $region36
      $region35: #{inception_a.5} parent=31 // pred_region
        %s1483 = smul.u32 4, %s19
      $region36: #{inception_a.5} parent=31 // pred_fallthru
        _
    $region32: #{inception_a.5} parent=5 // pred_fallthru
      _
    %p1484 = scmp.le.s32.totalorder 2, %s9
    // Predicated region
    $region37: #{inception_a.5} parent=5 // pred_check
      %p1485 = pneg %p1484
    $region38: #{inception_a.5} parent=5 // pred_check_branch
      %1487 = sbr.rel (%p1485) target = $region40
    $region39: #{inception_a.5} parent=5 // pred_region
      %s1488 = ssub.s32 %s9, 2
      // Predicated region
      $region41: #{inception_a.5} parent=39 // pred_check
        %p1489 = pneg %p120
      $region42: #{inception_a.5} parent=39 // pred_check_branch
        %1491 = sbr.rel (%p1489) target = $region44
      $region43: #{inception_a.5} parent=39 // pred_region
        %s1492 = smul.u32 4, %s21
        %p1493 = scmp.lt.s32.totalorder %s20, 1
        %s1494 = scalar_select %p1493, %s20, 1
        %p1495 = scmp.lt.s32.totalorder %s1492, 15
        %s1496 = scalar_select %p1495, %s1492, 15
        %s1497 = smul.addr %s1496, 2
        %s1498 = smul.addr %s1494, 32
        %s1499 = sadd.s32 %s1497, %s1498
        %s1500 = smul.addr %s1499, 4
        %s1501 = scalar_lea.vmem %s3, %s1500
      $region44: #{inception_a.5} parent=39 // pred_fallthru
        _
    $region40: #{inception_a.5} parent=5 // pred_fallthru
      _
  $region6: #{inception_a.5} parent=0 // loop_footer
    %s13 = sadd.s32 1, %s9
  $region7: #{inception_a.5} parent=0 // loop_footer_branch
    %8 = sbr.rel target = $region3
  $region8: #{inception_a.5} parent=0 // loop_exit
    _

</llo_original>
